<compile_context>
chip_gen: v7x
topology: tpu7x:2x2x1
jax: 0.10.0
libtpu: 0.0.40
codegen_flags: <defaults>
</compile_context>

<pallas_src>
import functools

import jax
import jax.numpy as jnp
from jax.experimental import pallas as pl
from jax.experimental.pallas import tpu as pltpu


def _fem_kernel(H, W, C,
                pos_ref, neg_ref,
                s1c1_w, s1c1_b, s1bn_s, s1bn_b, s1c2w_w, s1c2w_b, s1c2b_w, s1c2b_b,
                s2c1_w, s2c1_b, s2bn_s, s2bn_b, s2c2w_w, s2c2w_b, s2c2b_w, s2c2b_b,
                a1_A, a1_wv, a2_A, a2_wv,
                pos_out_ref, neg_out_ref,
                pad_sc):
    HW = H * W

    # Zero the padded scratch once per grid step (border stays zero; both self-attentions
    # fully overwrite the interior before reading).
    pad_sc[...] = jnp.zeros((H + 2, W + 2, C), jnp.float32)

    def self_attention(x_unf, c1_w, c1_b, bn_s, bn_b, c2w_w, c2w_b, c2b_w, c2b_b):
        # basic = relu(bn(conv3x3(x))) ; conv as a single im2col matmul (K = 9C).
        # TODO(synk): BatchNorm2d is folded in eval mode (running stats -> per-channel
        # scale/bias); fresh-module train-mode batch statistics are not reproduced.
        basic = jnp.dot(x_unf, c1_w[...], preferred_element_type=jnp.float32) + c1_b[...]
        basic = jnp.maximum(basic * bn_s[...] + bn_b[...], 0.0)               # (HW, C)

        # im2col of `basic` for the second 3x3 conv (padding=1) via the zero-bordered scratch.
        pad_sc[1:H + 1, 1:W + 1, :] = basic.reshape(H, W, C)
        padded = pad_sc[...]
        b_unf = jnp.concatenate(
            [padded[dy:dy + H, dx:dx + W, :].reshape(HW, C)
             for dy in range(3) for dx in range(3)], axis=-1)                 # (HW, 9C)

        w_part = jnp.dot(b_unf, c2w_w[...], preferred_element_type=jnp.float32) + c2w_b[...]
        b_part = jnp.dot(b_unf, c2b_w[...], preferred_element_type=jnp.float32) + c2b_b[...]
        return jnp.maximum(w_part * basic + b_part, 0.0)                      # (HW, C)

    def cross_attention(x, y, A_ref, wv_ref):
        # mask = softmax((y Wq)(y Wk)^T) = softmax((y A) y^T) with A = Wq Wk^T precomputed.
        yA = jnp.dot(y, A_ref[...], preferred_element_type=jnp.float32)       # (HW, C)
        logits = jax.lax.dot_general(
            yA, y, (((1,), (1,)), ((), ())),
            preferred_element_type=jnp.float32)                               # (HW, HW)
        logits = logits - jnp.max(logits, axis=-1, keepdims=True)
        e = jnp.exp(logits)
        attn = e * pl.reciprocal(jnp.sum(e, axis=-1, keepdims=True), approx=True)
        xv = jnp.dot(x, wv_ref[...], preferred_element_type=jnp.float32)      # (HW, C)
        return jnp.dot(attn, xv, preferred_element_type=jnp.float32)          # (HW, C)

    pos_sa = self_attention(pos_ref[0], s1c1_w, s1c1_b, s1bn_s, s1bn_b,
                            s1c2w_w, s1c2w_b, s1c2b_w, s1c2b_b)
    neg_sa = self_attention(neg_ref[0], s2c1_w, s2c1_b, s2bn_s, s2bn_b,
                            s2c2w_w, s2c2w_b, s2c2b_w, s2c2b_b)

    # a*_wv are pre-scaled by beta / gamma in the wrapper, so this is x + beta*feat.
    feat1 = cross_attention(pos_sa, neg_sa, a1_A, a1_wv)
    feat2 = cross_attention(neg_sa, pos_sa, a2_A, a2_wv)

    pos_out_ref[...] = (pos_sa + feat1).reshape(1, HW, C)
    neg_out_ref[...] = (neg_sa + feat2).reshape(1, HW, C)


def _full_spec(shape):
    zeros = (0,) * len(shape)
    return pl.BlockSpec(shape, lambda b: zeros)


def feature_exchange_module(pos, neg, beta, gamma, params):
    """pos, neg: (B, C, H, W) float32 (NCHW, as in PyTorch). beta, gamma: scalars."""
    B, C, H, W = pos.shape
    HW = H * W
    C9 = 9 * C

    # NCHW -> NHWC, zero-pad, and unfold the 3x3 taps (im2col) in the wrapper so the first
    # conv of each SelfAttention is one K=9C matmul inside the kernel.
    def im2col(x_nchw):
        x = jnp.transpose(x_nchw, (0, 2, 3, 1))                               # (B, H, W, C)
        xp = jnp.pad(x, ((0, 0), (1, 1), (1, 1), (0, 0)))
        taps = [xp[:, dy:dy + H, dx:dx + W, :] for dy in range(3) for dx in range(3)]
        return jnp.concatenate(taps, axis=-1).reshape(B, HW, C9)

    pos_unf = im2col(pos)
    neg_unf = im2col(neg)

    def conv_w(w9):  # (9, Cin, Cout) -> (9*Cin, Cout), matching the im2col tap order.
        return w9.reshape(9 * w9.shape[1], w9.shape[2])

    # SelfAttention 1 / 2 weights (the 2C "weight" conv is split into w / b halves).
    s1c1_w, s1c1_b = conv_w(params["sa1_basic_w"]), params["sa1_basic_b"]
    s1c2 = conv_w(params["sa1_weight_w"])
    s1c2w_w, s1c2b_w = s1c2[:, :C], s1c2[:, C:]
    s1c2w_b, s1c2b_b = params["sa1_weight_b"][:, :C], params["sa1_weight_b"][:, C:]

    s2c1_w, s2c1_b = conv_w(params["sa2_basic_w"]), params["sa2_basic_b"]
    s2c2 = conv_w(params["sa2_weight_w"])
    s2c2w_w, s2c2b_w = s2c2[:, :C], s2c2[:, C:]
    s2c2w_b, s2c2b_b = params["sa2_weight_b"][:, :C], params["sa2_weight_b"][:, C:]

    # CrossAttention: collapse the Cq projections (A = Wq Wk^T) and fold beta/gamma into Wv.
    a1_A = params["att1_wq"] @ params["att1_wk"].T                            # (C, C)
    a2_A = params["att2_wq"] @ params["att2_wk"].T                            # (C, C)
    a1_wv = params["att1_wv"] * beta
    a2_wv = params["att2_wv"] * gamma

    kernel = functools.partial(_fem_kernel, H, W, C)

    in_specs = [
        pl.BlockSpec((1, HW, C9), lambda b: (b, 0, 0)),                       # pos (im2col)
        pl.BlockSpec((1, HW, C9), lambda b: (b, 0, 0)),                       # neg (im2col)
        # SelfAttention 1
        _full_spec((C9, C)), _full_spec((1, C)), _full_spec((1, C)), _full_spec((1, C)),
        _full_spec((C9, C)), _full_spec((1, C)), _full_spec((C9, C)), _full_spec((1, C)),
        # SelfAttention 2
        _full_spec((C9, C)), _full_spec((1, C)), _full_spec((1, C)), _full_spec((1, C)),
        _full_spec((C9, C)), _full_spec((1, C)), _full_spec((C9, C)), _full_spec((1, C)),
        # CrossAttention 1 / 2
        _full_spec((C, C)), _full_spec((C, C)), _full_spec((C, C)), _full_spec((C, C)),
    ]
    out_specs = [
        pl.BlockSpec((1, HW, C), lambda b: (b, 0, 0)),
        pl.BlockSpec((1, HW, C), lambda b: (b, 0, 0)),
    ]
    out_shape = [
        jax.ShapeDtypeStruct((B, HW, C), jnp.float32),
        jax.ShapeDtypeStruct((B, HW, C), jnp.float32),
    ]

    pos_o, neg_o = pl.pallas_call(
        kernel,
        out_shape=out_shape,
        grid_spec=pltpu.PrefetchScalarGridSpec(
            num_scalar_prefetch=0,
            grid=(B,),
            in_specs=in_specs,
            out_specs=out_specs,
            scratch_shapes=[pltpu.VMEM((H + 2, W + 2, C), jnp.float32)],
        ),
        compiler_params=pltpu.CompilerParams(dimension_semantics=("parallel",)),
    )(pos_unf, neg_unf,
      s1c1_w, s1c1_b, params["sa1_bn_scale"], params["sa1_bn_bias"],
      s1c2w_w, s1c2w_b, s1c2b_w, s1c2b_b,
      s2c1_w, s2c1_b, params["sa2_bn_scale"], params["sa2_bn_bias"],
      s2c2w_w, s2c2w_b, s2c2b_w, s2c2b_b,
      a1_A, a1_wv, a2_A, a2_wv)

    # (B, HW, C) -> NCHW.
    pos_out = jnp.transpose(pos_o.reshape(B, H, W, C), (0, 3, 1, 2))
    neg_out = jnp.transpose(neg_o.reshape(B, H, W, C), (0, 3, 1, 2))
    return pos_out, neg_out


def init_params(key, C, ratio=8):
    """Deterministic init mirroring initialize_weights (kaiming fan_in * 0.1, zero bias)."""
    Cq = C // ratio
    eps = 1e-5
    ks = jax.random.split(key, 10)

    def kaiming(k, shape, fan_in, scale=0.1):
        std = (2.0 / fan_in) ** 0.5 * scale
        return jax.random.normal(k, shape, dtype=jnp.float32) * std

    bn_scale = jnp.full((1, C), 1.0 / (1.0 + eps) ** 0.5, jnp.float32)  # gamma=1, var=1, mean=0
    return {
        # SelfAttention 1
        "sa1_basic_w": kaiming(ks[0], (9, C, C), 9 * C),
        "sa1_basic_b": jnp.zeros((1, C), jnp.float32),
        "sa1_bn_scale": bn_scale,
        "sa1_bn_bias": jnp.zeros((1, C), jnp.float32),
        "sa1_weight_w": kaiming(ks[1], (9, C, 2 * C), 9 * C),
        "sa1_weight_b": jnp.zeros((1, 2 * C), jnp.float32),
        # SelfAttention 2
        "sa2_basic_w": kaiming(ks[2], (9, C, C), 9 * C),
        "sa2_basic_b": jnp.zeros((1, C), jnp.float32),
        "sa2_bn_scale": bn_scale,
        "sa2_bn_bias": jnp.zeros((1, C), jnp.float32),
        "sa2_weight_w": kaiming(ks[3], (9, C, 2 * C), 9 * C),
        "sa2_weight_b": jnp.zeros((1, 2 * C), jnp.float32),
        # CrossAttention 1 / 2 (1x1 conv weights, stored as (Cin, Cout))
        "att1_wq": kaiming(ks[4], (C, Cq), C),
        "att1_wk": kaiming(ks[5], (C, Cq), C),
        "att1_wv": kaiming(ks[6], (C, C), C),
        "att2_wq": kaiming(ks[7], (C, Cq), C),
        "att2_wk": kaiming(ks[8], (C, Cq), C),
        "att2_wv": kaiming(ks[9], (C, C), C),
    }


def _reference(pos, neg, beta, gamma, params):
    """Pure-JAX (XLA) reference following the PyTorch forward semantics."""
    B, C, H, W = pos.shape

    def conv3x3(x_nhwc, w9, b):
        w = w9.reshape(3, 3, w9.shape[1], w9.shape[2])                        # HWIO
        y = jax.lax.conv_general_dilated(
            x_nhwc, w, (1, 1), "SAME", dimension_numbers=("NHWC", "HWIO", "NHWC"))
        return y + b.reshape(1, 1, 1, -1)

    def self_attention(x_nhwc, p):
        basic = conv3x3(x_nhwc, params[p + "_basic_w"], params[p + "_basic_b"])
        basic = basic * params[p + "_bn_scale"].reshape(1, 1, 1, -1) \
                + params[p + "_bn_bias"].reshape(1, 1, 1, -1)
        basic = jnp.maximum(basic, 0.0)
        weight = conv3x3(basic, params[p + "_weight_w"], params[p + "_weight_b"])
        w, b = weight[..., :C], weight[..., C:]
        return jnp.maximum(w * basic + b, 0.0)

    def cross_attention(x, y, wq, wk, wv):
        xf = x.reshape(B, H * W, C)
        yf = y.reshape(B, H * W, C)
        mask = jax.nn.softmax(jnp.einsum("bic,bjc->bij", yf @ wq, yf @ wk), axis=-1)
        return jnp.einsum("bij,bjc->bic", mask, xf @ wv).reshape(B, H, W, C)

    pos_n = jnp.transpose(pos, (0, 2, 3, 1))
    neg_n = jnp.transpose(neg, (0, 2, 3, 1))
    ps = self_attention(pos_n, "sa1")
    ns = self_attention(neg_n, "sa2")
    f1 = cross_attention(ps, ns, params["att1_wq"], params["att1_wk"], params["att1_wv"])
    f2 = cross_attention(ns, ps, params["att2_wq"], params["att2_wk"], params["att2_wv"])
    po = ps + beta * f1
    no = ns + gamma * f2
    return jnp.transpose(po, (0, 3, 1, 2)), jnp.transpose(no, (0, 3, 1, 2))


if __name__ == "__main__":
    key = jax.random.PRNGKey(0)
    B, C, H, W = 2, 32, 8, 8
    ratio = 8

    k_pos, k_neg, k_par = jax.random.split(key, 3)
    pos = jax.random.normal(k_pos, (B, C, H, W), dtype=jnp.float32)
    neg = jax.random.normal(k_neg, (B, C, H, W), dtype=jnp.float32)
    params = init_params(k_par, C, ratio)
    beta, gamma = 0.5, 0.25

    pos_out, neg_out = jax.jit(feature_exchange_module)(pos, neg, beta, gamma, params)
    jax.block_until_ready((pos_out, neg_out))

    assert pos_out.shape == (B, C, H, W) and neg_out.shape == (B, C, H, W)
    assert pos_out.dtype == jnp.float32 and neg_out.dtype == jnp.float32
    assert bool(jnp.all(jnp.isfinite(pos_out))) and bool(jnp.all(jnp.isfinite(neg_out)))

    ref_pos, ref_neg = _reference(pos, neg, beta, gamma, params)
    assert bool(jnp.allclose(pos_out, ref_pos, atol=1e-3, rtol=1e-2))
    assert bool(jnp.allclose(neg_out, ref_neg, atol=1e-3, rtol=1e-2))

    print("KERNEL_OK")
</pallas_src>

<mosaic_0001>
module attributes {stable_mosaic.version = 11 : i64} {
  func.func @_fem_kernel(%arg0: i32, %arg1: memref<1x64x288xf32, #tpu.memory_space<vmem>>, %arg2: memref<1x64x288xf32, #tpu.memory_space<vmem>>, %arg3: memref<288x32xf32, #tpu.memory_space<vmem>>, %arg4: memref<1x32xf32, #tpu.memory_space<vmem>>, %arg5: memref<1x32xf32, #tpu.memory_space<vmem>>, %arg6: memref<1x32xf32, #tpu.memory_space<vmem>>, %arg7: memref<288x32xf32, #tpu.memory_space<vmem>>, %arg8: memref<1x32xf32, #tpu.memory_space<vmem>>, %arg9: memref<288x32xf32, #tpu.memory_space<vmem>>, %arg10: memref<1x32xf32, #tpu.memory_space<vmem>>, %arg11: memref<288x32xf32, #tpu.memory_space<vmem>>, %arg12: memref<1x32xf32, #tpu.memory_space<vmem>>, %arg13: memref<1x32xf32, #tpu.memory_space<vmem>>, %arg14: memref<1x32xf32, #tpu.memory_space<vmem>>, %arg15: memref<288x32xf32, #tpu.memory_space<vmem>>, %arg16: memref<1x32xf32, #tpu.memory_space<vmem>>, %arg17: memref<288x32xf32, #tpu.memory_space<vmem>>, %arg18: memref<1x32xf32, #tpu.memory_space<vmem>>, %arg19: memref<32x32xf32, #tpu.memory_space<vmem>>, %arg20: memref<32x32xf32, #tpu.memory_space<vmem>>, %arg21: memref<32x32xf32, #tpu.memory_space<vmem>>, %arg22: memref<32x32xf32, #tpu.memory_space<vmem>>, %arg23: memref<1x64x32xf32, #tpu.memory_space<vmem>>, %arg24: memref<1x64x32xf32, #tpu.memory_space<vmem>>, %arg25: memref<10x10x32xf32, #tpu.memory_space<vmem>>) attributes {dimension_semantics = [#tpu.dimension_semantics<parallel>], iteration_bounds = array<i64: 2>, scalar_prefetch = 0 : i64, scratch_operands = 1 : i64, tpu.core_type = #tpu.core_type<tc>, window_params = [{transform_indices = @transform_0, window_bounds = array<i64: 1, 64, 288>}, {transform_indices = @transform_1, window_bounds = array<i64: 1, 64, 288>}, {pipeline_mode = #tpu.pipeline_mode<synchronous>, transform_indices = @transform_2, window_bounds = array<i64: 288, 32>}, {pipeline_mode = #tpu.pipeline_mode<synchronous>, transform_indices = @transform_3, window_bounds = array<i64: 1, 32>}, {pipeline_mode = #tpu.pipeline_mode<synchronous>, transform_indices = @transform_4, window_bounds = array<i64: 1, 32>}, {pipeline_mode = #tpu.pipeline_mode<synchronous>, transform_indices = @transform_5, window_bounds = array<i64: 1, 32>}, {pipeline_mode = #tpu.pipeline_mode<synchronous>, transform_indices = @transform_6, window_bounds = array<i64: 288, 32>}, {pipeline_mode = #tpu.pipeline_mode<synchronous>, transform_indices = @transform_7, window_bounds = array<i64: 1, 32>}, {pipeline_mode = #tpu.pipeline_mode<synchronous>, transform_indices = @transform_8, window_bounds = array<i64: 288, 32>}, {pipeline_mode = #tpu.pipeline_mode<synchronous>, transform_indices = @transform_9, window_bounds = array<i64: 1, 32>}, {pipeline_mode = #tpu.pipeline_mode<synchronous>, transform_indices = @transform_10, window_bounds = array<i64: 288, 32>}, {pipeline_mode = #tpu.pipeline_mode<synchronous>, transform_indices = @transform_11, window_bounds = array<i64: 1, 32>}, {pipeline_mode = #tpu.pipeline_mode<synchronous>, transform_indices = @transform_12, window_bounds = array<i64: 1, 32>}, {pipeline_mode = #tpu.pipeline_mode<synchronous>, transform_indices = @transform_13, window_bounds = array<i64: 1, 32>}, {pipeline_mode = #tpu.pipeline_mode<synchronous>, transform_indices = @transform_14, window_bounds = array<i64: 288, 32>}, {pipeline_mode = #tpu.pipeline_mode<synchronous>, transform_indices = @transform_15, window_bounds = array<i64: 1, 32>}, {pipeline_mode = #tpu.pipeline_mode<synchronous>, transform_indices = @transform_16, window_bounds = array<i64: 288, 32>}, {pipeline_mode = #tpu.pipeline_mode<synchronous>, transform_indices = @transform_17, window_bounds = array<i64: 1, 32>}, {pipeline_mode = #tpu.pipeline_mode<synchronous>, transform_indices = @transform_18, window_bounds = array<i64: 32, 32>}, {pipeline_mode = #tpu.pipeline_mode<synchronous>, transform_indices = @transform_19, window_bounds = array<i64: 32, 32>}, {pipeline_mode = #tpu.pipeline_mode<synchronous>, transform_indices = @transform_20, window_bounds = array<i64: 32, 32>}, {pipeline_mode = #tpu.pipeline_mode<synchronous>, transform_indices = @transform_21, window_bounds = array<i64: 32, 32>}, {transform_indices = @transform_22, window_bounds = array<i64: 1, 64, 32>}, {transform_indices = @transform_23, window_bounds = array<i64: 1, 64, 32>}]} {
    %cst = arith.constant 0.000000e+00 : f32
    %0 = vector.broadcast %cst : f32 to vector<10x10x32xf32>
    %c0 = arith.constant 0 : index
    %c0_0 = arith.constant 0 : index
    %c0_1 = arith.constant 0 : index
    %1 = vector.load %arg25[%c0, %c0_0, %c0_1] : memref<10x10x32xf32, #tpu.memory_space<vmem>>, vector<10x10x32xf32>
    tpu.vector_store %arg25[%c0, %c0_0, %c0_1], %0 {strides = array<i32>} : memref<10x10x32xf32, #tpu.memory_space<vmem>>, vector<10x10x32xf32>,
    %c0_2 = arith.constant 0 : index
    %c0_3 = arith.constant 0 : index
    %c0_4 = arith.constant 0 : index
    %2 = vector.load %arg1[%c0_2, %c0_3, %c0_4] : memref<1x64x288xf32, #tpu.memory_space<vmem>>, vector<1x64x288xf32>
    %3 = vector.shape_cast %2 : vector<1x64x288xf32> to vector<64x288xf32>
    %c0_5 = arith.constant 0 : index
    %c0_6 = arith.constant 0 : index
    %4 = vector.load %arg3[%c0_5, %c0_6] : memref<288x32xf32, #tpu.memory_space<vmem>>, vector<288x32xf32>
    %cst_7 = arith.constant dense<0.000000e+00> : vector<64x32xf32>
    %5 = tpu.matmul %3, %4, %cst_7 {dimension_numbers = #tpu.dot_dimension_numbers<[1], [0], [0], [1], [0, 0, 1, 1], [], []>} : vector<64x288xf32>, vector<288x32xf32>, vector<64x32xf32> -> vector<64x32xf32>
    %c0_8 = arith.constant 0 : index
    %c0_9 = arith.constant 0 : index
    %6 = vector.load %arg4[%c0_8, %c0_9] : memref<1x32xf32, #tpu.memory_space<vmem>>, vector<1x32xf32>
    %7 = vector.broadcast %6 : vector<1x32xf32> to vector<64x32xf32>
    %8 = arith.addf %5, %7 : vector<64x32xf32>
    %c0_10 = arith.constant 0 : index
    %c0_11 = arith.constant 0 : index
    %9 = vector.load %arg5[%c0_10, %c0_11] : memref<1x32xf32, #tpu.memory_space<vmem>>, vector<1x32xf32>
    %10 = vector.broadcast %9 : vector<1x32xf32> to vector<64x32xf32>
    %11 = arith.mulf %8, %10 : vector<64x32xf32>
    %c0_12 = arith.constant 0 : index
    %c0_13 = arith.constant 0 : index
    %12 = vector.load %arg6[%c0_12, %c0_13] : memref<1x32xf32, #tpu.memory_space<vmem>>, vector<1x32xf32>
    %13 = vector.broadcast %12 : vector<1x32xf32> to vector<64x32xf32>
    %14 = arith.addf %11, %13 : vector<64x32xf32>
    %cst_14 = arith.constant 0.000000e+00 : f32
    %15 = vector.broadcast %cst_14 : f32 to vector<64x32xf32>
    %16 = arith.maximumf %14, %15 : vector<64x32xf32>
    %17 = vector.shape_cast %16 : vector<64x32xf32> to vector<8x8x32xf32>
    %c1 = arith.constant 1 : index
    %c1_15 = arith.constant 1 : index
    %c0_16 = arith.constant 0 : index
    %18 = vector.load %arg25[%c1, %c1_15, %c0_16] : memref<10x10x32xf32, #tpu.memory_space<vmem>>, vector<8x8x32xf32>
    tpu.vector_store %arg25[%c1, %c1_15, %c0_16], %17 {strides = array<i32>} : memref<10x10x32xf32, #tpu.memory_space<vmem>>, vector<8x8x32xf32>,
    %c0_17 = arith.constant 0 : index
    %c0_18 = arith.constant 0 : index
    %c0_19 = arith.constant 0 : index
    %19 = vector.load %arg25[%c0_17, %c0_18, %c0_19] : memref<10x10x32xf32, #tpu.memory_space<vmem>>, vector<10x10x32xf32>
    %20 = vector.extract_strided_slice %19 {offsets = [0, 0, 0], sizes = [8, 8, 32], strides = [1, 1, 1]} : vector<10x10x32xf32> to vector<8x8x32xf32>
    %21 = vector.shape_cast %20 : vector<8x8x32xf32> to vector<64x32xf32>
    %22 = vector.extract_strided_slice %19 {offsets = [0, 1, 0], sizes = [8, 8, 32], strides = [1, 1, 1]} : vector<10x10x32xf32> to vector<8x8x32xf32>
    %23 = vector.shape_cast %22 : vector<8x8x32xf32> to vector<64x32xf32>
    %24 = vector.extract_strided_slice %19 {offsets = [0, 2, 0], sizes = [8, 8, 32], strides = [1, 1, 1]} : vector<10x10x32xf32> to vector<8x8x32xf32>
    %25 = vector.shape_cast %24 : vector<8x8x32xf32> to vector<64x32xf32>
    %26 = vector.extract_strided_slice %19 {offsets = [1, 0, 0], sizes = [8, 8, 32], strides = [1, 1, 1]} : vector<10x10x32xf32> to vector<8x8x32xf32>
    %27 = vector.shape_cast %26 : vector<8x8x32xf32> to vector<64x32xf32>
    %28 = vector.extract_strided_slice %19 {offsets = [1, 1, 0], sizes = [8, 8, 32], strides = [1, 1, 1]} : vector<10x10x32xf32> to vector<8x8x32xf32>
    %29 = vector.shape_cast %28 : vector<8x8x32xf32> to vector<64x32xf32>
    %30 = vector.extract_strided_slice %19 {offsets = [1, 2, 0], sizes = [8, 8, 32], strides = [1, 1, 1]} : vector<10x10x32xf32> to vector<8x8x32xf32>
    %31 = vector.shape_cast %30 : vector<8x8x32xf32> to vector<64x32xf32>
    %32 = vector.extract_strided_slice %19 {offsets = [2, 0, 0], sizes = [8, 8, 32], strides = [1, 1, 1]} : vector<10x10x32xf32> to vector<8x8x32xf32>
    %33 = vector.shape_cast %32 : vector<8x8x32xf32> to vector<64x32xf32>
    %34 = vector.extract_strided_slice %19 {offsets = [2, 1, 0], sizes = [8, 8, 32], strides = [1, 1, 1]} : vector<10x10x32xf32> to vector<8x8x32xf32>
    %35 = vector.shape_cast %34 : vector<8x8x32xf32> to vector<64x32xf32>
    %36 = vector.extract_strided_slice %19 {offsets = [2, 2, 0], sizes = [8, 8, 32], strides = [1, 1, 1]} : vector<10x10x32xf32> to vector<8x8x32xf32>
    %37 = vector.shape_cast %36 : vector<8x8x32xf32> to vector<64x32xf32>
    %38 = tpu.concatenate %21, %23, %25, %27, %29, %31, %33, %35, %37 in 1 : vector<64x32xf32>, vector<64x32xf32>, vector<64x32xf32>, vector<64x32xf32>, vector<64x32xf32>, vector<64x32xf32>, vector<64x32xf32>, vector<64x32xf32>, vector<64x32xf32> -> vector<64x288xf32>
    %c0_20 = arith.constant 0 : index
    %c0_21 = arith.constant 0 : index
    %39 = vector.load %arg7[%c0_20, %c0_21] : memref<288x32xf32, #tpu.memory_space<vmem>>, vector<288x32xf32>
    %cst_22 = arith.constant dense<0.000000e+00> : vector<64x32xf32>
    %40 = tpu.matmul %38, %39, %cst_22 {dimension_numbers = #tpu.dot_dimension_numbers<[1], [0], [0], [1], [0, 0, 1, 1], [], []>} : vector<64x288xf32>, vector<288x32xf32>, vector<64x32xf32> -> vector<64x32xf32>
    %c0_23 = arith.constant 0 : index
    %c0_24 = arith.constant 0 : index
    %41 = vector.load %arg8[%c0_23, %c0_24] : memref<1x32xf32, #tpu.memory_space<vmem>>, vector<1x32xf32>
    %42 = vector.broadcast %41 : vector<1x32xf32> to vector<64x32xf32>
    %43 = arith.addf %40, %42 : vector<64x32xf32>
    %c0_25 = arith.constant 0 : index
    %c0_26 = arith.constant 0 : index
    %44 = vector.load %arg9[%c0_25, %c0_26] : memref<288x32xf32, #tpu.memory_space<vmem>>, vector<288x32xf32>
    %cst_27 = arith.constant dense<0.000000e+00> : vector<64x32xf32>
    %45 = tpu.matmul %38, %44, %cst_27 {dimension_numbers = #tpu.dot_dimension_numbers<[1], [0], [0], [1], [0, 0, 1, 1], [], []>} : vector<64x288xf32>, vector<288x32xf32>, vector<64x32xf32> -> vector<64x32xf32>
    %c0_28 = arith.constant 0 : index
    %c0_29 = arith.constant 0 : index
    %46 = vector.load %arg10[%c0_28, %c0_29] : memref<1x32xf32, #tpu.memory_space<vmem>>, vector<1x32xf32>
    %47 = vector.broadcast %46 : vector<1x32xf32> to vector<64x32xf32>
    %48 = arith.addf %45, %47 : vector<64x32xf32>
    %49 = arith.mulf %43, %16 : vector<64x32xf32>
    %50 = arith.addf %49, %48 : vector<64x32xf32>
    %cst_30 = arith.constant 0.000000e+00 : f32
    %51 = vector.broadcast %cst_30 : f32 to vector<64x32xf32>
    %52 = arith.maximumf %50, %51 : vector<64x32xf32>
    %c0_31 = arith.constant 0 : index
    %c0_32 = arith.constant 0 : index
    %c0_33 = arith.constant 0 : index
    %53 = vector.load %arg2[%c0_31, %c0_32, %c0_33] : memref<1x64x288xf32, #tpu.memory_space<vmem>>, vector<1x64x288xf32>
    %54 = vector.shape_cast %53 : vector<1x64x288xf32> to vector<64x288xf32>
    %c0_34 = arith.constant 0 : index
    %c0_35 = arith.constant 0 : index
    %55 = vector.load %arg11[%c0_34, %c0_35] : memref<288x32xf32, #tpu.memory_space<vmem>>, vector<288x32xf32>
    %cst_36 = arith.constant dense<0.000000e+00> : vector<64x32xf32>
    %56 = tpu.matmul %54, %55, %cst_36 {dimension_numbers = #tpu.dot_dimension_numbers<[1], [0], [0], [1], [0, 0, 1, 1], [], []>} : vector<64x288xf32>, vector<288x32xf32>, vector<64x32xf32> -> vector<64x32xf32>
    %c0_37 = arith.constant 0 : index
    %c0_38 = arith.constant 0 : index
    %57 = vector.load %arg12[%c0_37, %c0_38] : memref<1x32xf32, #tpu.memory_space<vmem>>, vector<1x32xf32>
    %58 = vector.broadcast %57 : vector<1x32xf32> to vector<64x32xf32>
    %59 = arith.addf %56, %58 : vector<64x32xf32>
    %c0_39 = arith.constant 0 : index
    %c0_40 = arith.constant 0 : index
    %60 = vector.load %arg13[%c0_39, %c0_40] : memref<1x32xf32, #tpu.memory_space<vmem>>, vector<1x32xf32>
    %61 = vector.broadcast %60 : vector<1x32xf32> to vector<64x32xf32>
    %62 = arith.mulf %59, %61 : vector<64x32xf32>
    %c0_41 = arith.constant 0 : index
    %c0_42 = arith.constant 0 : index
    %63 = vector.load %arg14[%c0_41, %c0_42] : memref<1x32xf32, #tpu.memory_space<vmem>>, vector<1x32xf32>
    %64 = vector.broadcast %63 : vector<1x32xf32> to vector<64x32xf32>
    %65 = arith.addf %62, %64 : vector<64x32xf32>
    %cst_43 = arith.constant 0.000000e+00 : f32
    %66 = vector.broadcast %cst_43 : f32 to vector<64x32xf32>
    %67 = arith.maximumf %65, %66 : vector<64x32xf32>
    %68 = vector.shape_cast %67 : vector<64x32xf32> to vector<8x8x32xf32>
    %c1_44 = arith.constant 1 : index
    %c1_45 = arith.constant 1 : index
    %c0_46 = arith.constant 0 : index
    %69 = vector.load %arg25[%c1_44, %c1_45, %c0_46] : memref<10x10x32xf32, #tpu.memory_space<vmem>>, vector<8x8x32xf32>
    tpu.vector_store %arg25[%c1_44, %c1_45, %c0_46], %68 {strides = array<i32>} : memref<10x10x32xf32, #tpu.memory_space<vmem>>, vector<8x8x32xf32>,
    %c0_47 = arith.constant 0 : index
    %c0_48 = arith.constant 0 : index
    %c0_49 = arith.constant 0 : index
    %70 = vector.load %arg25[%c0_47, %c0_48, %c0_49] : memref<10x10x32xf32, #tpu.memory_space<vmem>>, vector<10x10x32xf32>
    %71 = vector.extract_strided_slice %70 {offsets = [0, 0, 0], sizes = [8, 8, 32], strides = [1, 1, 1]} : vector<10x10x32xf32> to vector<8x8x32xf32>
    %72 = vector.shape_cast %71 : vector<8x8x32xf32> to vector<64x32xf32>
    %73 = vector.extract_strided_slice %70 {offsets = [0, 1, 0], sizes = [8, 8, 32], strides = [1, 1, 1]} : vector<10x10x32xf32> to vector<8x8x32xf32>
    %74 = vector.shape_cast %73 : vector<8x8x32xf32> to vector<64x32xf32>
    %75 = vector.extract_strided_slice %70 {offsets = [0, 2, 0], sizes = [8, 8, 32], strides = [1, 1, 1]} : vector<10x10x32xf32> to vector<8x8x32xf32>
    %76 = vector.shape_cast %75 : vector<8x8x32xf32> to vector<64x32xf32>
    %77 = vector.extract_strided_slice %70 {offsets = [1, 0, 0], sizes = [8, 8, 32], strides = [1, 1, 1]} : vector<10x10x32xf32> to vector<8x8x32xf32>
    %78 = vector.shape_cast %77 : vector<8x8x32xf32> to vector<64x32xf32>
    %79 = vector.extract_strided_slice %70 {offsets = [1, 1, 0], sizes = [8, 8, 32], strides = [1, 1, 1]} : vector<10x10x32xf32> to vector<8x8x32xf32>
    %80 = vector.shape_cast %79 : vector<8x8x32xf32> to vector<64x32xf32>
    %81 = vector.extract_strided_slice %70 {offsets = [1, 2, 0], sizes = [8, 8, 32], strides = [1, 1, 1]} : vector<10x10x32xf32> to vector<8x8x32xf32>
    %82 = vector.shape_cast %81 : vector<8x8x32xf32> to vector<64x32xf32>
    %83 = vector.extract_strided_slice %70 {offsets = [2, 0, 0], sizes = [8, 8, 32], strides = [1, 1, 1]} : vector<10x10x32xf32> to vector<8x8x32xf32>
    %84 = vector.shape_cast %83 : vector<8x8x32xf32> to vector<64x32xf32>
    %85 = vector.extract_strided_slice %70 {offsets = [2, 1, 0], sizes = [8, 8, 32], strides = [1, 1, 1]} : vector<10x10x32xf32> to vector<8x8x32xf32>
    %86 = vector.shape_cast %85 : vector<8x8x32xf32> to vector<64x32xf32>
    %87 = vector.extract_strided_slice %70 {offsets = [2, 2, 0], sizes = [8, 8, 32], strides = [1, 1, 1]} : vector<10x10x32xf32> to vector<8x8x32xf32>
    %88 = vector.shape_cast %87 : vector<8x8x32xf32> to vector<64x32xf32>
    %89 = tpu.concatenate %72, %74, %76, %78, %80, %82, %84, %86, %88 in 1 : vector<64x32xf32>, vector<64x32xf32>, vector<64x32xf32>, vector<64x32xf32>, vector<64x32xf32>, vector<64x32xf32>, vector<64x32xf32>, vector<64x32xf32>, vector<64x32xf32> -> vector<64x288xf32>
    %c0_50 = arith.constant 0 : index
    %c0_51 = arith.constant 0 : index
    %90 = vector.load %arg15[%c0_50, %c0_51] : memref<288x32xf32, #tpu.memory_space<vmem>>, vector<288x32xf32>
    %cst_52 = arith.constant dense<0.000000e+00> : vector<64x32xf32>
    %91 = tpu.matmul %89, %90, %cst_52 {dimension_numbers = #tpu.dot_dimension_numbers<[1], [0], [0], [1], [0, 0, 1, 1], [], []>} : vector<64x288xf32>, vector<288x32xf32>, vector<64x32xf32> -> vector<64x32xf32>
    %c0_53 = arith.constant 0 : index
    %c0_54 = arith.constant 0 : index
    %92 = vector.load %arg16[%c0_53, %c0_54] : memref<1x32xf32, #tpu.memory_space<vmem>>, vector<1x32xf32>
    %93 = vector.broadcast %92 : vector<1x32xf32> to vector<64x32xf32>
    %94 = arith.addf %91, %93 : vector<64x32xf32>
    %c0_55 = arith.constant 0 : index
    %c0_56 = arith.constant 0 : index
    %95 = vector.load %arg17[%c0_55, %c0_56] : memref<288x32xf32, #tpu.memory_space<vmem>>, vector<288x32xf32>
    %cst_57 = arith.constant dense<0.000000e+00> : vector<64x32xf32>
    %96 = tpu.matmul %89, %95, %cst_57 {dimension_numbers = #tpu.dot_dimension_numbers<[1], [0], [0], [1], [0, 0, 1, 1], [], []>} : vector<64x288xf32>, vector<288x32xf32>, vector<64x32xf32> -> vector<64x32xf32>
    %c0_58 = arith.constant 0 : index
    %c0_59 = arith.constant 0 : index
    %97 = vector.load %arg18[%c0_58, %c0_59] : memref<1x32xf32, #tpu.memory_space<vmem>>, vector<1x32xf32>
    %98 = vector.broadcast %97 : vector<1x32xf32> to vector<64x32xf32>
    %99 = arith.addf %96, %98 : vector<64x32xf32>
    %100 = arith.mulf %94, %67 : vector<64x32xf32>
    %101 = arith.addf %100, %99 : vector<64x32xf32>
    %cst_60 = arith.constant 0.000000e+00 : f32
    %102 = vector.broadcast %cst_60 : f32 to vector<64x32xf32>
    %103 = arith.maximumf %101, %102 : vector<64x32xf32>
    %c0_61 = arith.constant 0 : index
    %c0_62 = arith.constant 0 : index
    %104 = vector.load %arg19[%c0_61, %c0_62] : memref<32x32xf32, #tpu.memory_space<vmem>>, vector<32x32xf32>
    %cst_63 = arith.constant dense<0.000000e+00> : vector<64x32xf32>
    %105 = tpu.matmul %103, %104, %cst_63 {dimension_numbers = #tpu.dot_dimension_numbers<[1], [0], [0], [1], [0, 0, 1, 1], [], []>} : vector<64x32xf32>, vector<32x32xf32>, vector<64x32xf32> -> vector<64x32xf32>
    %cst_64 = arith.constant dense<0.000000e+00> : vector<64x64xf32>
    %106 = tpu.matmul %105, %103, %cst_64 {dimension_numbers = #tpu.dot_dimension_numbers<[1], [1], [0], [0], [0, 0, 1, 0], [], []>} : vector<64x32xf32>, vector<64x32xf32>, vector<64x64xf32> -> vector<64x64xf32>
    %cst_65 = arith.constant dense<0xFF800000> : vector<64xf32>
    %107 = vector.multi_reduction <maximumf>, %106, %cst_65 [1] : vector<64x64xf32> to vector<64xf32>
    %108 = vector.shape_cast %107 : vector<64xf32> to vector<64x1xf32>
    %109 = vector.broadcast %108 : vector<64x1xf32> to vector<64x64xf32>
    %110 = arith.subf %106, %109 : vector<64x64xf32>
    %111 = math.exp %110 : vector<64x64xf32>
    %cst_66 = arith.constant dense<0.000000e+00> : vector<64xf32>
    %112 = vector.multi_reduction <add>, %111, %cst_66 [1] : vector<64x64xf32> to vector<64xf32>
    %113 = vector.shape_cast %112 : vector<64xf32> to vector<64x1xf32>
    %114 = tpu.reciprocal %113 {approx = true} : vector<64x1xf32> -> vector<64x1xf32>
    %115 = vector.broadcast %114 : vector<64x1xf32> to vector<64x64xf32>
    %116 = arith.mulf %111, %115 : vector<64x64xf32>
    %c0_67 = arith.constant 0 : index
    %c0_68 = arith.constant 0 : index
    %117 = vector.load %arg20[%c0_67, %c0_68] : memref<32x32xf32, #tpu.memory_space<vmem>>, vector<32x32xf32>
    %cst_69 = arith.constant dense<0.000000e+00> : vector<64x32xf32>
    %118 = tpu.matmul %52, %117, %cst_69 {dimension_numbers = #tpu.dot_dimension_numbers<[1], [0], [0], [1], [0, 0, 1, 1], [], []>} : vector<64x32xf32>, vector<32x32xf32>, vector<64x32xf32> -> vector<64x32xf32>
    %cst_70 = arith.constant dense<0.000000e+00> : vector<64x32xf32>
    %119 = tpu.matmul %116, %118, %cst_70 {dimension_numbers = #tpu.dot_dimension_numbers<[1], [0], [0], [1], [0, 0, 1, 1], [], []>} : vector<64x64xf32>, vector<64x32xf32>, vector<64x32xf32> -> vector<64x32xf32>
    %c0_71 = arith.constant 0 : index
    %c0_72 = arith.constant 0 : index
    %120 = vector.load %arg21[%c0_71, %c0_72] : memref<32x32xf32, #tpu.memory_space<vmem>>, vector<32x32xf32>
    %cst_73 = arith.constant dense<0.000000e+00> : vector<64x32xf32>
    %121 = tpu.matmul %52, %120, %cst_73 {dimension_numbers = #tpu.dot_dimension_numbers<[1], [0], [0], [1], [0, 0, 1, 1], [], []>} : vector<64x32xf32>, vector<32x32xf32>, vector<64x32xf32> -> vector<64x32xf32>
    %cst_74 = arith.constant dense<0.000000e+00> : vector<64x64xf32>
    %122 = tpu.matmul %121, %52, %cst_74 {dimension_numbers = #tpu.dot_dimension_numbers<[1], [1], [0], [0], [0, 0, 1, 0], [], []>} : vector<64x32xf32>, vector<64x32xf32>, vector<64x64xf32> -> vector<64x64xf32>
    %cst_75 = arith.constant dense<0xFF800000> : vector<64xf32>
    %123 = vector.multi_reduction <maximumf>, %122, %cst_75 [1] : vector<64x64xf32> to vector<64xf32>
    %124 = vector.shape_cast %123 : vector<64xf32> to vector<64x1xf32>
    %125 = vector.broadcast %124 : vector<64x1xf32> to vector<64x64xf32>
    %126 = arith.subf %122, %125 : vector<64x64xf32>
    %127 = math.exp %126 : vector<64x64xf32>
    %cst_76 = arith.constant dense<0.000000e+00> : vector<64xf32>
    %128 = vector.multi_reduction <add>, %127, %cst_76 [1] : vector<64x64xf32> to vector<64xf32>
    %129 = vector.shape_cast %128 : vector<64xf32> to vector<64x1xf32>
    %130 = tpu.reciprocal %129 {approx = true} : vector<64x1xf32> -> vector<64x1xf32>
    %131 = vector.broadcast %130 : vector<64x1xf32> to vector<64x64xf32>
    %132 = arith.mulf %127, %131 : vector<64x64xf32>
    %c0_77 = arith.constant 0 : index
    %c0_78 = arith.constant 0 : index
    %133 = vector.load %arg22[%c0_77, %c0_78] : memref<32x32xf32, #tpu.memory_space<vmem>>, vector<32x32xf32>
    %cst_79 = arith.constant dense<0.000000e+00> : vector<64x32xf32>
    %134 = tpu.matmul %103, %133, %cst_79 {dimension_numbers = #tpu.dot_dimension_numbers<[1], [0], [0], [1], [0, 0, 1, 1], [], []>} : vector<64x32xf32>, vector<32x32xf32>, vector<64x32xf32> -> vector<64x32xf32>
    %cst_80 = arith.constant dense<0.000000e+00> : vector<64x32xf32>
    %135 = tpu.matmul %132, %134, %cst_80 {dimension_numbers = #tpu.dot_dimension_numbers<[1], [0], [0], [1], [0, 0, 1, 1], [], []>} : vector<64x64xf32>, vector<64x32xf32>, vector<64x32xf32> -> vector<64x32xf32>
    %136 = arith.addf %52, %119 : vector<64x32xf32>
    %137 = vector.shape_cast %136 : vector<64x32xf32> to vector<1x64x32xf32>
    %c0_81 = arith.constant 0 : index
    %c0_82 = arith.constant 0 : index
    %c0_83 = arith.constant 0 : index
    %138 = vector.load %arg23[%c0_81, %c0_82, %c0_83] : memref<1x64x32xf32, #tpu.memory_space<vmem>>, vector<1x64x32xf32>
    tpu.vector_store %arg23[%c0_81, %c0_82, %c0_83], %137 {strides = array<i32>} : memref<1x64x32xf32, #tpu.memory_space<vmem>>, vector<1x64x32xf32>,
    %139 = arith.addf %103, %135 : vector<64x32xf32>
    %140 = vector.shape_cast %139 : vector<64x32xf32> to vector<1x64x32xf32>
    %c0_84 = arith.constant 0 : index
    %c0_85 = arith.constant 0 : index
    %c0_86 = arith.constant 0 : index
    %141 = vector.load %arg24[%c0_84, %c0_85, %c0_86] : memref<1x64x32xf32, #tpu.memory_space<vmem>>, vector<1x64x32xf32>
    tpu.vector_store %arg24[%c0_84, %c0_85, %c0_86], %140 {strides = array<i32>} : memref<1x64x32xf32, #tpu.memory_space<vmem>>, vector<1x64x32xf32>,
    return
  }
  func.func @transform_0(%arg0: i32) -> (i32, i32, i32) {
    %c0_i32 = arith.constant 0 : i32
    %c0_i32_0 = arith.constant 0 : i32
    %c0_i32_1 = arith.constant 0 : i32
    return %arg0, %c0_i32, %c0_i32_0 : i32, i32, i32
  }
  func.func @transform_1(%arg0: i32) -> (i32, i32, i32) {
    %c0_i32 = arith.constant 0 : i32
    %c0_i32_0 = arith.constant 0 : i32
    %c0_i32_1 = arith.constant 0 : i32
    return %arg0, %c0_i32, %c0_i32_0 : i32, i32, i32
  }
  func.func @transform_2(%arg0: i32) -> (i32, i32) {
    %c0_i32 = arith.constant 0 : i32
    %c0_i32_0 = arith.constant 0 : i32
    %c0_i32_1 = arith.constant 0 : i32
    return %c0_i32, %c0_i32_0 : i32, i32
  }
  func.func @transform_3(%arg0: i32) -> (i32, i32) {
    %c0_i32 = arith.constant 0 : i32
    %c0_i32_0 = arith.constant 0 : i32
    %c0_i32_1 = arith.constant 0 : i32
    return %c0_i32, %c0_i32_0 : i32, i32
  }
  func.func @transform_4(%arg0: i32) -> (i32, i32) {
    %c0_i32 = arith.constant 0 : i32
    %c0_i32_0 = arith.constant 0 : i32
    %c0_i32_1 = arith.constant 0 : i32
    return %c0_i32, %c0_i32_0 : i32, i32
  }
  func.func @transform_5(%arg0: i32) -> (i32, i32) {
    %c0_i32 = arith.constant 0 : i32
    %c0_i32_0 = arith.constant 0 : i32
    %c0_i32_1 = arith.constant 0 : i32
    return %c0_i32, %c0_i32_0 : i32, i32
  }
  func.func @transform_6(%arg0: i32) -> (i32, i32) {
    %c0_i32 = arith.constant 0 : i32
    %c0_i32_0 = arith.constant 0 : i32
    %c0_i32_1 = arith.constant 0 : i32
    return %c0_i32, %c0_i32_0 : i32, i32
  }
  func.func @transform_7(%arg0: i32) -> (i32, i32) {
    %c0_i32 = arith.constant 0 : i32
    %c0_i32_0 = arith.constant 0 : i32
    %c0_i32_1 = arith.constant 0 : i32
    return %c0_i32, %c0_i32_0 : i32, i32
  }
  func.func @transform_8(%arg0: i32) -> (i32, i32) {
    %c0_i32 = arith.constant 0 : i32
    %c0_i32_0 = arith.constant 0 : i32
    %c0_i32_1 = arith.constant 0 : i32
    return %c0_i32, %c0_i32_0 : i32, i32
  }
  func.func @transform_9(%arg0: i32) -> (i32, i32) {
    %c0_i32 = arith.constant 0 : i32
    %c0_i32_0 = arith.constant 0 : i32
    %c0_i32_1 = arith.constant 0 : i32
    return %c0_i32, %c0_i32_0 : i32, i32
  }
  func.func @transform_10(%arg0: i32) -> (i32, i32) {
    %c0_i32 = arith.constant 0 : i32
    %c0_i32_0 = arith.constant 0 : i32
    %c0_i32_1 = arith.constant 0 : i32
    return %c0_i32, %c0_i32_0 : i32, i32
  }
  func.func @transform_11(%arg0: i32) -> (i32, i32) {
    %c0_i32 = arith.constant 0 : i32
    %c0_i32_0 = arith.constant 0 : i32
    %c0_i32_1 = arith.constant 0 : i32
    return %c0_i32, %c0_i32_0 : i32, i32
  }
  func.func @transform_12(%arg0: i32) -> (i32, i32) {
    %c0_i32 = arith.constant 0 : i32
    %c0_i32_0 = arith.constant 0 : i32
    %c0_i32_1 = arith.constant 0 : i32
    return %c0_i32, %c0_i32_0 : i32, i32
  }
  func.func @transform_13(%arg0: i32) -> (i32, i32) {
    %c0_i32 = arith.constant 0 : i32
    %c0_i32_0 = arith.constant 0 : i32
    %c0_i32_1 = arith.constant 0 : i32
    return %c0_i32, %c0_i32_0 : i32, i32
  }
  func.func @transform_14(%arg0: i32) -> (i32, i32) {
    %c0_i32 = arith.constant 0 : i32
    %c0_i32_0 = arith.constant 0 : i32
    %c0_i32_1 = arith.constant 0 : i32
    return %c0_i32, %c0_i32_0 : i32, i32
  }
  func.func @transform_15(%arg0: i32) -> (i32, i32) {
    %c0_i32 = arith.constant 0 : i32
    %c0_i32_0 = arith.constant 0 : i32
    %c0_i32_1 = arith.constant 0 : i32
    return %c0_i32, %c0_i32_0 : i32, i32
  }
  func.func @transform_16(%arg0: i32) -> (i32, i32) {
    %c0_i32 = arith.constant 0 : i32
    %c0_i32_0 = arith.constant 0 : i32
    %c0_i32_1 = arith.constant 0 : i32
    return %c0_i32, %c0_i32_0 : i32, i32
  }
  func.func @transform_17(%arg0: i32) -> (i32, i32) {
    %c0_i32 = arith.constant 0 : i32
    %c0_i32_0 = arith.constant 0 : i32
    %c0_i32_1 = arith.constant 0 : i32
    return %c0_i32, %c0_i32_0 : i32, i32
  }
  func.func @transform_18(%arg0: i32) -> (i32, i32) {
    %c0_i32 = arith.constant 0 : i32
    %c0_i32_0 = arith.constant 0 : i32
    %c0_i32_1 = arith.constant 0 : i32
    return %c0_i32, %c0_i32_0 : i32, i32
  }
  func.func @transform_19(%arg0: i32) -> (i32, i32) {
    %c0_i32 = arith.constant 0 : i32
    %c0_i32_0 = arith.constant 0 : i32
    %c0_i32_1 = arith.constant 0 : i32
    return %c0_i32, %c0_i32_0 : i32, i32
  }
  func.func @transform_20(%arg0: i32) -> (i32, i32) {
    %c0_i32 = arith.constant 0 : i32
    %c0_i32_0 = arith.constant 0 : i32
    %c0_i32_1 = arith.constant 0 : i32
    return %c0_i32, %c0_i32_0 : i32, i32
  }
  func.func @transform_21(%arg0: i32) -> (i32, i32) {
    %c0_i32 = arith.constant 0 : i32
    %c0_i32_0 = arith.constant 0 : i32
    %c0_i32_1 = arith.constant 0 : i32
    return %c0_i32, %c0_i32_0 : i32, i32
  }
  func.func @transform_22(%arg0: i32) -> (i32, i32, i32) {
    %c0_i32 = arith.constant 0 : i32
    %c0_i32_0 = arith.constant 0 : i32
    %c0_i32_1 = arith.constant 0 : i32
    return %arg0, %c0_i32, %c0_i32_0 : i32, i32, i32
  }
  func.func @transform_23(%arg0: i32) -> (i32, i32, i32) {
    %c0_i32 = arith.constant 0 : i32
    %c0_i32_0 = arith.constant 0 : i32
    %c0_i32_1 = arith.constant 0 : i32
    return %arg0, %c0_i32, %c0_i32_0 : i32, i32, i32
  }
}

</mosaic_0001>

<llo_original>
// kernel: feature_exchange_module.1
$region0: #{feature_exchange_module.1}
  #allocation0 [shape = 'u32[]', space=smem, size = 0x4, offset = 0x4, fixed_abs, tag = 'smem constant byte address 0x4 - core index']
  #allocation1 [shape = 'u32[144,128]{1,0:T(1,128)}', space=vmem, size = 0x12000, scoped, tag = 'internal scratch']
  #allocation2 [shape = 'f32[10,10,32]{2,1,0:T(8,128)}', space=vmem, size = 0x14000, scoped, tag = 'scratch operand']
  %s0 = inlined_call_operand.vmem [shape: f32[2,64,288], index: 0, kind: input, shape index: {}]
  %s1 = inlined_call_operand.vmem [shape: f32[2,64,288], index: 1, kind: input, shape index: {}]
  %s2 = inlined_call_operand.vmem [shape: f32[288,32], index: 2, kind: input, shape index: {}]
  %s3 = inlined_call_operand.vmem [shape: f32[1,32], index: 3, kind: input, shape index: {}]
  %s4 = inlined_call_operand.vmem [shape: f32[1,32], index: 4, kind: input, shape index: {}]
  %s5 = inlined_call_operand.vmem [shape: f32[1,32], index: 5, kind: input, shape index: {}]
  %s6 = inlined_call_operand.vmem [shape: f32[288,32], index: 6, kind: input, shape index: {}]
  %s7 = inlined_call_operand.vmem [shape: f32[1,32], index: 7, kind: input, shape index: {}]
  %s8 = inlined_call_operand.vmem [shape: f32[288,32], index: 8, kind: input, shape index: {}]
  %s9 = inlined_call_operand.vmem [shape: f32[1,32], index: 9, kind: input, shape index: {}]
  %s10 = inlined_call_operand.vmem [shape: f32[288,32], index: 10, kind: input, shape index: {}]
  %s11 = inlined_call_operand.vmem [shape: f32[1,32], index: 11, kind: input, shape index: {}]
  %s12 = inlined_call_operand.vmem [shape: f32[1,32], index: 12, kind: input, shape index: {}]
  %s13 = inlined_call_operand.vmem [shape: f32[1,32], index: 13, kind: input, shape index: {}]
  %s14 = inlined_call_operand.vmem [shape: f32[288,32], index: 14, kind: input, shape index: {}]
  %s15 = inlined_call_operand.vmem [shape: f32[1,32], index: 15, kind: input, shape index: {}]
  %s16 = inlined_call_operand.vmem [shape: f32[288,32], index: 16, kind: input, shape index: {}]
  %s17 = inlined_call_operand.vmem [shape: f32[1,32], index: 17, kind: input, shape index: {}]
  %s18 = inlined_call_operand.vmem [shape: f32[32,32], index: 18, kind: input, shape index: {}]
  %s19 = inlined_call_operand.vmem [shape: f32[32,32], index: 19, kind: input, shape index: {}]
  %s20 = inlined_call_operand.vmem [shape: f32[32,32], index: 20, kind: input, shape index: {}]
  %s21 = inlined_call_operand.vmem [shape: f32[32,32], index: 21, kind: input, shape index: {}]
  %s22 = inlined_call_operand.hbm [shape: f32[2,64,32], index: 22, kind: output, shape index: {0}]
  %s23 = inlined_call_operand.hbm [shape: f32[2,64,32], index: 23, kind: output, shape index: {1}]
  %24 = xla_tuple %s22, %s23
  %s25 = sld [smem:[#allocation0]]
  $region129: #{feature_exchange_module.1} parent=0
    _
  %s27 = ssub.s32 1, %s25
  %s28 = scalar_select 0, %s27, %s25
  $region1: #{feature_exchange_module.1} parent=0
    #allocation3 [shape = 'u8[65536]{0}', space=vmem, size = 0x10000, scoped, tag = 'output window, operand 0']
    #allocation4 [shape = 's32[2]{0}', space=sflag, size = 0x8, scoped, tag = 'scoped memory for feature_exchange_module.1']
    #allocation5 [shape = 'u8[65536]{0}', space=vmem, size = 0x10000, scoped, tag = 'output window, operand 1']
    #allocation6 [shape = 's32[2]{0}', space=sflag, size = 0x8, scoped, tag = 'scoped memory for feature_exchange_module.1']
    %29 = vsyncpa [#allocation4], 0
    %s30 = scalar_lea.sflag [#allocation4], 1
    %31 = vsyncpa %s30, 0
    %32 = vsyncpa [#allocation6], 0
    %s33 = scalar_lea.sflag [#allocation6], 1
    %34 = vsyncpa %s33, 0
    loop: start=0, step=1, limit=4
    $region2: #{feature_exchange_module.1} parent=1 // loop_pre_header
      _
    $region3: #{feature_exchange_module.1} parent=1 // loop_header
      %s36 = sphi 0, %s40
      %p37 = scmp.ge.s32.totalorder %s36, 4
      %s46 = sphi 0, %s48
      %s49 = sphi 0, %s46
      %s50 = sphi 0, %s49
      %s66 = sphi 0, %s50
      %s72 = sphi 0, %s74
      %s75 = sphi 0, %s72
      %s76 = sphi 0, %s75
      %s92 = sphi 0, %s76
      %s96 = sphi 0, %s96
      %s98 = sphi 0, %s96
      %s99 = sphi 0, %s98
      %s113 = sphi 0, %s99
      %s117 = sphi 0, %s117
      %s119 = sphi 0, %s117
      %s120 = sphi 0, %s119
      %s134 = sphi 0, %s120
      %s138 = sphi 0, %s138
      %s140 = sphi 0, %s138
      %s141 = sphi 0, %s140
      %s155 = sphi 0, %s141
      %s159 = sphi 0, %s159
      %s161 = sphi 0, %s159
      %s162 = sphi 0, %s161
      %s176 = sphi 0, %s162
      %s180 = sphi 0, %s180
      %s182 = sphi 0, %s180
      %s183 = sphi 0, %s182
      %s197 = sphi 0, %s183
      %s201 = sphi 0, %s201
      %s203 = sphi 0, %s201
      %s204 = sphi 0, %s203
      %s218 = sphi 0, %s204
      %s222 = sphi 0, %s222
      %s224 = sphi 0, %s222
      %s225 = sphi 0, %s224
      %s239 = sphi 0, %s225
      %s243 = sphi 0, %s243
      %s245 = sphi 0, %s243
      %s246 = sphi 0, %s245
      %s260 = sphi 0, %s246
      %s264 = sphi 0, %s264
      %s266 = sphi 0, %s264
      %s267 = sphi 0, %s266
      %s281 = sphi 0, %s267
      %s285 = sphi 0, %s285
      %s287 = sphi 0, %s285
      %s288 = sphi 0, %s287
      %s302 = sphi 0, %s288
      %s306 = sphi 0, %s306
      %s308 = sphi 0, %s306
      %s309 = sphi 0, %s308
      %s323 = sphi 0, %s309
      %s327 = sphi 0, %s327
      %s329 = sphi 0, %s327
      %s330 = sphi 0, %s329
      %s344 = sphi 0, %s330
      %s348 = sphi 0, %s348
      %s350 = sphi 0, %s348
      %s351 = sphi 0, %s350
      %s365 = sphi 0, %s351
      %s369 = sphi 0, %s369
      %s371 = sphi 0, %s369
      %s372 = sphi 0, %s371
      %s386 = sphi 0, %s372
      %s390 = sphi 0, %s390
      %s392 = sphi 0, %s390
      %s393 = sphi 0, %s392
      %s407 = sphi 0, %s393
      %s411 = sphi 0, %s411
      %s413 = sphi 0, %s411
      %s414 = sphi 0, %s413
      %s428 = sphi 0, %s414
      %s432 = sphi 0, %s432
      %s434 = sphi 0, %s432
      %s435 = sphi 0, %s434
      %s449 = sphi 0, %s435
      %s453 = sphi 0, %s453
      %s455 = sphi 0, %s453
      %s456 = sphi 0, %s455
      %s470 = sphi 0, %s456
      %s474 = sphi 0, %s474
      %s476 = sphi 0, %s474
      %s477 = sphi 0, %s476
      %s491 = sphi 0, %s477
      %s495 = sphi 0, %s495
      %s497 = sphi 0, %s495
      %s498 = sphi 0, %s497
      %s512 = sphi 0, %s498
      %s518 = sphi 0, %s520
      %s521 = sphi 0, %s518
      %s522 = sphi 0, %s521
      %s538 = sphi 0, %s522
      %s544 = sphi 0, %s546
      %s547 = sphi 0, %s544
      %s548 = sphi 0, %s547
      %s564 = sphi 0, %s548
    $region4: #{feature_exchange_module.1} parent=1 // loop_header_branch
      %39 = sbr.rel (%p37) target = $region8
    $region5: #{feature_exchange_module.1} parent=1 // loop_body
      %s41 = ssub.s32 %s36, 1
      %s42 = ssub.s32 %s36, 2
      %s43 = sadd.s32 %s36, 1
      %s44 = ssub.s32 %s36, %s43
      %p45 = scmp.eq.s32.totalorder %s44, 0
      %s47 = sadd.s32 %s46, 1
      %s48 = scalar_select %p45, %s46, %s47
      %p51 = pneg %p45
      %p52 = scmp.eq.s32.totalorder %s36, 1
      %p53 = por %p51, %p52
      %p54 = scmp.ne.s32.totalorder %s46, %s49
      %p55 = scmp.eq.s32.totalorder %s36, 0
      %p56 = por %p54, %p55
      %p57 = scmp.ne.s32.totalorder %s46, %s49
      %p58 = scmp.eq.s32.totalorder %s41, 1
      %p59 = por %p57, %p58
      %p60 = scmp.ne.s32.totalorder %s49, %s50
      %p61 = scmp.eq.s32.totalorder %s41, 0
      %p62 = por %p60, %p61
      %p63 = scmp.ne.s32.totalorder %s49, %s50
      %p64 = scmp.eq.s32.totalorder %s42, 1
      %p65 = por %p63, %p64
      %p67 = scmp.ne.s32.totalorder %s50, %s66
      %p68 = scmp.eq.s32.totalorder %s42, 0
      %p69 = por %p67, %p68
      %s70 = ssub.s32 %s36, %s43
      %p71 = scmp.eq.s32.totalorder %s70, 0
      %s73 = sadd.s32 %s72, 1
      %s74 = scalar_select %p71, %s72, %s73
      %p77 = pneg %p71
      %p78 = scmp.eq.s32.totalorder %s36, 1
      %p79 = por %p77, %p78
      %p80 = scmp.ne.s32.totalorder %s72, %s75
      %p81 = scmp.eq.s32.totalorder %s36, 0
      %p82 = por %p80, %p81
      %p83 = scmp.ne.s32.totalorder %s72, %s75
      %p84 = scmp.eq.s32.totalorder %s41, 1
      %p85 = por %p83, %p84
      %p86 = scmp.ne.s32.totalorder %s75, %s76
      %p87 = scmp.eq.s32.totalorder %s41, 0
      %p88 = por %p86, %p87
      %p89 = scmp.ne.s32.totalorder %s75, %s76
      %p90 = scmp.eq.s32.totalorder %s42, 1
      %p91 = por %p89, %p90
      %p93 = scmp.ne.s32.totalorder %s76, %s92
      %p94 = scmp.eq.s32.totalorder %s42, 0
      %p95 = por %p93, %p94
      %s97 = sadd.s32 %s96, 1
      %p100 = scmp.eq.s32.totalorder %s36, 1
      %p101 = scmp.ne.s32.totalorder %s96, %s98
      %p102 = scmp.eq.s32.totalorder %s36, 0
      %p103 = por %p101, %p102
      %p104 = scmp.ne.s32.totalorder %s96, %s98
      %p105 = scmp.eq.s32.totalorder %s41, 1
      %p106 = por %p104, %p105
      %p107 = scmp.ne.s32.totalorder %s98, %s99
      %p108 = scmp.eq.s32.totalorder %s41, 0
      %p109 = por %p107, %p108
      %p110 = scmp.ne.s32.totalorder %s98, %s99
      %p111 = scmp.eq.s32.totalorder %s42, 1
      %p112 = por %p110, %p111
      %p114 = scmp.ne.s32.totalorder %s99, %s113
      %p115 = scmp.eq.s32.totalorder %s42, 0
      %p116 = por %p114, %p115
      %s118 = sadd.s32 %s117, 1
      %p121 = scmp.eq.s32.totalorder %s36, 1
      %p122 = scmp.ne.s32.totalorder %s117, %s119
      %p123 = scmp.eq.s32.totalorder %s36, 0
      %p124 = por %p122, %p123
      %p125 = scmp.ne.s32.totalorder %s117, %s119
      %p126 = scmp.eq.s32.totalorder %s41, 1
      %p127 = por %p125, %p126
      %p128 = scmp.ne.s32.totalorder %s119, %s120
      %p129 = scmp.eq.s32.totalorder %s41, 0
      %p130 = por %p128, %p129
      %p131 = scmp.ne.s32.totalorder %s119, %s120
      %p132 = scmp.eq.s32.totalorder %s42, 1
      %p133 = por %p131, %p132
      %p135 = scmp.ne.s32.totalorder %s120, %s134
      %p136 = scmp.eq.s32.totalorder %s42, 0
      %p137 = por %p135, %p136
      %s139 = sadd.s32 %s138, 1
      %p142 = scmp.eq.s32.totalorder %s36, 1
      %p143 = scmp.ne.s32.totalorder %s138, %s140
      %p144 = scmp.eq.s32.totalorder %s36, 0
      %p145 = por %p143, %p144
      %p146 = scmp.ne.s32.totalorder %s138, %s140
      %p147 = scmp.eq.s32.totalorder %s41, 1
      %p148 = por %p146, %p147
      %p149 = scmp.ne.s32.totalorder %s140, %s141
      %p150 = scmp.eq.s32.totalorder %s41, 0
      %p151 = por %p149, %p150
      %p152 = scmp.ne.s32.totalorder %s140, %s141
      %p153 = scmp.eq.s32.totalorder %s42, 1
      %p154 = por %p152, %p153
      %p156 = scmp.ne.s32.totalorder %s141, %s155
      %p157 = scmp.eq.s32.totalorder %s42, 0
      %p158 = por %p156, %p157
      %s160 = sadd.s32 %s159, 1
      %p163 = scmp.eq.s32.totalorder %s36, 1
      %p164 = scmp.ne.s32.totalorder %s159, %s161
      %p165 = scmp.eq.s32.totalorder %s36, 0
      %p166 = por %p164, %p165
      %p167 = scmp.ne.s32.totalorder %s159, %s161
      %p168 = scmp.eq.s32.totalorder %s41, 1
      %p169 = por %p167, %p168
      %p170 = scmp.ne.s32.totalorder %s161, %s162
      %p171 = scmp.eq.s32.totalorder %s41, 0
      %p172 = por %p170, %p171
      %p173 = scmp.ne.s32.totalorder %s161, %s162
      %p174 = scmp.eq.s32.totalorder %s42, 1
      %p175 = por %p173, %p174
      %p177 = scmp.ne.s32.totalorder %s162, %s176
      %p178 = scmp.eq.s32.totalorder %s42, 0
      %p179 = por %p177, %p178
      %s181 = sadd.s32 %s180, 1
      %p184 = scmp.eq.s32.totalorder %s36, 1
      %p185 = scmp.ne.s32.totalorder %s180, %s182
      %p186 = scmp.eq.s32.totalorder %s36, 0
      %p187 = por %p185, %p186
      %p188 = scmp.ne.s32.totalorder %s180, %s182
      %p189 = scmp.eq.s32.totalorder %s41, 1
      %p190 = por %p188, %p189
      %p191 = scmp.ne.s32.totalorder %s182, %s183
      %p192 = scmp.eq.s32.totalorder %s41, 0
      %p193 = por %p191, %p192
      %p194 = scmp.ne.s32.totalorder %s182, %s183
      %p195 = scmp.eq.s32.totalorder %s42, 1
      %p196 = por %p194, %p195
      %p198 = scmp.ne.s32.totalorder %s183, %s197
      %p199 = scmp.eq.s32.totalorder %s42, 0
      %p200 = por %p198, %p199
      %s202 = sadd.s32 %s201, 1
      %p205 = scmp.eq.s32.totalorder %s36, 1
      %p206 = scmp.ne.s32.totalorder %s201, %s203
      %p207 = scmp.eq.s32.totalorder %s36, 0
      %p208 = por %p206, %p207
      %p209 = scmp.ne.s32.totalorder %s201, %s203
      %p210 = scmp.eq.s32.totalorder %s41, 1
      %p211 = por %p209, %p210
      %p212 = scmp.ne.s32.totalorder %s203, %s204
      %p213 = scmp.eq.s32.totalorder %s41, 0
      %p214 = por %p212, %p213
      %p215 = scmp.ne.s32.totalorder %s203, %s204
      %p216 = scmp.eq.s32.totalorder %s42, 1
      %p217 = por %p215, %p216
      %p219 = scmp.ne.s32.totalorder %s204, %s218
      %p220 = scmp.eq.s32.totalorder %s42, 0
      %p221 = por %p219, %p220
      %s223 = sadd.s32 %s222, 1
      %p226 = scmp.eq.s32.totalorder %s36, 1
      %p227 = scmp.ne.s32.totalorder %s222, %s224
      %p228 = scmp.eq.s32.totalorder %s36, 0
      %p229 = por %p227, %p228
      %p230 = scmp.ne.s32.totalorder %s222, %s224
      %p231 = scmp.eq.s32.totalorder %s41, 1
      %p232 = por %p230, %p231
      %p233 = scmp.ne.s32.totalorder %s224, %s225
      %p234 = scmp.eq.s32.totalorder %s41, 0
      %p235 = por %p233, %p234
      %p236 = scmp.ne.s32.totalorder %s224, %s225
      %p237 = scmp.eq.s32.totalorder %s42, 1
      %p238 = por %p236, %p237
      %p240 = scmp.ne.s32.totalorder %s225, %s239
      %p241 = scmp.eq.s32.totalorder %s42, 0
      %p242 = por %p240, %p241
      %s244 = sadd.s32 %s243, 1
      %p247 = scmp.eq.s32.totalorder %s36, 1
      %p248 = scmp.ne.s32.totalorder %s243, %s245
      %p249 = scmp.eq.s32.totalorder %s36, 0
      %p250 = por %p248, %p249
      %p251 = scmp.ne.s32.totalorder %s243, %s245
      %p252 = scmp.eq.s32.totalorder %s41, 1
      %p253 = por %p251, %p252
      %p254 = scmp.ne.s32.totalorder %s245, %s246
      %p255 = scmp.eq.s32.totalorder %s41, 0
      %p256 = por %p254, %p255
      %p257 = scmp.ne.s32.totalorder %s245, %s246
      %p258 = scmp.eq.s32.totalorder %s42, 1
      %p259 = por %p257, %p258
      %p261 = scmp.ne.s32.totalorder %s246, %s260
      %p262 = scmp.eq.s32.totalorder %s42, 0
      %p263 = por %p261, %p262
      %s265 = sadd.s32 %s264, 1
      %p268 = scmp.eq.s32.totalorder %s36, 1
      %p269 = scmp.ne.s32.totalorder %s264, %s266
      %p270 = scmp.eq.s32.totalorder %s36, 0
      %p271 = por %p269, %p270
      %p272 = scmp.ne.s32.totalorder %s264, %s266
      %p273 = scmp.eq.s32.totalorder %s41, 1
      %p274 = por %p272, %p273
      %p275 = scmp.ne.s32.totalorder %s266, %s267
      %p276 = scmp.eq.s32.totalorder %s41, 0
      %p277 = por %p275, %p276
      %p278 = scmp.ne.s32.totalorder %s266, %s267
      %p279 = scmp.eq.s32.totalorder %s42, 1
      %p280 = por %p278, %p279
      %p282 = scmp.ne.s32.totalorder %s267, %s281
      %p283 = scmp.eq.s32.totalorder %s42, 0
      %p284 = por %p282, %p283
      %s286 = sadd.s32 %s285, 1
      %p289 = scmp.eq.s32.totalorder %s36, 1
      %p290 = scmp.ne.s32.totalorder %s285, %s287
      %p291 = scmp.eq.s32.totalorder %s36, 0
      %p292 = por %p290, %p291
      %p293 = scmp.ne.s32.totalorder %s285, %s287
      %p294 = scmp.eq.s32.totalorder %s41, 1
      %p295 = por %p293, %p294
      %p296 = scmp.ne.s32.totalorder %s287, %s288
      %p297 = scmp.eq.s32.totalorder %s41, 0
      %p298 = por %p296, %p297
      %p299 = scmp.ne.s32.totalorder %s287, %s288
      %p300 = scmp.eq.s32.totalorder %s42, 1
      %p301 = por %p299, %p300
      %p303 = scmp.ne.s32.totalorder %s288, %s302
      %p304 = scmp.eq.s32.totalorder %s42, 0
      %p305 = por %p303, %p304
      %s307 = sadd.s32 %s306, 1
      %p310 = scmp.eq.s32.totalorder %s36, 1
      %p311 = scmp.ne.s32.totalorder %s306, %s308
      %p312 = scmp.eq.s32.totalorder %s36, 0
      %p313 = por %p311, %p312
      %p314 = scmp.ne.s32.totalorder %s306, %s308
      %p315 = scmp.eq.s32.totalorder %s41, 1
      %p316 = por %p314, %p315
      %p317 = scmp.ne.s32.totalorder %s308, %s309
      %p318 = scmp.eq.s32.totalorder %s41, 0
      %p319 = por %p317, %p318
      %p320 = scmp.ne.s32.totalorder %s308, %s309
      %p321 = scmp.eq.s32.totalorder %s42, 1
      %p322 = por %p320, %p321
      %p324 = scmp.ne.s32.totalorder %s309, %s323
      %p325 = scmp.eq.s32.totalorder %s42, 0
      %p326 = por %p324, %p325
      %s328 = sadd.s32 %s327, 1
      %p331 = scmp.eq.s32.totalorder %s36, 1
      %p332 = scmp.ne.s32.totalorder %s327, %s329
      %p333 = scmp.eq.s32.totalorder %s36, 0
      %p334 = por %p332, %p333
      %p335 = scmp.ne.s32.totalorder %s327, %s329
      %p336 = scmp.eq.s32.totalorder %s41, 1
      %p337 = por %p335, %p336
      %p338 = scmp.ne.s32.totalorder %s329, %s330
      %p339 = scmp.eq.s32.totalorder %s41, 0
      %p340 = por %p338, %p339
      %p341 = scmp.ne.s32.totalorder %s329, %s330
      %p342 = scmp.eq.s32.totalorder %s42, 1
      %p343 = por %p341, %p342
      %p345 = scmp.ne.s32.totalorder %s330, %s344
      %p346 = scmp.eq.s32.totalorder %s42, 0
      %p347 = por %p345, %p346
      %s349 = sadd.s32 %s348, 1
      %p352 = scmp.eq.s32.totalorder %s36, 1
      %p353 = scmp.ne.s32.totalorder %s348, %s350
      %p354 = scmp.eq.s32.totalorder %s36, 0
      %p355 = por %p353, %p354
      %p356 = scmp.ne.s32.totalorder %s348, %s350
      %p357 = scmp.eq.s32.totalorder %s41, 1
      %p358 = por %p356, %p357
      %p359 = scmp.ne.s32.totalorder %s350, %s351
      %p360 = scmp.eq.s32.totalorder %s41, 0
      %p361 = por %p359, %p360
      %p362 = scmp.ne.s32.totalorder %s350, %s351
      %p363 = scmp.eq.s32.totalorder %s42, 1
      %p364 = por %p362, %p363
      %p366 = scmp.ne.s32.totalorder %s351, %s365
      %p367 = scmp.eq.s32.totalorder %s42, 0
      %p368 = por %p366, %p367
      %s370 = sadd.s32 %s369, 1
      %p373 = scmp.eq.s32.totalorder %s36, 1
      %p374 = scmp.ne.s32.totalorder %s369, %s371
      %p375 = scmp.eq.s32.totalorder %s36, 0
      %p376 = por %p374, %p375
      %p377 = scmp.ne.s32.totalorder %s369, %s371
      %p378 = scmp.eq.s32.totalorder %s41, 1
      %p379 = por %p377, %p378
      %p380 = scmp.ne.s32.totalorder %s371, %s372
      %p381 = scmp.eq.s32.totalorder %s41, 0
      %p382 = por %p380, %p381
      %p383 = scmp.ne.s32.totalorder %s371, %s372
      %p384 = scmp.eq.s32.totalorder %s42, 1
      %p385 = por %p383, %p384
      %p387 = scmp.ne.s32.totalorder %s372, %s386
      %p388 = scmp.eq.s32.totalorder %s42, 0
      %p389 = por %p387, %p388
      %s391 = sadd.s32 %s390, 1
      %p394 = scmp.eq.s32.totalorder %s36, 1
      %p395 = scmp.ne.s32.totalorder %s390, %s392
      %p396 = scmp.eq.s32.totalorder %s36, 0
      %p397 = por %p395, %p396
      %p398 = scmp.ne.s32.totalorder %s390, %s392
      %p399 = scmp.eq.s32.totalorder %s41, 1
      %p400 = por %p398, %p399
      %p401 = scmp.ne.s32.totalorder %s392, %s393
      %p402 = scmp.eq.s32.totalorder %s41, 0
      %p403 = por %p401, %p402
      %p404 = scmp.ne.s32.totalorder %s392, %s393
      %p405 = scmp.eq.s32.totalorder %s42, 1
      %p406 = por %p404, %p405
      %p408 = scmp.ne.s32.totalorder %s393, %s407
      %p409 = scmp.eq.s32.totalorder %s42, 0
      %p410 = por %p408, %p409
      %s412 = sadd.s32 %s411, 1
      %p415 = scmp.eq.s32.totalorder %s36, 1
      %p416 = scmp.ne.s32.totalorder %s411, %s413
      %p417 = scmp.eq.s32.totalorder %s36, 0
      %p418 = por %p416, %p417
      %p419 = scmp.ne.s32.totalorder %s411, %s413
      %p420 = scmp.eq.s32.totalorder %s41, 1
      %p421 = por %p419, %p420
      %p422 = scmp.ne.s32.totalorder %s413, %s414
      %p423 = scmp.eq.s32.totalorder %s41, 0
      %p424 = por %p422, %p423
      %p425 = scmp.ne.s32.totalorder %s413, %s414
      %p426 = scmp.eq.s32.totalorder %s42, 1
      %p427 = por %p425, %p426
      %p429 = scmp.ne.s32.totalorder %s414, %s428
      %p430 = scmp.eq.s32.totalorder %s42, 0
      %p431 = por %p429, %p430
      %s433 = sadd.s32 %s432, 1
      %p436 = scmp.eq.s32.totalorder %s36, 1
      %p437 = scmp.ne.s32.totalorder %s432, %s434
      %p438 = scmp.eq.s32.totalorder %s36, 0
      %p439 = por %p437, %p438
      %p440 = scmp.ne.s32.totalorder %s432, %s434
      %p441 = scmp.eq.s32.totalorder %s41, 1
      %p442 = por %p440, %p441
      %p443 = scmp.ne.s32.totalorder %s434, %s435
      %p444 = scmp.eq.s32.totalorder %s41, 0
      %p445 = por %p443, %p444
      %p446 = scmp.ne.s32.totalorder %s434, %s435
      %p447 = scmp.eq.s32.totalorder %s42, 1
      %p448 = por %p446, %p447
      %p450 = scmp.ne.s32.totalorder %s435, %s449
      %p451 = scmp.eq.s32.totalorder %s42, 0
      %p452 = por %p450, %p451
      %s454 = sadd.s32 %s453, 1
      %p457 = scmp.eq.s32.totalorder %s36, 1
      %p458 = scmp.ne.s32.totalorder %s453, %s455
      %p459 = scmp.eq.s32.totalorder %s36, 0
      %p460 = por %p458, %p459
      %p461 = scmp.ne.s32.totalorder %s453, %s455
      %p462 = scmp.eq.s32.totalorder %s41, 1
      %p463 = por %p461, %p462
      %p464 = scmp.ne.s32.totalorder %s455, %s456
      %p465 = scmp.eq.s32.totalorder %s41, 0
      %p466 = por %p464, %p465
      %p467 = scmp.ne.s32.totalorder %s455, %s456
      %p468 = scmp.eq.s32.totalorder %s42, 1
      %p469 = por %p467, %p468
      %p471 = scmp.ne.s32.totalorder %s456, %s470
      %p472 = scmp.eq.s32.totalorder %s42, 0
      %p473 = por %p471, %p472
      %s475 = sadd.s32 %s474, 1
      %p478 = scmp.eq.s32.totalorder %s36, 1
      %p479 = scmp.ne.s32.totalorder %s474, %s476
      %p480 = scmp.eq.s32.totalorder %s36, 0
      %p481 = por %p479, %p480
      %p482 = scmp.ne.s32.totalorder %s474, %s476
      %p483 = scmp.eq.s32.totalorder %s41, 1
      %p484 = por %p482, %p483
      %p485 = scmp.ne.s32.totalorder %s476, %s477
      %p486 = scmp.eq.s32.totalorder %s41, 0
      %p487 = por %p485, %p486
      %p488 = scmp.ne.s32.totalorder %s476, %s477
      %p489 = scmp.eq.s32.totalorder %s42, 1
      %p490 = por %p488, %p489
      %p492 = scmp.ne.s32.totalorder %s477, %s491
      %p493 = scmp.eq.s32.totalorder %s42, 0
      %p494 = por %p492, %p493
      %s496 = sadd.s32 %s495, 1
      %p499 = scmp.eq.s32.totalorder %s36, 1
      %p500 = scmp.ne.s32.totalorder %s495, %s497
      %p501 = scmp.eq.s32.totalorder %s36, 0
      %p502 = por %p500, %p501
      %p503 = scmp.ne.s32.totalorder %s495, %s497
      %p504 = scmp.eq.s32.totalorder %s41, 1
      %p505 = por %p503, %p504
      %p506 = scmp.ne.s32.totalorder %s497, %s498
      %p507 = scmp.eq.s32.totalorder %s41, 0
      %p508 = por %p506, %p507
      %p509 = scmp.ne.s32.totalorder %s497, %s498
      %p510 = scmp.eq.s32.totalorder %s42, 1
      %p511 = por %p509, %p510
      %p513 = scmp.ne.s32.totalorder %s498, %s512
      %p514 = scmp.eq.s32.totalorder %s42, 0
      %p515 = por %p513, %p514
      %s516 = ssub.s32 %s36, %s43
      %p517 = scmp.eq.s32.totalorder %s516, 0
      %s519 = sadd.s32 %s518, 1
      %s520 = scalar_select %p517, %s518, %s519
      %p523 = pneg %p517
      %p524 = scmp.eq.s32.totalorder %s36, 1
      %p525 = por %p523, %p524
      %p526 = scmp.ne.s32.totalorder %s518, %s521
      %p527 = scmp.eq.s32.totalorder %s36, 0
      %p528 = por %p526, %p527
      %p529 = scmp.ne.s32.totalorder %s518, %s521
      %p530 = scmp.eq.s32.totalorder %s41, 1
      %p531 = por %p529, %p530
      %p532 = scmp.ne.s32.totalorder %s521, %s522
      %p533 = scmp.eq.s32.totalorder %s41, 0
      %p534 = por %p532, %p533
      %p535 = scmp.ne.s32.totalorder %s521, %s522
      %p536 = scmp.eq.s32.totalorder %s42, 1
      %p537 = por %p535, %p536
      %p539 = scmp.ne.s32.totalorder %s522, %s538
      %p540 = scmp.eq.s32.totalorder %s42, 0
      %p541 = por %p539, %p540
      %s542 = ssub.s32 %s36, %s43
      %p543 = scmp.eq.s32.totalorder %s542, 0
      %s545 = sadd.s32 %s544, 1
      %s546 = scalar_select %p543, %s544, %s545
      %p549 = pneg %p543
      %p550 = scmp.eq.s32.totalorder %s36, 1
      %p551 = por %p549, %p550
      %p552 = scmp.ne.s32.totalorder %s544, %s547
      %p553 = scmp.eq.s32.totalorder %s36, 0
      %p554 = por %p552, %p553
      %p555 = scmp.ne.s32.totalorder %s544, %s547
      %p556 = scmp.eq.s32.totalorder %s41, 1
      %p557 = por %p555, %p556
      %p558 = scmp.ne.s32.totalorder %s547, %s548
      %p559 = scmp.eq.s32.totalorder %s41, 0
      %p560 = por %p558, %p559
      %p561 = scmp.ne.s32.totalorder %s547, %s548
      %p562 = scmp.eq.s32.totalorder %s42, 1
      %p563 = por %p561, %p562
      %p565 = scmp.ne.s32.totalorder %s548, %s564
      %p566 = scmp.eq.s32.totalorder %s42, 0
      %p567 = por %p565, %p566
      %p568 = scmp.le.s32.totalorder 1, %s36
      %p569 = scmp.lt.s32.totalorder %s36, 3
      %p570 = pnand %p568, %p569
      %p571 = pneg %p570
      // Predicated region
      $region9: #{feature_exchange_module.1} parent=5 // pred_check
        _
      $region10: #{feature_exchange_module.1} parent=5 // pred_check_branch
        %573 = sbr.rel (%p570) target = $region12
      $region11: #{feature_exchange_module.1} parent=5 // pred_region
        %s574 = ssub.s32 %s36, 1
        // Predicated region
        $region13: #{feature_exchange_module.1} parent=11 // pred_check
          %p575 = pneg %p109
        $region14: #{feature_exchange_module.1} parent=11 // pred_check_branch
          %577 = sbr.rel (%p575) target = $region16
        $region15: #{feature_exchange_module.1} parent=11 // pred_region
          _
        $region16: #{feature_exchange_module.1} parent=11 // pred_fallthru
          _
        // Predicated region
        $region17: #{feature_exchange_module.1} parent=11 // pred_check
          %p578 = pneg %p130
        $region18: #{feature_exchange_module.1} parent=11 // pred_check_branch
          %580 = sbr.rel (%p578) target = $region20
        $region19: #{feature_exchange_module.1} parent=11 // pred_region
          _
        $region20: #{feature_exchange_module.1} parent=11 // pred_fallthru
          _
        // Predicated region
        $region21: #{feature_exchange_module.1} parent=11 // pred_check
          %p581 = pneg %p151
        $region22: #{feature_exchange_module.1} parent=11 // pred_check_branch
          %583 = sbr.rel (%p581) target = $region24
        $region23: #{feature_exchange_module.1} parent=11 // pred_region
          _
        $region24: #{feature_exchange_module.1} parent=11 // pred_fallthru
          _
        // Predicated region
        $region25: #{feature_exchange_module.1} parent=11 // pred_check
          %p584 = pneg %p172
        $region26: #{feature_exchange_module.1} parent=11 // pred_check_branch
          %586 = sbr.rel (%p584) target = $region28
        $region27: #{feature_exchange_module.1} parent=11 // pred_region
          _
        $region28: #{feature_exchange_module.1} parent=11 // pred_fallthru
          _
        // Predicated region
        $region29: #{feature_exchange_module.1} parent=11 // pred_check
          %p587 = pneg %p193
        $region30: #{feature_exchange_module.1} parent=11 // pred_check_branch
          %589 = sbr.rel (%p587) target = $region32
        $region31: #{feature_exchange_module.1} parent=11 // pred_region
          _
        $region32: #{feature_exchange_module.1} parent=11 // pred_fallthru
          _
        // Predicated region
        $region33: #{feature_exchange_module.1} parent=11 // pred_check
          %p590 = pneg %p214
        $region34: #{feature_exchange_module.1} parent=11 // pred_check_branch
          %592 = sbr.rel (%p590) target = $region36
        $region35: #{feature_exchange_module.1} parent=11 // pred_region
          _
        $region36: #{feature_exchange_module.1} parent=11 // pred_fallthru
          _
        // Predicated region
        $region37: #{feature_exchange_module.1} parent=11 // pred_check
          %p593 = pneg %p235
        $region38: #{feature_exchange_module.1} parent=11 // pred_check_branch
          %595 = sbr.rel (%p593) target = $region40
        $region39: #{feature_exchange_module.1} parent=11 // pred_region
          _
        $region40: #{feature_exchange_module.1} parent=11 // pred_fallthru
          _
        // Predicated region
        $region41: #{feature_exchange_module.1} parent=11 // pred_check
          %p596 = pneg %p256
        $region42: #{feature_exchange_module.1} parent=11 // pred_check_branch
          %598 = sbr.rel (%p596) target = $region44
        $region43: #{feature_exchange_module.1} parent=11 // pred_region
          _
        $region44: #{feature_exchange_module.1} parent=11 // pred_fallthru
          _
        // Predicated region
        $region45: #{feature_exchange_module.1} parent=11 // pred_check
          %p599 = pneg %p277
        $region46: #{feature_exchange_module.1} parent=11 // pred_check_branch
          %601 = sbr.rel (%p599) target = $region48
        $region47: #{feature_exchange_module.1} parent=11 // pred_region
          _
        $region48: #{feature_exchange_module.1} parent=11 // pred_fallthru
          _
        // Predicated region
        $region49: #{feature_exchange_module.1} parent=11 // pred_check
          %p602 = pneg %p298
        $region50: #{feature_exchange_module.1} parent=11 // pred_check_branch
          %604 = sbr.rel (%p602) target = $region52
        $region51: #{feature_exchange_module.1} parent=11 // pred_region
          _
        $region52: #{feature_exchange_module.1} parent=11 // pred_fallthru
          _
        // Predicated region
        $region53: #{feature_exchange_module.1} parent=11 // pred_check
          %p605 = pneg %p319
        $region54: #{feature_exchange_module.1} parent=11 // pred_check_branch
          %607 = sbr.rel (%p605) target = $region56
        $region55: #{feature_exchange_module.1} parent=11 // pred_region
          _
        $region56: #{feature_exchange_module.1} parent=11 // pred_fallthru
          _
        // Predicated region
        $region57: #{feature_exchange_module.1} parent=11 // pred_check
          %p608 = pneg %p340
        $region58: #{feature_exchange_module.1} parent=11 // pred_check_branch
          %610 = sbr.rel (%p608) target = $region60
        $region59: #{feature_exchange_module.1} parent=11 // pred_region
          _
        $region60: #{feature_exchange_module.1} parent=11 // pred_fallthru
          _
        // Predicated region
        $region61: #{feature_exchange_module.1} parent=11 // pred_check
          %p611 = pneg %p361
        $region62: #{feature_exchange_module.1} parent=11 // pred_check_branch
          %613 = sbr.rel (%p611) target = $region64
        $region63: #{feature_exchange_module.1} parent=11 // pred_region
          _
        $region64: #{feature_exchange_module.1} parent=11 // pred_fallthru
          _
        // Predicated region
        $region65: #{feature_exchange_module.1} parent=11 // pred_check
          %p614 = pneg %p382
        $region66: #{feature_exchange_module.1} parent=11 // pred_check_branch
          %616 = sbr.rel (%p614) target = $region68
        $region67: #{feature_exchange_module.1} parent=11 // pred_region
          _
        $region68: #{feature_exchange_module.1} parent=11 // pred_fallthru
          _
        // Predicated region
        $region69: #{feature_exchange_module.1} parent=11 // pred_check
          %p617 = pneg %p403
        $region70: #{feature_exchange_module.1} parent=11 // pred_check_branch
          %619 = sbr.rel (%p617) target = $region72
        $region71: #{feature_exchange_module.1} parent=11 // pred_region
          _
        $region72: #{feature_exchange_module.1} parent=11 // pred_fallthru
          _
        // Predicated region
        $region73: #{feature_exchange_module.1} parent=11 // pred_check
          %p620 = pneg %p424
        $region74: #{feature_exchange_module.1} parent=11 // pred_check_branch
          %622 = sbr.rel (%p620) target = $region76
        $region75: #{feature_exchange_module.1} parent=11 // pred_region
          _
        $region76: #{feature_exchange_module.1} parent=11 // pred_fallthru
          _
        // Predicated region
        $region77: #{feature_exchange_module.1} parent=11 // pred_check
          %p623 = pneg %p445
        $region78: #{feature_exchange_module.1} parent=11 // pred_check_branch
          %625 = sbr.rel (%p623) target = $region80
        $region79: #{feature_exchange_module.1} parent=11 // pred_region
          _
        $region80: #{feature_exchange_module.1} parent=11 // pred_fallthru
          _
        // Predicated region
        $region81: #{feature_exchange_module.1} parent=11 // pred_check
          %p626 = pneg %p466
        $region82: #{feature_exchange_module.1} parent=11 // pred_check_branch
          %628 = sbr.rel (%p626) target = $region84
        $region83: #{feature_exchange_module.1} parent=11 // pred_region
          _
        $region84: #{feature_exchange_module.1} parent=11 // pred_fallthru
          _
        // Predicated region
        $region85: #{feature_exchange_module.1} parent=11 // pred_check
          %p629 = pneg %p487
        $region86: #{feature_exchange_module.1} parent=11 // pred_check_branch
          %631 = sbr.rel (%p629) target = $region88
        $region87: #{feature_exchange_module.1} parent=11 // pred_region
          _
        $region88: #{feature_exchange_module.1} parent=11 // pred_fallthru
          _
        // Predicated region
        $region89: #{feature_exchange_module.1} parent=11 // pred_check
          %p632 = pneg %p508
        $region90: #{feature_exchange_module.1} parent=11 // pred_check_branch
          %634 = sbr.rel (%p632) target = $region92
        $region91: #{feature_exchange_module.1} parent=11 // pred_region
          _
        $region92: #{feature_exchange_module.1} parent=11 // pred_fallthru
          _
      $region12: #{feature_exchange_module.1} parent=5 // pred_fallthru
        _
      %p635 = scmp.lt.s32.totalorder %s36, 2
      // Predicated region
      $region93: #{feature_exchange_module.1} parent=5 // pred_check
        %p636 = pneg %p635
      $region94: #{feature_exchange_module.1} parent=5 // pred_check_branch
        %638 = sbr.rel (%p636) target = $region96
      $region95: #{feature_exchange_module.1} parent=5 // pred_region
        // Predicated region
        $region97: #{feature_exchange_module.1} parent=95 // pred_check
          %p639 = pneg %p56
        $region98: #{feature_exchange_module.1} parent=95 // pred_check_branch
          %641 = sbr.rel (%p639) target = $region100
        $region99: #{feature_exchange_module.1} parent=95 // pred_region
          %p642 = scmp.lt.s32.totalorder %s36, 1
          %s643 = scalar_select %p642, %s36, 1
          %s644 = smul.addr %s643, 24
          %s645 = smul.addr %s644, 8
          %s646 = scalar_lea.vmem %s0, %s645
        $region100: #{feature_exchange_module.1} parent=95 // pred_fallthru
          _
        // Predicated region
        $region101: #{feature_exchange_module.1} parent=95 // pred_check
          %p647 = pneg %p82
        $region102: #{feature_exchange_module.1} parent=95 // pred_check_branch
          %649 = sbr.rel (%p647) target = $region104
        $region103: #{feature_exchange_module.1} parent=95 // pred_region
          %p650 = scmp.lt.s32.totalorder %s36, 1
          %s651 = scalar_select %p650, %s36, 1
          %s652 = smul.addr %s651, 24
          %s653 = smul.addr %s652, 8
          %s654 = scalar_lea.vmem %s1, %s653
        $region104: #{feature_exchange_module.1} parent=95 // pred_fallthru
          _
      $region96: #{feature_exchange_module.1} parent=5 // pred_fallthru
        _
      %p655 = scmp.le.s32.totalorder 1, %s36
      %p656 = scmp.lt.s32.totalorder %s36, 3
      %p657 = pnand %p655, %p656
      %p658 = pneg %p657
      // Predicated region
      $region105: #{feature_exchange_module.1} parent=5 // pred_check
        _
      $region106: #{feature_exchange_module.1} parent=5 // pred_check_branch
        %660 = sbr.rel (%p657) target = $region108
      $region107: #{feature_exchange_module.1} parent=5 // pred_region
        %s661 = ssub.s32 %s36, 1
        %p662 = scmp.lt.s32.totalorder %s41, 1
        %s663 = scalar_select %p662, %s41, 1
        %s664 = smul.addr %s663, 24
        %s665 = smul.addr %s664, 8
        %s666 = scalar_lea.vmem %s0, %s665
        %p667 = pneg %p62
        %p668 = pneg %p59
        %p669 = scmp.lt.s32.totalorder %s41, 1
        %s670 = scalar_select %p669, %s41, 1
        %s671 = smul.addr %s670, 24
        %s672 = smul.addr %s671, 8
        %s673 = scalar_lea.vmem %s1, %s672
        %p674 = pneg %p88
        %p675 = pneg %p85
        %p676 = pneg %p109
        %p677 = pneg %p106
        %p678 = pneg %p130
        %p679 = pneg %p127
        %p680 = pneg %p151
        %p681 = pneg %p148
        %p682 = pneg %p172
        %p683 = pneg %p169
        %p684 = pneg %p193
        %p685 = pneg %p190
        %p686 = pneg %p214
        %p687 = pneg %p211
        %p688 = pneg %p235
        %p689 = pneg %p232
        %p690 = pneg %p256
        %p691 = pneg %p253
        %p692 = pneg %p277
        %p693 = pneg %p274
        %p694 = pneg %p298
        %p695 = pneg %p295
        %p696 = pneg %p319
        %p697 = pneg %p316
        %p698 = pneg %p340
        %p699 = pneg %p337
        %p700 = pneg %p361
        %p701 = pneg %p358
        %p702 = pneg %p382
        %p703 = pneg %p379
        %p704 = pneg %p403
        %p705 = pneg %p400
        %p706 = pneg %p424
        %p707 = pneg %p421
        %p708 = pneg %p445
        %p709 = pneg %p442
        %p710 = pneg %p466
        %p711 = pneg %p463
        %p712 = pneg %p487
        %p713 = pneg %p484
        %p714 = pneg %p508
        %p715 = pneg %p505
        %p716 = pneg %p534
        %p717 = pneg %p531
        %s718 = sand.u32 %s521, 1
        %s719 = scalar_lea.sflag [#allocation4], %s718
        %s720 = sand.u32 %s521, 1
        %s721 = smul.addr %s720, 64
        %s722 = scalar_lea.vmem [#allocation3], %s721
        %p723 = pneg %p560
        %p724 = pneg %p557
        %s725 = sand.u32 %s547, 1
        %s726 = scalar_lea.sflag [#allocation6], %s725
        %s727 = sand.u32 %s547, 1
        %s728 = smul.addr %s727, 64
        %s729 = scalar_lea.vmem [#allocation5], %s728
        %p730 = scmp.lt.s32.totalorder %s41, 1
        %s731 = scalar_select %p730, %s41, 1
        %s732 = smul.addr %s731, 24
        %s733 = smul.addr %s732, 8
        %s734 = scalar_lea.vmem %s0, %s733
        %p735 = scmp.lt.s32.totalorder %s41, 1
        %s736 = scalar_select %p735, %s41, 1
        %s737 = smul.addr %s736, 24
        %s738 = smul.addr %s737, 8
        %s739 = scalar_lea.vmem %s1, %s738
        %vm740 = vcmask 261120
        %741 = vst.msk [vmem:[#allocation2] sm:$0xff] %vm740, 0.0
        %vm742 = vcmask 254976
        %743 = vst.msk [vmem:[#allocation2 + $0x8] sm:$0x3] %vm742, 0.0
        %744 = vst.msk [vmem:[#allocation2 + $0x10] sm:$0xff] %vm740, 0.0
        %745 = vst.msk [vmem:[#allocation2 + $0x18] sm:$0x3] %vm742, 0.0
        %746 = vst.msk [vmem:[#allocation2 + $0x20] sm:$0xff] %vm740, 0.0
        %747 = vst.msk [vmem:[#allocation2 + $0x28] sm:$0x3] %vm742, 0.0
        %748 = vst.msk [vmem:[#allocation2 + $0x30] sm:$0xff] %vm740, 0.0
        %749 = vst.msk [vmem:[#allocation2 + $0x38] sm:$0x3] %vm742, 0.0
        %750 = vst.msk [vmem:[#allocation2 + $0x40] sm:$0xff] %vm740, 0.0
        %751 = vst.msk [vmem:[#allocation2 + $0x48] sm:$0x3] %vm742, 0.0
        %752 = vst.msk [vmem:[#allocation2 + $0x50] sm:$0xff] %vm740, 0.0
        %753 = vst.msk [vmem:[#allocation2 + $0x58] sm:$0x3] %vm742, 0.0
        %754 = vst.msk [vmem:[#allocation2 + $0x60] sm:$0xff] %vm740, 0.0
        %755 = vst.msk [vmem:[#allocation2 + $0x68] sm:$0x3] %vm742, 0.0
        %756 = vst.msk [vmem:[#allocation2 + $0x70] sm:$0xff] %vm740, 0.0
        %757 = vst.msk [vmem:[#allocation2 + $0x78] sm:$0x3] %vm742, 0.0
        %758 = vst.msk [vmem:[#allocation2 + $0x80] sm:$0xff] %vm740, 0.0
        %759 = vst.msk [vmem:[#allocation2 + $0x88] sm:$0x3] %vm742, 0.0
        %760 = vst.msk [vmem:[#allocation2 + $0x90] sm:$0xff] %vm740, 0.0
        %761 = vst.msk [vmem:[#allocation2 + $0x98] sm:$0x3] %vm742, 0.0
        %v762 = vld [vmem:[%s734] sm:$0xff]
        %v763 = vld [vmem:[%s734 + $0x8] sm:$0xff]
        %v764 = vld [vmem:[%s734 + $0x10] sm:$0xff]
        %v765 = vld [vmem:[%s734 + $0x18] sm:$0xff]
        %v766 = vld [vmem:[%s734 + $0x20] sm:$0xff]
        %v767 = vld [vmem:[%s734 + $0x28] sm:$0xff]
        %v768 = vld [vmem:[%s734 + $0x30] sm:$0xff]
        %v769 = vld [vmem:[%s734 + $0x38] sm:$0xff]
        %v770 = vld [vmem:[%s734 + $0x40] sm:$0xff]
        %v771 = vld [vmem:[%s734 + $0x48] sm:$0xff]
        %v772 = vld [vmem:[%s734 + $0x50] sm:$0xff]
        %v773 = vld [vmem:[%s734 + $0x58] sm:$0xff]
        %v774 = vld [vmem:[%s734 + $0x60] sm:$0xff]
        %v775 = vld [vmem:[%s734 + $0x68] sm:$0xff]
        %v776 = vld [vmem:[%s734 + $0x70] sm:$0xff]
        %v777 = vld [vmem:[%s734 + $0x78] sm:$0xff]
        %v778 = vld [vmem:[%s734 + $0x80] sm:$0xff]
        %v779 = vld [vmem:[%s734 + $0x88] sm:$0xff]
        %v780 = vld [vmem:[%s734 + $0x90] sm:$0xff]
        %v781 = vld [vmem:[%s734 + $0x98] sm:$0xff]
        %v782 = vld [vmem:[%s734 + $0xa0] sm:$0xff]
        %v783 = vld [vmem:[%s734 + $0xa8] sm:$0xff]
        %v784 = vld [vmem:[%s734 + $0xb0] sm:$0xff]
        %v785 = vld [vmem:[%s734 + $0xb8] sm:$0xff]
        %v786 = vld [vmem:[%s2] sm:$0xff]
        %v787 = vld [vmem:[%s2 + $0x8] sm:$0xff]
        %v788 = vld [vmem:[%s2 + $0x10] sm:$0xff]
        %v789 = vld [vmem:[%s2 + $0x18] sm:$0xff]
        %v790 = vld [vmem:[%s2 + $0x20] sm:$0xff]
        %v791 = vld [vmem:[%s2 + $0x28] sm:$0xff]
        %v792 = vld [vmem:[%s2 + $0x30] sm:$0xff]
        %v793 = vld [vmem:[%s2 + $0x38] sm:$0xff]
        %v794 = vld [vmem:[%s2 + $0x40] sm:$0xff]
        %v795 = vld [vmem:[%s2 + $0x48] sm:$0xff]
        %v796 = vld [vmem:[%s2 + $0x50] sm:$0xff]
        %v797 = vld [vmem:[%s2 + $0x58] sm:$0xff]
        %v798 = vld [vmem:[%s2 + $0x60] sm:$0xff]
        %v799 = vld [vmem:[%s2 + $0x68] sm:$0xff]
        %v800 = vld [vmem:[%s2 + $0x70] sm:$0xff]
        %v801 = vld [vmem:[%s2 + $0x78] sm:$0xff]
        %v802 = vld [vmem:[%s2 + $0x80] sm:$0xff]
        %v803 = vld [vmem:[%s2 + $0x88] sm:$0xff]
        %v804 = vld [vmem:[%s2 + $0x90] sm:$0xff]
        %v805 = vld [vmem:[%s2 + $0x98] sm:$0xff]
        %v806 = vld [vmem:[%s2 + $0xa0] sm:$0xff]
        %v807 = vld [vmem:[%s2 + $0xa8] sm:$0xff]
        %v808 = vld [vmem:[%s2 + $0xb0] sm:$0xff]
        %v809 = vld [vmem:[%s2 + $0xb8] sm:$0xff]
        %v810 = vld [vmem:[%s2 + $0xc0] sm:$0xff]
        %v811 = vld [vmem:[%s2 + $0xc8] sm:$0xff]
        %v812 = vld [vmem:[%s2 + $0xd0] sm:$0xff]
        %v813 = vld [vmem:[%s2 + $0xd8] sm:$0xff]
        %v814 = vld [vmem:[%s2 + $0xe0] sm:$0xff]
        %v815 = vld [vmem:[%s2 + $0xe8] sm:$0xff]
        %v816 = vld [vmem:[%s2 + $0xf0] sm:$0xff]
        %v817 = vld [vmem:[%s2 + $0xf8] sm:$0xff]
        %v818 = vld [vmem:[%s2 + $0x100] sm:$0xff]
        %v819 = vld [vmem:[%s2 + $0x108] sm:$0xff]
        %v820 = vld [vmem:[%s2 + $0x110] sm:$0xff]
        %v821 = vld [vmem:[%s2 + $0x118] sm:$0xff]
        %v822 = vld [vmem:[%s3] sm:$0x1]
        %v824 = vlaneseq
        %v825 = vshrl.u32 %v824, 7
        %v826 = vsub.s32 0, %v825
        %v827 = vrot.slane %v822, %v826
        %v830 = vsel %vm740, %v764, 0
        %v833 = vsel %vm740, %v767, 0
        %v836 = vsel %vm740, %v770, 0
        %v839 = vsel %vm740, %v773, 0
        %v842 = vsel %vm740, %v776, 0
        %v845 = vsel %vm740, %v779, 0
        %v848 = vsel %vm740, %v782, 0
        %v851 = vsel %vm740, %v785, 0
        %853 = vmatprep.subr.mxu0 0.0
        %854 = vmatpush1.msra.mxu0 %v786
        %855 = vmatprep.subr.mxu0 0.0
        %856 = vmatpush1.msra.mxu0 %v787
        %857 = vmatprep.subr.mxu0 0.0
        %858 = vmatpush1.msra.mxu0 %v788
        %859 = vmatprep.subr.mxu0 0.0
        %860 = vmatpush1.msra.mxu0 %v789
        %861 = vmatprep.subr.mxu0 0.0
        %862 = vmatpush1.msra.mxu0 %v790
        %863 = vmatprep.subr.mxu0 0.0
        %864 = vmatpush1.msra.mxu0 %v791
        %865 = vmatprep.subr.mxu0 0.0
        %866 = vmatpush1.msra.mxu0 %v792
        %867 = vmatprep.subr.mxu0 0.0
        %868 = vmatpush1.msra.mxu0 %v793
        %869 = vmatprep.subr.mxu0 0.0
        %870 = vmatpush1.msra.mxu0 %v794
        %871 = vmatprep.subr.mxu0 0.0
        %872 = vmatpush1.msra.mxu0 %v795
        %873 = vmatprep.subr.mxu0 0.0
        %874 = vmatpush1.msra.mxu0 %v796
        %875 = vmatprep.subr.mxu0 0.0
        %876 = vmatpush1.msra.mxu0 %v797
        %877 = vmatprep.subr.mxu0 0.0
        %878 = vmatpush1.msra.mxu0 %v798
        %879 = vmatprep.subr.mxu0 0.0
        %880 = vmatpush1.msra.mxu0 %v799
        %881 = vmatprep.subr.mxu0 0.0
        %882 = vmatpush1.msra.mxu0 %v800
        %883 = vmatprep.subr.mxu0 0.0
        %884 = vmatpush1.msra.mxu0 %v801
        %885 = vmatprep.subr.mxu0 0.0
        %886 = vmatpush1.msra.mxu0 %v802
        %887 = vmatprep.subr.mxu0 0.0
        %888 = vmatpush1.msra.mxu0 %v803
        %889 = vmatprep.subr.mxu0 0.0
        %890 = vmatpush1.msra.mxu0 %v804
        %891 = vmatprep.subr.mxu0 0.0
        %892 = vmatpush1.msra.mxu0 %v805
        %893 = vmatprep.subr.mxu0 0.0
        %894 = vmatpush1.msra.mxu0 %v806
        %895 = vmatprep.subr.mxu0 0.0
        %896 = vmatpush1.msra.mxu0 %v807
        %897 = vmatprep.subr.mxu0 0.0
        %898 = vmatpush1.msra.mxu0 %v808
        %899 = vmatprep.subr.mxu0 0.0
        %900 = vmatpush1.msra.mxu0 %v809
        %901 = vmatprep.subr.mxu0 0.0
        %902 = vmatpush1.msra.mxu0 %v810
        %903 = vmatprep.subr.mxu0 0.0
        %904 = vmatpush1.msra.mxu0 %v811
        %905 = vmatprep.subr.mxu0 0.0
        %906 = vmatpush1.msra.mxu0 %v812
        %907 = vmatprep.subr.mxu0 0.0
        %908 = vmatpush1.msra.mxu0 %v813
        %909 = vmatprep.subr.mxu0 0.0
        %910 = vmatpush1.msra.mxu0 %v814
        %911 = vmatprep.subr.mxu0 0.0
        %912 = vmatpush1.msra.mxu0 %v815
        %913 = vmatprep.subr.mxu0 0.0
        %914 = vmatpush1.msra.mxu0 %v816
        %915 = vmatprep.subr.mxu0 0.0
        %916 = vmatpush1.msra.mxu0 %v817
        %917 = vmatprep.mubr.f32.mxu0 %v763
        %918 = vmatmul.mubr.f32.gmra.mrb[0].mxu0 %v762
        %v919 = vpop.f32.mrb[0].mxu0
        %v920 = vadd.f32 %v827, %v919
        %v921 = vpop.f32.mrb[0].mxu0
        %922 = vmatprep.mubr.f32.mxu0 %v766
        %923 = vmatmul.mubr.f32.gmra.mrb[0].mxu0 %v765
        %v924 = vpop.f32.mrb[0].mxu0
        %v925 = vadd.f32 %v827, %v924
        %v926 = vpop.f32.mrb[0].mxu0
        %927 = vmatprep.mubr.f32.mxu0 %v769
        %928 = vmatmul.mubr.f32.gmra.mrb[0].mxu0 %v768
        %v929 = vpop.f32.mrb[0].mxu0
        %v930 = vadd.f32 %v827, %v929
        %v931 = vpop.f32.mrb[0].mxu0
        %932 = vmatprep.mubr.f32.mxu0 %v772
        %933 = vmatmul.mubr.f32.gmra.mrb[0].mxu0 %v771
        %v934 = vpop.f32.mrb[0].mxu0
        %v935 = vadd.f32 %v827, %v934
        %v936 = vpop.f32.mrb[0].mxu0
        %937 = vmatprep.mubr.f32.mxu0 %v775
        %938 = vmatmul.mubr.f32.gmra.mrb[0].mxu0 %v774
        %v939 = vpop.f32.mrb[0].mxu0
        %v940 = vadd.f32 %v827, %v939
        %v941 = vpop.f32.mrb[0].mxu0
        %942 = vmatprep.mubr.f32.mxu0 %v778
        %943 = vmatmul.mubr.f32.gmra.mrb[0].mxu0 %v777
        %v944 = vpop.f32.mrb[0].mxu0
        %v945 = vadd.f32 %v827, %v944
        %v946 = vpop.f32.mrb[0].mxu0
        %947 = vmatprep.mubr.f32.mxu0 %v781
        %948 = vmatmul.mubr.f32.gmra.mrb[0].mxu0 %v780
        %v949 = vpop.f32.mrb[0].mxu0
        %v950 = vadd.f32 %v827, %v949
        %v951 = vpop.f32.mrb[0].mxu0
        %952 = vmatprep.mubr.f32.mxu0 %v784
        %953 = vmatmul.mubr.f32.gmra.mrb[0].mxu0 %v783
        %v954 = vpop.f32.mrb[0].mxu0
        %v955 = vadd.f32 %v827, %v954
        %v956 = vpop.f32.mrb[0].mxu0
        %957 = vdwg.mxu0
        %958 = vmatprep.subr.mxu0 0.0
        %959 = vmatpush1.msra.mxu0 %v818
        %960 = vmatprep.subr.mxu0 0.0
        %961 = vmatpush1.msra.mxu0 %v819
        %962 = vmatprep.subr.mxu0 0.0
        %963 = vmatpush1.msra.mxu0 %v820
        %964 = vmatprep.subr.mxu0 0.0
        %965 = vmatpush1.msra.mxu0 %v821
        %966 = vmatprep.subr.mxu0 0.0
        %967 = vmatpush1.msra.mxu0 0.0
        %968 = vmatprep.subr.mxu0 0.0
        %969 = vmatpush1.msra.mxu0 0.0
        %970 = vmatprep.subr.mxu0 0.0
        %971 = vmatpush1.msra.mxu0 0.0
        %972 = vmatprep.subr.mxu0 0.0
        %973 = vmatpush1.msra.mxu0 0.0
        %974 = vmatprep.subr.mxu0 0.0
        %975 = vmatpush1.msra.mxu0 0.0
        %976 = vmatprep.subr.mxu0 0.0
        %977 = vmatpush1.msra.mxu0 0.0
        %978 = vmatprep.subr.mxu0 0.0
        %979 = vmatpush1.msra.mxu0 0.0
        %980 = vmatprep.subr.mxu0 0.0
        %981 = vmatpush1.msra.mxu0 0.0
        %982 = vmatprep.subr.mxu0 0.0
        %983 = vmatpush1.msra.mxu0 0.0
        %984 = vmatprep.subr.mxu0 0.0
        %985 = vmatpush1.msra.mxu0 0.0
        %986 = vmatprep.subr.mxu0 0.0
        %987 = vmatpush1.msra.mxu0 0.0
        %988 = vmatprep.subr.mxu0 0.0
        %989 = vmatpush1.msra.mxu0 0.0
        %990 = vmatprep.subr.mxu0 0.0
        %991 = vmatpush1.msra.mxu0 0.0
        %992 = vmatprep.subr.mxu0 0.0
        %993 = vmatpush1.msra.mxu0 0.0
        %994 = vmatprep.subr.mxu0 0.0
        %995 = vmatpush1.msra.mxu0 0.0
        %996 = vmatprep.subr.mxu0 0.0
        %997 = vmatpush1.msra.mxu0 0.0
        %998 = vmatprep.subr.mxu0 0.0
        %999 = vmatpush1.msra.mxu0 0.0
        %1000 = vmatprep.subr.mxu0 0.0
        %1001 = vmatpush1.msra.mxu0 0.0
        %1002 = vmatprep.subr.mxu0 0.0
        %1003 = vmatpush1.msra.mxu0 0.0
        %1004 = vmatprep.subr.mxu0 0.0
        %1005 = vmatpush1.msra.mxu0 0.0
        %1006 = vmatprep.subr.mxu0 0.0
        %1007 = vmatpush1.msra.mxu0 0.0
        %1008 = vmatprep.subr.mxu0 0.0
        %1009 = vmatpush1.msra.mxu0 0.0
        %1010 = vmatprep.subr.mxu0 0.0
        %1011 = vmatpush1.msra.mxu0 0.0
        %1012 = vmatprep.subr.mxu0 0.0
        %1013 = vmatpush1.msra.mxu0 0.0
        %1014 = vmatprep.subr.mxu0 0.0
        %1015 = vmatpush1.msra.mxu0 0.0
        %1016 = vmatprep.subr.mxu0 0.0
        %1017 = vmatpush1.msra.mxu0 0.0
        %1018 = vmatprep.subr.mxu0 0.0
        %1019 = vmatpush1.msra.mxu0 0.0
        %1020 = vmatprep.subr.mxu0 0.0
        %1021 = vmatpush1.msra.mxu0 0.0
        %1022 = vmatprep.mubr.f32.mxu0 0.0
        %1023 = vmatmul.mubr.f32.gmra.mrb[0].mxu0 %v830
        %v1024 = vpop.f32.mrb[0].mxu0
        %v1025 = vadd.f32 %v920, %v1024
        %v1026 = vpop.f32.mrb[0].mxu0
        %1027 = vmatprep.mubr.f32.mxu0 0.0
        %1028 = vmatmul.mubr.f32.gmra.mrb[0].mxu0 %v833
        %v1029 = vpop.f32.mrb[0].mxu0
        %v1030 = vadd.f32 %v925, %v1029
        %v1031 = vpop.f32.mrb[0].mxu0
        %1032 = vmatprep.mubr.f32.mxu0 0.0
        %1033 = vmatmul.mubr.f32.gmra.mrb[0].mxu0 %v836
        %v1034 = vpop.f32.mrb[0].mxu0
        %v1035 = vadd.f32 %v930, %v1034
        %v1036 = vpop.f32.mrb[0].mxu0
        %1037 = vmatprep.mubr.f32.mxu0 0.0
        %1038 = vmatmul.mubr.f32.gmra.mrb[0].mxu0 %v839
        %v1039 = vpop.f32.mrb[0].mxu0
        %v1040 = vadd.f32 %v935, %v1039
        %v1041 = vpop.f32.mrb[0].mxu0
        %1042 = vmatprep.mubr.f32.mxu0 0.0
        %1043 = vmatmul.mubr.f32.gmra.mrb[0].mxu0 %v842
        %v1044 = vpop.f32.mrb[0].mxu0
        %v1045 = vadd.f32 %v940, %v1044
        %v1046 = vpop.f32.mrb[0].mxu0
        %1047 = vmatprep.mubr.f32.mxu0 0.0
        %1048 = vmatmul.mubr.f32.gmra.mrb[0].mxu0 %v845
        %v1049 = vpop.f32.mrb[0].mxu0
        %v1050 = vadd.f32 %v945, %v1049
        %v1051 = vpop.f32.mrb[0].mxu0
        %1052 = vmatprep.mubr.f32.mxu0 0.0
        %1053 = vmatmul.mubr.f32.gmra.mrb[0].mxu0 %v848
        %v1054 = vpop.f32.mrb[0].mxu0
        %v1055 = vadd.f32 %v950, %v1054
        %v1056 = vpop.f32.mrb[0].mxu0
        %1057 = vmatprep.mubr.f32.mxu0 0.0
        %1058 = vmatmul.mubr.f32.gmra.mrb[0].mxu0 %v851
        %v1059 = vpop.f32.mrb[0].mxu0
        %v1060 = vadd.f32 %v955, %v1059
        %v1061 = vpop.f32.mrb[0].mxu0
        %1062 = vdwg.mxu0
        %v1063 = vld [vmem:[%s4] sm:$0x1]
        %v1065 = vlaneseq
        %v1066 = vshrl.u32 %v1065, 7
        %v1067 = vsub.s32 0, %v1066
        %v1068 = vrot.slane %v1063, %v1067
        %v1070 = vmul.f32 %v1025, %v1068
        %v1071 = vmul.f32 %v1030, %v1068
        %v1072 = vmul.f32 %v1035, %v1068
        %v1073 = vmul.f32 %v1040, %v1068
        %v1074 = vmul.f32 %v1045, %v1068
        %v1075 = vmul.f32 %v1050, %v1068
        %v1076 = vmul.f32 %v1055, %v1068
        %v1077 = vmul.f32 %v1060, %v1068
        %v1078 = vld [vmem:[%s5] sm:$0x1]
        %v1080 = vlaneseq
        %v1081 = vshrl.u32 %v1080, 7
        %v1082 = vsub.s32 0, %v1081
        %v1083 = vrot.slane %v1078, %v1082
        %v1085 = vadd.f32 %v1070, %v1083
        %v1086 = vadd.f32 %v1071, %v1083
        %v1087 = vadd.f32 %v1072, %v1083
        %v1088 = vadd.f32 %v1073, %v1083
        %v1089 = vadd.f32 %v1074, %v1083
        %v1090 = vadd.f32 %v1075, %v1083
        %v1091 = vadd.f32 %v1076, %v1083
        %v1092 = vadd.f32 %v1077, %v1083
        %v1093 = vmax.f32 %v1085, 0.0
        %v1094 = vmax.f32 %v1086, 0.0
        %v1095 = vmax.f32 %v1087, 0.0
        %v1096 = vmax.f32 %v1088, 0.0
        %v1097 = vmax.f32 %v1089, 0.0
        %v1098 = vmax.f32 %v1090, 0.0
        %v1099 = vmax.f32 %v1091, 0.0
        %v1100 = vmax.f32 %v1092, 0.0
        %s1101 = scalar_lea.vmem [#allocation2], 16
        %1102 = vst.msk [vmem:[%s1101 + $0x1] sm:$0xff] %vm740, %v1093
        %1103 = vst.msk [vmem:[%s1101 + $0x11] sm:$0xff] %vm740, %v1094
        %1104 = vst.msk [vmem:[%s1101 + $0x21] sm:$0xff] %vm740, %v1095
        %1105 = vst.msk [vmem:[%s1101 + $0x31] sm:$0xff] %vm740, %v1096
        %1106 = vst.msk [vmem:[%s1101 + $0x41] sm:$0xff] %vm740, %v1097
        %1107 = vst.msk [vmem:[%s1101 + $0x51] sm:$0xff] %vm740, %v1098
        %1108 = vst.msk [vmem:[%s1101 + $0x61] sm:$0xff] %vm740, %v1099
        %1109 = vst.msk [vmem:[%s1101 + $0x71] sm:$0xff] %vm740, %v1100
        %v1110 = vld [vmem:[#allocation2] sm:$0xff]
        %v1111 = vld [vmem:[#allocation2 + $0x8] sm:$0x3]
        %v1112 = vld [vmem:[#allocation2 + $0x10] sm:$0xff]
        %v1113 = vld [vmem:[#allocation2 + $0x18] sm:$0x3]
        %v1114 = vld [vmem:[#allocation2 + $0x20] sm:$0xff]
        %v1115 = vld [vmem:[#allocation2 + $0x28] sm:$0x3]
        %v1116 = vld [vmem:[#allocation2 + $0x30] sm:$0xff]
        %v1117 = vld [vmem:[#allocation2 + $0x38] sm:$0x3]
        %v1118 = vld [vmem:[#allocation2 + $0x40] sm:$0xff]
        %v1119 = vld [vmem:[#allocation2 + $0x48] sm:$0x3]
        %v1120 = vld [vmem:[#allocation2 + $0x50] sm:$0xff]
        %v1121 = vld [vmem:[#allocation2 + $0x58] sm:$0x3]
        %v1122 = vld [vmem:[#allocation2 + $0x60] sm:$0xff]
        %v1123 = vld [vmem:[#allocation2 + $0x68] sm:$0x3]
        %v1124 = vld [vmem:[#allocation2 + $0x70] sm:$0xff]
        %v1125 = vld [vmem:[#allocation2 + $0x78] sm:$0x3]
        %v1126 = vld [vmem:[#allocation2 + $0x80] sm:$0xff]
        %v1127 = vld [vmem:[#allocation2 + $0x88] sm:$0x3]
        %v1128 = vld [vmem:[#allocation2 + $0x90] sm:$0xff]
        %v1129 = vld [vmem:[#allocation2 + $0x98] sm:$0x3]
        %vm1146 = vcmask 1046528
        %v1147 = vrot.slane %v1110, 1
        %v1148 = vrot.slane %v1111, 1
        %v1149 = vsel %vm1146, %v1147, %v1148
        %v1150 = vrot.slane %v1112, 1
        %v1151 = vrot.slane %v1113, 1
        %v1152 = vsel %vm1146, %v1150, %v1151
        %v1153 = vrot.slane %v1114, 1
        %v1154 = vrot.slane %v1115, 1
        %v1155 = vsel %vm1146, %v1153, %v1154
        %v1156 = vrot.slane %v1116, 1
        %v1157 = vrot.slane %v1117, 1
        %v1158 = vsel %vm1146, %v1156, %v1157
        %v1159 = vrot.slane %v1118, 1
        %v1160 = vrot.slane %v1119, 1
        %v1161 = vsel %vm1146, %v1159, %v1160
        %v1162 = vrot.slane %v1120, 1
        %v1163 = vrot.slane %v1121, 1
        %v1164 = vsel %vm1146, %v1162, %v1163
        %v1165 = vrot.slane %v1122, 1
        %v1166 = vrot.slane %v1123, 1
        %v1167 = vsel %vm1146, %v1165, %v1166
        %v1168 = vrot.slane %v1124, 1
        %v1169 = vrot.slane %v1125, 1
        %v1170 = vsel %vm1146, %v1168, %v1169
        %vm1171 = vcmask 1045504
        %v1172 = vrot.slane %v1110, 2
        %v1173 = vrot.slane %v1111, 2
        %v1174 = vsel %vm1171, %v1172, %v1173
        %v1175 = vrot.slane %v1112, 2
        %v1176 = vrot.slane %v1113, 2
        %v1177 = vsel %vm1171, %v1175, %v1176
        %v1178 = vrot.slane %v1114, 2
        %v1179 = vrot.slane %v1115, 2
        %v1180 = vsel %vm1171, %v1178, %v1179
        %v1181 = vrot.slane %v1116, 2
        %v1182 = vrot.slane %v1117, 2
        %v1183 = vsel %vm1171, %v1181, %v1182
        %v1184 = vrot.slane %v1118, 2
        %v1185 = vrot.slane %v1119, 2
        %v1186 = vsel %vm1171, %v1184, %v1185
        %v1187 = vrot.slane %v1120, 2
        %v1188 = vrot.slane %v1121, 2
        %v1189 = vsel %vm1171, %v1187, %v1188
        %v1190 = vrot.slane %v1122, 2
        %v1191 = vrot.slane %v1123, 2
        %v1192 = vsel %vm1171, %v1190, %v1191
        %v1193 = vrot.slane %v1124, 2
        %v1194 = vrot.slane %v1125, 2
        %v1195 = vsel %vm1171, %v1193, %v1194
        %v1198 = vrot.slane %v1126, 1
        %v1199 = vrot.slane %v1127, 1
        %v1200 = vsel %vm1146, %v1198, %v1199
        %v1209 = vrot.slane %v1126, 2
        %v1210 = vrot.slane %v1127, 2
        %v1211 = vsel %vm1171, %v1209, %v1210
        %v1214 = vrot.slane %v1128, 1
        %v1215 = vrot.slane %v1129, 1
        %v1216 = vsel %vm1146, %v1214, %v1215
        %v1217 = vrot.slane %v1128, 2
        %v1218 = vrot.slane %v1129, 2
        %v1219 = vsel %vm1171, %v1217, %v1218
        %1220 = vrot.lane.b32.xlu0 %v1149, 32
        %v1221 = vpop.permute.xlu0 %1220
        %1222 = vrot.lane.b32.xlu0 %v1152, 32
        %v1223 = vpop.permute.xlu0 %1222
        %1224 = vrot.lane.b32.xlu0 %v1155, 32
        %v1225 = vpop.permute.xlu0 %1224
        %1226 = vrot.lane.b32.xlu0 %v1158, 32
        %v1227 = vpop.permute.xlu0 %1226
        %1228 = vrot.lane.b32.xlu0 %v1161, 32
        %v1229 = vpop.permute.xlu0 %1228
        %1230 = vrot.lane.b32.xlu0 %v1164, 32
        %v1231 = vpop.permute.xlu0 %1230
        %1232 = vrot.lane.b32.xlu0 %v1167, 32
        %v1233 = vpop.permute.xlu0 %1232
        %1234 = vrot.lane.b32.xlu0 %v1170, 32
        %v1235 = vpop.permute.xlu0 %1234
        %1244 = vrot.lane.b32.xlu0 %v1174, 64
        %v1245 = vpop.permute.xlu0 %1244
        %1246 = vrot.lane.b32.xlu0 %v1177, 64
        %v1247 = vpop.permute.xlu0 %1246
        %1248 = vrot.lane.b32.xlu0 %v1180, 64
        %v1249 = vpop.permute.xlu0 %1248
        %1250 = vrot.lane.b32.xlu0 %v1183, 64
        %v1251 = vpop.permute.xlu0 %1250
        %1252 = vrot.lane.b32.xlu0 %v1186, 64
        %v1253 = vpop.permute.xlu0 %1252
        %1254 = vrot.lane.b32.xlu0 %v1189, 64
        %v1255 = vpop.permute.xlu0 %1254
        %1256 = vrot.lane.b32.xlu0 %v1192, 64
        %v1257 = vpop.permute.xlu0 %1256
        %1258 = vrot.lane.b32.xlu0 %v1195, 64
        %v1259 = vpop.permute.xlu0 %1258
        %1268 = vrot.lane.b32.xlu0 %v1112, 96
        %v1269 = vpop.permute.xlu0 %1268
        %1270 = vrot.lane.b32.xlu0 %v1114, 96
        %v1271 = vpop.permute.xlu0 %1270
        %1272 = vrot.lane.b32.xlu0 %v1116, 96
        %v1273 = vpop.permute.xlu0 %1272
        %1274 = vrot.lane.b32.xlu0 %v1118, 96
        %v1275 = vpop.permute.xlu0 %1274
        %1276 = vrot.lane.b32.xlu0 %v1120, 96
        %v1277 = vpop.permute.xlu0 %1276
        %1278 = vrot.lane.b32.xlu0 %v1122, 96
        %v1279 = vpop.permute.xlu0 %1278
        %1280 = vrot.lane.b32.xlu0 %v1124, 96
        %v1281 = vpop.permute.xlu0 %1280
        %1282 = vrot.lane.b32.xlu0 %v1126, 96
        %v1283 = vpop.permute.xlu0 %1282
        %1292 = vrot.lane.b32.xlu0 %v1177, 32
        %v1293 = vpop.permute.xlu0 %1292
        %1294 = vrot.lane.b32.xlu0 %v1180, 32
        %v1295 = vpop.permute.xlu0 %1294
        %1296 = vrot.lane.b32.xlu0 %v1183, 32
        %v1297 = vpop.permute.xlu0 %1296
        %1298 = vrot.lane.b32.xlu0 %v1186, 32
        %v1299 = vpop.permute.xlu0 %1298
        %1300 = vrot.lane.b32.xlu0 %v1189, 32
        %v1301 = vpop.permute.xlu0 %1300
        %1302 = vrot.lane.b32.xlu0 %v1192, 32
        %v1303 = vpop.permute.xlu0 %1302
        %1304 = vrot.lane.b32.xlu0 %v1195, 32
        %v1305 = vpop.permute.xlu0 %1304
        %1306 = vrot.lane.b32.xlu0 %v1211, 32
        %v1307 = vpop.permute.xlu0 %1306
        %1316 = vrot.lane.b32.xlu0 %v1114, 64
        %v1317 = vpop.permute.xlu0 %1316
        %1318 = vrot.lane.b32.xlu0 %v1116, 64
        %v1319 = vpop.permute.xlu0 %1318
        %1320 = vrot.lane.b32.xlu0 %v1118, 64
        %v1321 = vpop.permute.xlu0 %1320
        %1322 = vrot.lane.b32.xlu0 %v1120, 64
        %v1323 = vpop.permute.xlu0 %1322
        %1324 = vrot.lane.b32.xlu0 %v1122, 64
        %v1325 = vpop.permute.xlu0 %1324
        %1326 = vrot.lane.b32.xlu0 %v1124, 64
        %v1327 = vpop.permute.xlu0 %1326
        %1328 = vrot.lane.b32.xlu0 %v1126, 64
        %v1329 = vpop.permute.xlu0 %1328
        %1330 = vrot.lane.b32.xlu0 %v1128, 64
        %v1331 = vpop.permute.xlu0 %1330
        %1340 = vrot.lane.b32.xlu0 %v1155, 96
        %v1341 = vpop.permute.xlu0 %1340
        %1342 = vrot.lane.b32.xlu0 %v1158, 96
        %v1343 = vpop.permute.xlu0 %1342
        %1344 = vrot.lane.b32.xlu0 %v1161, 96
        %v1345 = vpop.permute.xlu0 %1344
        %1346 = vrot.lane.b32.xlu0 %v1164, 96
        %v1347 = vpop.permute.xlu0 %1346
        %1348 = vrot.lane.b32.xlu0 %v1167, 96
        %v1349 = vpop.permute.xlu0 %1348
        %1350 = vrot.lane.b32.xlu0 %v1170, 96
        %v1351 = vpop.permute.xlu0 %1350
        %1352 = vrot.lane.b32.xlu0 %v1200, 96
        %v1353 = vpop.permute.xlu0 %1352
        %1354 = vrot.lane.b32.xlu0 %v1216, 96
        %v1355 = vpop.permute.xlu0 %1354
        %v1364 = vsel %vm740, %v1110, %v1221
        %v1365 = vsel %vm740, %v1112, %v1223
        %v1366 = vsel %vm740, %v1114, %v1225
        %v1367 = vsel %vm740, %v1116, %v1227
        %v1368 = vsel %vm740, %v1118, %v1229
        %v1369 = vsel %vm740, %v1120, %v1231
        %v1370 = vsel %vm740, %v1122, %v1233
        %v1371 = vsel %vm740, %v1124, %v1235
        %vm1372 = vcmask 523264
        %v1373 = vsel %vm1372, %v1364, %v1245
        %v1374 = vsel %vm1372, %v1365, %v1247
        %v1375 = vsel %vm1372, %v1366, %v1249
        %v1376 = vsel %vm1372, %v1367, %v1251
        %v1377 = vsel %vm1372, %v1368, %v1253
        %v1378 = vsel %vm1372, %v1369, %v1255
        %v1379 = vsel %vm1372, %v1370, %v1257
        %v1380 = vsel %vm1372, %v1371, %v1259
        %vm1381 = vcmask 785408
        %v1382 = vsel %vm1381, %v1373, %v1269
        %v1383 = vsel %vm1381, %v1374, %v1271
        %v1384 = vsel %vm1381, %v1375, %v1273
        %v1385 = vsel %vm1381, %v1376, %v1275
        %v1386 = vsel %vm1381, %v1377, %v1277
        %v1387 = vsel %vm1381, %v1378, %v1279
        %v1388 = vsel %vm1381, %v1379, %v1281
        %v1389 = vsel %vm1381, %v1380, %v1283
        %v1390 = vsel %vm740, %v1152, %v1293
        %v1391 = vsel %vm740, %v1155, %v1295
        %v1392 = vsel %vm740, %v1158, %v1297
        %v1393 = vsel %vm740, %v1161, %v1299
        %v1394 = vsel %vm740, %v1164, %v1301
        %v1395 = vsel %vm740, %v1167, %v1303
        %v1396 = vsel %vm740, %v1170, %v1305
        %v1397 = vsel %vm740, %v1200, %v1307
        %v1398 = vsel %vm1372, %v1390, %v1317
        %v1399 = vsel %vm1372, %v1391, %v1319
        %v1400 = vsel %vm1372, %v1392, %v1321
        %v1401 = vsel %vm1372, %v1393, %v1323
        %v1402 = vsel %vm1372, %v1394, %v1325
        %v1403 = vsel %vm1372, %v1395, %v1327
        %v1404 = vsel %vm1372, %v1396, %v1329
        %v1405 = vsel %vm1372, %v1397, %v1331
        %v1406 = vsel %vm1381, %v1398, %v1341
        %v1407 = vsel %vm1381, %v1399, %v1343
        %v1408 = vsel %vm1381, %v1400, %v1345
        %v1409 = vsel %vm1381, %v1401, %v1347
        %v1410 = vsel %vm1381, %v1402, %v1349
        %v1411 = vsel %vm1381, %v1403, %v1351
        %v1412 = vsel %vm1381, %v1404, %v1353
        %v1413 = vsel %vm1381, %v1405, %v1355
        %v1414 = vld [vmem:[%s6] sm:$0xff]
        %v1415 = vld [vmem:[%s6 + $0x8] sm:$0xff]
        %v1416 = vld [vmem:[%s6 + $0x10] sm:$0xff]
        %v1417 = vld [vmem:[%s6 + $0x18] sm:$0xff]
        %v1418 = vld [vmem:[%s6 + $0x20] sm:$0xff]
        %v1419 = vld [vmem:[%s6 + $0x28] sm:$0xff]
        %v1420 = vld [vmem:[%s6 + $0x30] sm:$0xff]
        %v1421 = vld [vmem:[%s6 + $0x38] sm:$0xff]
        %v1422 = vld [vmem:[%s6 + $0x40] sm:$0xff]
        %v1423 = vld [vmem:[%s6 + $0x48] sm:$0xff]
        %v1424 = vld [vmem:[%s6 + $0x50] sm:$0xff]
        %v1425 = vld [vmem:[%s6 + $0x58] sm:$0xff]
        %v1426 = vld [vmem:[%s6 + $0x60] sm:$0xff]
        %v1427 = vld [vmem:[%s6 + $0x68] sm:$0xff]
        %v1428 = vld [vmem:[%s6 + $0x70] sm:$0xff]
        %v1429 = vld [vmem:[%s6 + $0x78] sm:$0xff]
        %v1430 = vld [vmem:[%s6 + $0x80] sm:$0xff]
        %v1431 = vld [vmem:[%s6 + $0x88] sm:$0xff]
        %v1432 = vld [vmem:[%s6 + $0x90] sm:$0xff]
        %v1433 = vld [vmem:[%s6 + $0x98] sm:$0xff]
        %v1434 = vld [vmem:[%s6 + $0xa0] sm:$0xff]
        %v1435 = vld [vmem:[%s6 + $0xa8] sm:$0xff]
        %v1436 = vld [vmem:[%s6 + $0xb0] sm:$0xff]
        %v1437 = vld [vmem:[%s6 + $0xb8] sm:$0xff]
        %v1438 = vld [vmem:[%s6 + $0xc0] sm:$0xff]
        %v1439 = vld [vmem:[%s6 + $0xc8] sm:$0xff]
        %v1440 = vld [vmem:[%s6 + $0xd0] sm:$0xff]
        %v1441 = vld [vmem:[%s6 + $0xd8] sm:$0xff]
        %v1442 = vld [vmem:[%s6 + $0xe0] sm:$0xff]
        %v1443 = vld [vmem:[%s6 + $0xe8] sm:$0xff]
        %v1444 = vld [vmem:[%s6 + $0xf0] sm:$0xff]
        %v1445 = vld [vmem:[%s6 + $0xf8] sm:$0xff]
        %v1446 = vld [vmem:[%s6 + $0x100] sm:$0xff]
        %v1447 = vld [vmem:[%s6 + $0x108] sm:$0xff]
        %v1448 = vld [vmem:[%s6 + $0x110] sm:$0xff]
        %v1449 = vld [vmem:[%s6 + $0x118] sm:$0xff]
        %v1450 = vld [vmem:[%s7] sm:$0x1]
        %v1452 = vlaneseq
        %v1453 = vshrl.u32 %v1452, 7
        %v1454 = vsub.s32 0, %v1453
        %v1455 = vrot.slane %v1450, %v1454
        %v1457 = vsel %vm740, %v1180, 0
        %v1459 = vsel %vm740, %v1183, 0
        %v1461 = vsel %vm740, %v1186, 0
        %v1463 = vsel %vm740, %v1189, 0
        %v1465 = vsel %vm740, %v1192, 0
        %v1467 = vsel %vm740, %v1195, 0
        %v1469 = vsel %vm740, %v1211, 0
        %v1471 = vsel %vm740, %v1219, 0
        %1473 = vmatprep.subr.mxu0 0.0
        %1474 = vmatpush1.msra.mxu0 %v1414
        %1475 = vmatprep.subr.mxu0 0.0
        %1476 = vmatpush1.msra.mxu0 %v1415
        %1477 = vmatprep.subr.mxu0 0.0
        %1478 = vmatpush1.msra.mxu0 %v1416
        %1479 = vmatprep.subr.mxu0 0.0
        %1480 = vmatpush1.msra.mxu0 %v1417
        %1481 = vmatprep.subr.mxu0 0.0
        %1482 = vmatpush1.msra.mxu0 %v1418
        %1483 = vmatprep.subr.mxu0 0.0
        %1484 = vmatpush1.msra.mxu0 %v1419
        %1485 = vmatprep.subr.mxu0 0.0
        %1486 = vmatpush1.msra.mxu0 %v1420
        %1487 = vmatprep.subr.mxu0 0.0
        %1488 = vmatpush1.msra.mxu0 %v1421
        %1489 = vmatprep.subr.mxu0 0.0
        %1490 = vmatpush1.msra.mxu0 %v1422
        %1491 = vmatprep.subr.mxu0 0.0
        %1492 = vmatpush1.msra.mxu0 %v1423
        %1493 = vmatprep.subr.mxu0 0.0
        %1494 = vmatpush1.msra.mxu0 %v1424
        %1495 = vmatprep.subr.mxu0 0.0
        %1496 = vmatpush1.msra.mxu0 %v1425
        %1497 = vmatprep.subr.mxu0 0.0
        %1498 = vmatpush1.msra.mxu0 %v1426
        %1499 = vmatprep.subr.mxu0 0.0
        %1500 = vmatpush1.msra.mxu0 %v1427
        %1501 = vmatprep.subr.mxu0 0.0
        %1502 = vmatpush1.msra.mxu0 %v1428
        %1503 = vmatprep.subr.mxu0 0.0
        %1504 = vmatpush1.msra.mxu0 %v1429
        %1505 = vmatprep.subr.mxu0 0.0
        %1506 = vmatpush1.msra.mxu0 %v1430
        %1507 = vmatprep.subr.mxu0 0.0
        %1508 = vmatpush1.msra.mxu0 %v1431
        %1509 = vmatprep.subr.mxu0 0.0
        %1510 = vmatpush1.msra.mxu0 %v1432
        %1511 = vmatprep.subr.mxu0 0.0
        %1512 = vmatpush1.msra.mxu0 %v1433
        %1513 = vmatprep.subr.mxu0 0.0
        %1514 = vmatpush1.msra.mxu0 %v1434
        %1515 = vmatprep.subr.mxu0 0.0
        %1516 = vmatpush1.msra.mxu0 %v1435
        %1517 = vmatprep.subr.mxu0 0.0
        %1518 = vmatpush1.msra.mxu0 %v1436
        %1519 = vmatprep.subr.mxu0 0.0
        %1520 = vmatpush1.msra.mxu0 %v1437
        %1521 = vmatprep.subr.mxu0 0.0
        %1522 = vmatpush1.msra.mxu0 %v1438
        %1523 = vmatprep.subr.mxu0 0.0
        %1524 = vmatpush1.msra.mxu0 %v1439
        %1525 = vmatprep.subr.mxu0 0.0
        %1526 = vmatpush1.msra.mxu0 %v1440
        %1527 = vmatprep.subr.mxu0 0.0
        %1528 = vmatpush1.msra.mxu0 %v1441
        %1529 = vmatprep.subr.mxu0 0.0
        %1530 = vmatpush1.msra.mxu0 %v1442
        %1531 = vmatprep.subr.mxu0 0.0
        %1532 = vmatpush1.msra.mxu0 %v1443
        %1533 = vmatprep.subr.mxu0 0.0
        %1534 = vmatpush1.msra.mxu0 %v1444
        %1535 = vmatprep.subr.mxu0 0.0
        %1536 = vmatpush1.msra.mxu0 %v1445
        %1537 = vmatprep.mubr.f32.mxu0 %v1406
        %1538 = vmatmul.mubr.f32.gmra.mrb[0].mxu0 %v1382
        %v1539 = vpop.f32.mrb[0].mxu0
        %v1540 = vadd.f32 %v1455, %v1539
        %v1541 = vpop.f32.mrb[0].mxu0
        %1542 = vmatprep.mubr.f32.mxu0 %v1407
        %1543 = vmatmul.mubr.f32.gmra.mrb[0].mxu0 %v1383
        %v1544 = vpop.f32.mrb[0].mxu0
        %v1545 = vadd.f32 %v1455, %v1544
        %v1546 = vpop.f32.mrb[0].mxu0
        %1547 = vmatprep.mubr.f32.mxu0 %v1408
        %1548 = vmatmul.mubr.f32.gmra.mrb[0].mxu0 %v1384
        %v1549 = vpop.f32.mrb[0].mxu0
        %v1550 = vadd.f32 %v1455, %v1549
        %v1551 = vpop.f32.mrb[0].mxu0
        %1552 = vmatprep.mubr.f32.mxu0 %v1409
        %1553 = vmatmul.mubr.f32.gmra.mrb[0].mxu0 %v1385
        %v1554 = vpop.f32.mrb[0].mxu0
        %v1555 = vadd.f32 %v1455, %v1554
        %v1556 = vpop.f32.mrb[0].mxu0
        %1557 = vmatprep.mubr.f32.mxu0 %v1410
        %1558 = vmatmul.mubr.f32.gmra.mrb[0].mxu0 %v1386
        %v1559 = vpop.f32.mrb[0].mxu0
        %v1560 = vadd.f32 %v1455, %v1559
        %v1561 = vpop.f32.mrb[0].mxu0
        %1562 = vmatprep.mubr.f32.mxu0 %v1411
        %1563 = vmatmul.mubr.f32.gmra.mrb[0].mxu0 %v1387
        %v1564 = vpop.f32.mrb[0].mxu0
        %v1565 = vadd.f32 %v1455, %v1564
        %v1566 = vpop.f32.mrb[0].mxu0
        %1567 = vmatprep.mubr.f32.mxu0 %v1412
        %1568 = vmatmul.mubr.f32.gmra.mrb[0].mxu0 %v1388
        %v1569 = vpop.f32.mrb[0].mxu0
        %v1570 = vadd.f32 %v1455, %v1569
        %v1571 = vpop.f32.mrb[0].mxu0
        %1572 = vmatprep.mubr.f32.mxu0 %v1413
        %1573 = vmatmul.mubr.f32.gmra.mrb[0].mxu0 %v1389
        %v1574 = vpop.f32.mrb[0].mxu0
        %v1575 = vadd.f32 %v1455, %v1574
        %v1576 = vpop.f32.mrb[0].mxu0
        %1577 = vdwg.mxu0
        %1578 = vmatprep.subr.mxu0 0.0
        %1579 = vmatpush1.msra.mxu0 %v1446
        %1580 = vmatprep.subr.mxu0 0.0
        %1581 = vmatpush1.msra.mxu0 %v1447
        %1582 = vmatprep.subr.mxu0 0.0
        %1583 = vmatpush1.msra.mxu0 %v1448
        %1584 = vmatprep.subr.mxu0 0.0
        %1585 = vmatpush1.msra.mxu0 %v1449
        %1586 = vmatprep.subr.mxu0 0.0
        %1587 = vmatpush1.msra.mxu0 0.0
        %1588 = vmatprep.subr.mxu0 0.0
        %1589 = vmatpush1.msra.mxu0 0.0
        %1590 = vmatprep.subr.mxu0 0.0
        %1591 = vmatpush1.msra.mxu0 0.0
        %1592 = vmatprep.subr.mxu0 0.0
        %1593 = vmatpush1.msra.mxu0 0.0
        %1594 = vmatprep.subr.mxu0 0.0
        %1595 = vmatpush1.msra.mxu0 0.0
        %1596 = vmatprep.subr.mxu0 0.0
        %1597 = vmatpush1.msra.mxu0 0.0
        %1598 = vmatprep.subr.mxu0 0.0
        %1599 = vmatpush1.msra.mxu0 0.0
        %1600 = vmatprep.subr.mxu0 0.0
        %1601 = vmatpush1.msra.mxu0 0.0
        %1602 = vmatprep.subr.mxu0 0.0
        %1603 = vmatpush1.msra.mxu0 0.0
        %1604 = vmatprep.subr.mxu0 0.0
        %1605 = vmatpush1.msra.mxu0 0.0
        %1606 = vmatprep.subr.mxu0 0.0
        %1607 = vmatpush1.msra.mxu0 0.0
        %1608 = vmatprep.subr.mxu0 0.0
        %1609 = vmatpush1.msra.mxu0 0.0
        %1610 = vmatprep.subr.mxu0 0.0
        %1611 = vmatpush1.msra.mxu0 0.0
        %1612 = vmatprep.subr.mxu0 0.0
        %1613 = vmatpush1.msra.mxu0 0.0
        %1614 = vmatprep.subr.mxu0 0.0
        %1615 = vmatpush1.msra.mxu0 0.0
        %1616 = vmatprep.subr.mxu0 0.0
        %1617 = vmatpush1.msra.mxu0 0.0
        %1618 = vmatprep.subr.mxu0 0.0
        %1619 = vmatpush1.msra.mxu0 0.0
        %1620 = vmatprep.subr.mxu0 0.0
        %1621 = vmatpush1.msra.mxu0 0.0
        %1622 = vmatprep.subr.mxu0 0.0
        %1623 = vmatpush1.msra.mxu0 0.0
        %1624 = vmatprep.subr.mxu0 0.0
        %1625 = vmatpush1.msra.mxu0 0.0
        %1626 = vmatprep.subr.mxu0 0.0
        %1627 = vmatpush1.msra.mxu0 0.0
        %1628 = vmatprep.subr.mxu0 0.0
        %1629 = vmatpush1.msra.mxu0 0.0
        %1630 = vmatprep.subr.mxu0 0.0
        %1631 = vmatpush1.msra.mxu0 0.0
        %1632 = vmatprep.subr.mxu0 0.0
        %1633 = vmatpush1.msra.mxu0 0.0
        %1634 = vmatprep.subr.mxu0 0.0
        %1635 = vmatpush1.msra.mxu0 0.0
        %1636 = vmatprep.subr.mxu0 0.0
        %1637 = vmatpush1.msra.mxu0 0.0
        %1638 = vmatprep.subr.mxu0 0.0
        %1639 = vmatpush1.msra.mxu0 0.0
        %1640 = vmatprep.subr.mxu0 0.0
        %1641 = vmatpush1.msra.mxu0 0.0
        %1642 = vmatprep.mubr.f32.mxu0 0.0
        %1643 = vmatmul.mubr.f32.gmra.mrb[0].mxu0 %v1457
        %v1644 = vpop.f32.mrb[0].mxu0
        %v1645 = vadd.f32 %v1540, %v1644
        %v1646 = vpop.f32.mrb[0].mxu0
        %1647 = vmatprep.mubr.f32.mxu0 0.0
        %1648 = vmatmul.mubr.f32.gmra.mrb[0].mxu0 %v1459
        %v1649 = vpop.f32.mrb[0].mxu0
        %v1650 = vadd.f32 %v1545, %v1649
        %v1651 = vpop.f32.mrb[0].mxu0
        %1652 = vmatprep.mubr.f32.mxu0 0.0
        %1653 = vmatmul.mubr.f32.gmra.mrb[0].mxu0 %v1461
        %v1654 = vpop.f32.mrb[0].mxu0
        %v1655 = vadd.f32 %v1550, %v1654
        %v1656 = vpop.f32.mrb[0].mxu0
        %1657 = vmatprep.mubr.f32.mxu0 0.0
        %1658 = vmatmul.mubr.f32.gmra.mrb[0].mxu0 %v1463
        %v1659 = vpop.f32.mrb[0].mxu0
        %v1660 = vadd.f32 %v1555, %v1659
        %v1661 = vpop.f32.mrb[0].mxu0
        %1662 = vmatprep.mubr.f32.mxu0 0.0
        %1663 = vmatmul.mubr.f32.gmra.mrb[0].mxu0 %v1465
        %v1664 = vpop.f32.mrb[0].mxu0
        %v1665 = vadd.f32 %v1560, %v1664
        %v1666 = vpop.f32.mrb[0].mxu0
        %1667 = vmatprep.mubr.f32.mxu0 0.0
        %1668 = vmatmul.mubr.f32.gmra.mrb[0].mxu0 %v1467
        %v1669 = vpop.f32.mrb[0].mxu0
        %v1670 = vadd.f32 %v1565, %v1669
        %v1671 = vpop.f32.mrb[0].mxu0
        %1672 = vmatprep.mubr.f32.mxu0 0.0
        %1673 = vmatmul.mubr.f32.gmra.mrb[0].mxu0 %v1469
        %v1674 = vpop.f32.mrb[0].mxu0
        %v1675 = vadd.f32 %v1570, %v1674
        %v1676 = vpop.f32.mrb[0].mxu0
        %1677 = vmatprep.mubr.f32.mxu0 0.0
        %1678 = vmatmul.mubr.f32.gmra.mrb[0].mxu0 %v1471
        %v1679 = vpop.f32.mrb[0].mxu0
        %v1680 = vadd.f32 %v1575, %v1679
        %v1681 = vpop.f32.mrb[0].mxu0
        %1682 = vdwg.mxu0
        %v1683 = vld [vmem:[%s8] sm:$0xff]
        %v1684 = vld [vmem:[%s8 + $0x8] sm:$0xff]
        %v1685 = vld [vmem:[%s8 + $0x10] sm:$0xff]
        %v1686 = vld [vmem:[%s8 + $0x18] sm:$0xff]
        %v1687 = vld [vmem:[%s8 + $0x20] sm:$0xff]
        %v1688 = vld [vmem:[%s8 + $0x28] sm:$0xff]
        %v1689 = vld [vmem:[%s8 + $0x30] sm:$0xff]
        %v1690 = vld [vmem:[%s8 + $0x38] sm:$0xff]
        %v1691 = vld [vmem:[%s8 + $0x40] sm:$0xff]
        %v1692 = vld [vmem:[%s8 + $0x48] sm:$0xff]
        %v1693 = vld [vmem:[%s8 + $0x50] sm:$0xff]
        %v1694 = vld [vmem:[%s8 + $0x58] sm:$0xff]
        %v1695 = vld [vmem:[%s8 + $0x60] sm:$0xff]
        %v1696 = vld [vmem:[%s8 + $0x68] sm:$0xff]
        %v1697 = vld [vmem:[%s8 + $0x70] sm:$0xff]
        %v1698 = vld [vmem:[%s8 + $0x78] sm:$0xff]
        %v1699 = vld [vmem:[%s8 + $0x80] sm:$0xff]
        %v1700 = vld [vmem:[%s8 + $0x88] sm:$0xff]
        %v1701 = vld [vmem:[%s8 + $0x90] sm:$0xff]
        %v1702 = vld [vmem:[%s8 + $0x98] sm:$0xff]
        %v1703 = vld [vmem:[%s8 + $0xa0] sm:$0xff]
        %v1704 = vld [vmem:[%s8 + $0xa8] sm:$0xff]
        %v1705 = vld [vmem:[%s8 + $0xb0] sm:$0xff]
        %v1706 = vld [vmem:[%s8 + $0xb8] sm:$0xff]
        %v1707 = vld [vmem:[%s8 + $0xc0] sm:$0xff]
        %v1708 = vld [vmem:[%s8 + $0xc8] sm:$0xff]
        %v1709 = vld [vmem:[%s8 + $0xd0] sm:$0xff]
        %v1710 = vld [vmem:[%s8 + $0xd8] sm:$0xff]
        %v1711 = vld [vmem:[%s8 + $0xe0] sm:$0xff]
        %v1712 = vld [vmem:[%s8 + $0xe8] sm:$0xff]
        %v1713 = vld [vmem:[%s8 + $0xf0] sm:$0xff]
        %v1714 = vld [vmem:[%s8 + $0xf8] sm:$0xff]
        %v1715 = vld [vmem:[%s8 + $0x100] sm:$0xff]
        %v1716 = vld [vmem:[%s8 + $0x108] sm:$0xff]
        %v1717 = vld [vmem:[%s8 + $0x110] sm:$0xff]
        %v1718 = vld [vmem:[%s8 + $0x118] sm:$0xff]
        %v1719 = vld [vmem:[%s9] sm:$0x1]
        %v1721 = vlaneseq
        %v1722 = vshrl.u32 %v1721, 7
        %v1723 = vsub.s32 0, %v1722
        %v1724 = vrot.slane %v1719, %v1723
        %1726 = vmatprep.subr.mxu0 0.0
        %1727 = vmatpush1.msra.mxu0 %v1683
        %1728 = vmatprep.subr.mxu0 0.0
        %1729 = vmatpush1.msra.mxu0 %v1684
        %1730 = vmatprep.subr.mxu0 0.0
        %1731 = vmatpush1.msra.mxu0 %v1685
        %1732 = vmatprep.subr.mxu0 0.0
        %1733 = vmatpush1.msra.mxu0 %v1686
        %1734 = vmatprep.subr.mxu0 0.0
        %1735 = vmatpush1.msra.mxu0 %v1687
        %1736 = vmatprep.subr.mxu0 0.0
        %1737 = vmatpush1.msra.mxu0 %v1688
        %1738 = vmatprep.subr.mxu0 0.0
        %1739 = vmatpush1.msra.mxu0 %v1689
        %1740 = vmatprep.subr.mxu0 0.0
        %1741 = vmatpush1.msra.mxu0 %v1690
        %1742 = vmatprep.subr.mxu0 0.0
        %1743 = vmatpush1.msra.mxu0 %v1691
        %1744 = vmatprep.subr.mxu0 0.0
        %1745 = vmatpush1.msra.mxu0 %v1692
        %1746 = vmatprep.subr.mxu0 0.0
        %1747 = vmatpush1.msra.mxu0 %v1693
        %1748 = vmatprep.subr.mxu0 0.0
        %1749 = vmatpush1.msra.mxu0 %v1694
        %1750 = vmatprep.subr.mxu0 0.0
        %1751 = vmatpush1.msra.mxu0 %v1695
        %1752 = vmatprep.subr.mxu0 0.0
        %1753 = vmatpush1.msra.mxu0 %v1696
        %1754 = vmatprep.subr.mxu0 0.0
        %1755 = vmatpush1.msra.mxu0 %v1697
        %1756 = vmatprep.subr.mxu0 0.0
        %1757 = vmatpush1.msra.mxu0 %v1698
        %1758 = vmatprep.subr.mxu0 0.0
        %1759 = vmatpush1.msra.mxu0 %v1699
        %1760 = vmatprep.subr.mxu0 0.0
        %1761 = vmatpush1.msra.mxu0 %v1700
        %1762 = vmatprep.subr.mxu0 0.0
        %1763 = vmatpush1.msra.mxu0 %v1701
        %1764 = vmatprep.subr.mxu0 0.0
        %1765 = vmatpush1.msra.mxu0 %v1702
        %1766 = vmatprep.subr.mxu0 0.0
        %1767 = vmatpush1.msra.mxu0 %v1703
        %1768 = vmatprep.subr.mxu0 0.0
        %1769 = vmatpush1.msra.mxu0 %v1704
        %1770 = vmatprep.subr.mxu0 0.0
        %1771 = vmatpush1.msra.mxu0 %v1705
        %1772 = vmatprep.subr.mxu0 0.0
        %1773 = vmatpush1.msra.mxu0 %v1706
        %1774 = vmatprep.subr.mxu0 0.0
        %1775 = vmatpush1.msra.mxu0 %v1707
        %1776 = vmatprep.subr.mxu0 0.0
        %1777 = vmatpush1.msra.mxu0 %v1708
        %1778 = vmatprep.subr.mxu0 0.0
        %1779 = vmatpush1.msra.mxu0 %v1709
        %1780 = vmatprep.subr.mxu0 0.0
        %1781 = vmatpush1.msra.mxu0 %v1710
        %1782 = vmatprep.subr.mxu0 0.0
        %1783 = vmatpush1.msra.mxu0 %v1711
        %1784 = vmatprep.subr.mxu0 0.0
        %1785 = vmatpush1.msra.mxu0 %v1712
        %1786 = vmatprep.subr.mxu0 0.0
        %1787 = vmatpush1.msra.mxu0 %v1713
        %1788 = vmatprep.subr.mxu0 0.0
        %1789 = vmatpush1.msra.mxu0 %v1714
        %1790 = vmatprep.mubr.f32.mxu0 %v1406
        %1791 = vmatmul.mubr.f32.gmra.mrb[0].mxu0 %v1382
        %v1792 = vpop.f32.mrb[0].mxu0
        %v1793 = vadd.f32 %v1724, %v1792
        %v1794 = vpop.f32.mrb[0].mxu0
        %1795 = vmatprep.mubr.f32.mxu0 %v1407
        %1796 = vmatmul.mubr.f32.gmra.mrb[0].mxu0 %v1383
        %v1797 = vpop.f32.mrb[0].mxu0
        %v1798 = vadd.f32 %v1724, %v1797
        %v1799 = vpop.f32.mrb[0].mxu0
        %1800 = vmatprep.mubr.f32.mxu0 %v1408
        %1801 = vmatmul.mubr.f32.gmra.mrb[0].mxu0 %v1384
        %v1802 = vpop.f32.mrb[0].mxu0
        %v1803 = vadd.f32 %v1724, %v1802
        %v1804 = vpop.f32.mrb[0].mxu0
        %1805 = vmatprep.mubr.f32.mxu0 %v1409
        %1806 = vmatmul.mubr.f32.gmra.mrb[0].mxu0 %v1385
        %v1807 = vpop.f32.mrb[0].mxu0
        %v1808 = vadd.f32 %v1724, %v1807
        %v1809 = vpop.f32.mrb[0].mxu0
        %1810 = vmatprep.mubr.f32.mxu0 %v1410
        %1811 = vmatmul.mubr.f32.gmra.mrb[0].mxu0 %v1386
        %v1812 = vpop.f32.mrb[0].mxu0
        %v1813 = vadd.f32 %v1724, %v1812
        %v1814 = vpop.f32.mrb[0].mxu0
        %1815 = vmatprep.mubr.f32.mxu0 %v1411
        %1816 = vmatmul.mubr.f32.gmra.mrb[0].mxu0 %v1387
        %v1817 = vpop.f32.mrb[0].mxu0
        %v1818 = vadd.f32 %v1724, %v1817
        %v1819 = vpop.f32.mrb[0].mxu0
        %1820 = vmatprep.mubr.f32.mxu0 %v1412
        %1821 = vmatmul.mubr.f32.gmra.mrb[0].mxu0 %v1388
        %v1822 = vpop.f32.mrb[0].mxu0
        %v1823 = vadd.f32 %v1724, %v1822
        %v1824 = vpop.f32.mrb[0].mxu0
        %1825 = vmatprep.mubr.f32.mxu0 %v1413
        %1826 = vmatmul.mubr.f32.gmra.mrb[0].mxu0 %v1389
        %v1827 = vpop.f32.mrb[0].mxu0
        %v1828 = vadd.f32 %v1724, %v1827
        %v1829 = vpop.f32.mrb[0].mxu0
        %1830 = vdwg.mxu0
        %1831 = vmatprep.subr.mxu0 0.0
        %1832 = vmatpush1.msra.mxu0 %v1715
        %1833 = vmatprep.subr.mxu0 0.0
        %1834 = vmatpush1.msra.mxu0 %v1716
        %1835 = vmatprep.subr.mxu0 0.0
        %1836 = vmatpush1.msra.mxu0 %v1717
        %1837 = vmatprep.subr.mxu0 0.0
        %1838 = vmatpush1.msra.mxu0 %v1718
        %1839 = vmatprep.subr.mxu0 0.0
        %1840 = vmatpush1.msra.mxu0 0.0
        %1841 = vmatprep.subr.mxu0 0.0
        %1842 = vmatpush1.msra.mxu0 0.0
        %1843 = vmatprep.subr.mxu0 0.0
        %1844 = vmatpush1.msra.mxu0 0.0
        %1845 = vmatprep.subr.mxu0 0.0
        %1846 = vmatpush1.msra.mxu0 0.0
        %1847 = vmatprep.subr.mxu0 0.0
        %1848 = vmatpush1.msra.mxu0 0.0
        %1849 = vmatprep.subr.mxu0 0.0
        %1850 = vmatpush1.msra.mxu0 0.0
        %1851 = vmatprep.subr.mxu0 0.0
        %1852 = vmatpush1.msra.mxu0 0.0
        %1853 = vmatprep.subr.mxu0 0.0
        %1854 = vmatpush1.msra.mxu0 0.0
        %1855 = vmatprep.subr.mxu0 0.0
        %1856 = vmatpush1.msra.mxu0 0.0
        %1857 = vmatprep.subr.mxu0 0.0
        %1858 = vmatpush1.msra.mxu0 0.0
        %1859 = vmatprep.subr.mxu0 0.0
        %1860 = vmatpush1.msra.mxu0 0.0
        %1861 = vmatprep.subr.mxu0 0.0
        %1862 = vmatpush1.msra.mxu0 0.0
        %1863 = vmatprep.subr.mxu0 0.0
        %1864 = vmatpush1.msra.mxu0 0.0
        %1865 = vmatprep.subr.mxu0 0.0
        %1866 = vmatpush1.msra.mxu0 0.0
        %1867 = vmatprep.subr.mxu0 0.0
        %1868 = vmatpush1.msra.mxu0 0.0
        %1869 = vmatprep.subr.mxu0 0.0
        %1870 = vmatpush1.msra.mxu0 0.0
        %1871 = vmatprep.subr.mxu0 0.0
        %1872 = vmatpush1.msra.mxu0 0.0
        %1873 = vmatprep.subr.mxu0 0.0
        %1874 = vmatpush1.msra.mxu0 0.0
        %1875 = vmatprep.subr.mxu0 0.0
        %1876 = vmatpush1.msra.mxu0 0.0
        %1877 = vmatprep.subr.mxu0 0.0
        %1878 = vmatpush1.msra.mxu0 0.0
        %1879 = vmatprep.subr.mxu0 0.0
        %1880 = vmatpush1.msra.mxu0 0.0
        %1881 = vmatprep.subr.mxu0 0.0
        %1882 = vmatpush1.msra.mxu0 0.0
        %1883 = vmatprep.subr.mxu0 0.0
        %1884 = vmatpush1.msra.mxu0 0.0
        %1885 = vmatprep.subr.mxu0 0.0
        %1886 = vmatpush1.msra.mxu0 0.0
        %1887 = vmatprep.subr.mxu0 0.0
        %1888 = vmatpush1.msra.mxu0 0.0
        %1889 = vmatprep.subr.mxu0 0.0
        %1890 = vmatpush1.msra.mxu0 0.0
        %1891 = vmatprep.subr.mxu0 0.0
        %1892 = vmatpush1.msra.mxu0 0.0
        %1893 = vmatprep.subr.mxu0 0.0
        %1894 = vmatpush1.msra.mxu0 0.0
        %1895 = vmatprep.mubr.f32.mxu0 0.0
        %1896 = vmatmul.mubr.f32.gmra.mrb[0].mxu0 %v1457
        %v1897 = vpop.f32.mrb[0].mxu0
        %v1898 = vadd.f32 %v1793, %v1897
        %v1899 = vpop.f32.mrb[0].mxu0
        %1900 = vmatprep.mubr.f32.mxu0 0.0
        %1901 = vmatmul.mubr.f32.gmra.mrb[0].mxu0 %v1459
        %v1902 = vpop.f32.mrb[0].mxu0
        %v1903 = vadd.f32 %v1798, %v1902
        %v1904 = vpop.f32.mrb[0].mxu0
        %1905 = vmatprep.mubr.f32.mxu0 0.0
        %1906 = vmatmul.mubr.f32.gmra.mrb[0].mxu0 %v1461
        %v1907 = vpop.f32.mrb[0].mxu0
        %v1908 = vadd.f32 %v1803, %v1907
        %v1909 = vpop.f32.mrb[0].mxu0
        %1910 = vmatprep.mubr.f32.mxu0 0.0
        %1911 = vmatmul.mubr.f32.gmra.mrb[0].mxu0 %v1463
        %v1912 = vpop.f32.mrb[0].mxu0
        %v1913 = vadd.f32 %v1808, %v1912
        %v1914 = vpop.f32.mrb[0].mxu0
        %1915 = vmatprep.mubr.f32.mxu0 0.0
        %1916 = vmatmul.mubr.f32.gmra.mrb[0].mxu0 %v1465
        %v1917 = vpop.f32.mrb[0].mxu0
        %v1918 = vadd.f32 %v1813, %v1917
        %v1919 = vpop.f32.mrb[0].mxu0
        %1920 = vmatprep.mubr.f32.mxu0 0.0
        %1921 = vmatmul.mubr.f32.gmra.mrb[0].mxu0 %v1467
        %v1922 = vpop.f32.mrb[0].mxu0
        %v1923 = vadd.f32 %v1818, %v1922
        %v1924 = vpop.f32.mrb[0].mxu0
        %1925 = vmatprep.mubr.f32.mxu0 0.0
        %1926 = vmatmul.mubr.f32.gmra.mrb[0].mxu0 %v1469
        %v1927 = vpop.f32.mrb[0].mxu0
        %v1928 = vadd.f32 %v1823, %v1927
        %v1929 = vpop.f32.mrb[0].mxu0
        %1930 = vmatprep.mubr.f32.mxu0 0.0
        %1931 = vmatmul.mubr.f32.gmra.mrb[0].mxu0 %v1471
        %v1932 = vpop.f32.mrb[0].mxu0
        %v1933 = vadd.f32 %v1828, %v1932
        %v1934 = vpop.f32.mrb[0].mxu0
        %1935 = vdwg.mxu0
        %v1936 = vmul.f32 %v1645, %v1093
        %v1937 = vmul.f32 %v1650, %v1094
        %v1938 = vmul.f32 %v1655, %v1095
        %v1939 = vmul.f32 %v1660, %v1096
        %v1940 = vmul.f32 %v1665, %v1097
        %v1941 = vmul.f32 %v1670, %v1098
        %v1942 = vmul.f32 %v1675, %v1099
        %v1943 = vmul.f32 %v1680, %v1100
        %v1944 = vadd.f32 %v1936, %v1898
        %v1945 = vadd.f32 %v1937, %v1903
        %v1946 = vadd.f32 %v1938, %v1908
        %v1947 = vadd.f32 %v1939, %v1913
        %v1948 = vadd.f32 %v1940, %v1918
        %v1949 = vadd.f32 %v1941, %v1923
        %v1950 = vadd.f32 %v1942, %v1928
        %v1951 = vadd.f32 %v1943, %v1933
        %v1952 = vmax.f32 %v1944, 0.0
        %v1953 = vmax.f32 %v1945, 0.0
        %v1954 = vmax.f32 %v1946, 0.0
        %v1955 = vmax.f32 %v1947, 0.0
        %v1956 = vmax.f32 %v1948, 0.0
        %v1957 = vmax.f32 %v1949, 0.0
        %v1958 = vmax.f32 %v1950, 0.0
        %v1959 = vmax.f32 %v1951, 0.0
        %v1960 = vld [vmem:[%s739] sm:$0xff]
        %v1961 = vld [vmem:[%s739 + $0x8] sm:$0xff]
        %v1962 = vld [vmem:[%s739 + $0x10] sm:$0xff]
        %v1963 = vld [vmem:[%s739 + $0x18] sm:$0xff]
        %v1964 = vld [vmem:[%s739 + $0x20] sm:$0xff]
        %v1965 = vld [vmem:[%s739 + $0x28] sm:$0xff]
        %v1966 = vld [vmem:[%s739 + $0x30] sm:$0xff]
        %v1967 = vld [vmem:[%s739 + $0x38] sm:$0xff]
        %v1968 = vld [vmem:[%s739 + $0x40] sm:$0xff]
        %v1969 = vld [vmem:[%s739 + $0x48] sm:$0xff]
        %v1970 = vld [vmem:[%s739 + $0x50] sm:$0xff]
        %v1971 = vld [vmem:[%s739 + $0x58] sm:$0xff]
        %v1972 = vld [vmem:[%s739 + $0x60] sm:$0xff]
        %v1973 = vld [vmem:[%s739 + $0x68] sm:$0xff]
        %v1974 = vld [vmem:[%s739 + $0x70] sm:$0xff]
        %v1975 = vld [vmem:[%s739 + $0x78] sm:$0xff]
        %v1976 = vld [vmem:[%s739 + $0x80] sm:$0xff]
        %v1977 = vld [vmem:[%s739 + $0x88] sm:$0xff]
        %v1978 = vld [vmem:[%s739 + $0x90] sm:$0xff]
        %v1979 = vld [vmem:[%s739 + $0x98] sm:$0xff]
        %v1980 = vld [vmem:[%s739 + $0xa0] sm:$0xff]
        %v1981 = vld [vmem:[%s739 + $0xa8] sm:$0xff]
        %v1982 = vld [vmem:[%s739 + $0xb0] sm:$0xff]
        %v1983 = vld [vmem:[%s739 + $0xb8] sm:$0xff]
        %v1984 = vld [vmem:[%s10] sm:$0xff]
        %v1985 = vld [vmem:[%s10 + $0x8] sm:$0xff]
        %v1986 = vld [vmem:[%s10 + $0x10] sm:$0xff]
        %v1987 = vld [vmem:[%s10 + $0x18] sm:$0xff]
        %v1988 = vld [vmem:[%s10 + $0x20] sm:$0xff]
        %v1989 = vld [vmem:[%s10 + $0x28] sm:$0xff]
        %v1990 = vld [vmem:[%s10 + $0x30] sm:$0xff]
        %v1991 = vld [vmem:[%s10 + $0x38] sm:$0xff]
        %v1992 = vld [vmem:[%s10 + $0x40] sm:$0xff]
        %v1993 = vld [vmem:[%s10 + $0x48] sm:$0xff]
        %v1994 = vld [vmem:[%s10 + $0x50] sm:$0xff]
        %v1995 = vld [vmem:[%s10 + $0x58] sm:$0xff]
        %v1996 = vld [vmem:[%s10 + $0x60] sm:$0xff]
        %v1997 = vld [vmem:[%s10 + $0x68] sm:$0xff]
        %v1998 = vld [vmem:[%s10 + $0x70] sm:$0xff]
        %v1999 = vld [vmem:[%s10 + $0x78] sm:$0xff]
        %v2000 = vld [vmem:[%s10 + $0x80] sm:$0xff]
        %v2001 = vld [vmem:[%s10 + $0x88] sm:$0xff]
        %v2002 = vld [vmem:[%s10 + $0x90] sm:$0xff]
        %v2003 = vld [vmem:[%s10 + $0x98] sm:$0xff]
        %v2004 = vld [vmem:[%s10 + $0xa0] sm:$0xff]
        %v2005 = vld [vmem:[%s10 + $0xa8] sm:$0xff]
        %v2006 = vld [vmem:[%s10 + $0xb0] sm:$0xff]
        %v2007 = vld [vmem:[%s10 + $0xb8] sm:$0xff]
        %v2008 = vld [vmem:[%s10 + $0xc0] sm:$0xff]
        %v2009 = vld [vmem:[%s10 + $0xc8] sm:$0xff]
        %v2010 = vld [vmem:[%s10 + $0xd0] sm:$0xff]
        %v2011 = vld [vmem:[%s10 + $0xd8] sm:$0xff]
        %v2012 = vld [vmem:[%s10 + $0xe0] sm:$0xff]
        %v2013 = vld [vmem:[%s10 + $0xe8] sm:$0xff]
        %v2014 = vld [vmem:[%s10 + $0xf0] sm:$0xff]
        %v2015 = vld [vmem:[%s10 + $0xf8] sm:$0xff]
        %v2016 = vld [vmem:[%s10 + $0x100] sm:$0xff]
        %v2017 = vld [vmem:[%s10 + $0x108] sm:$0xff]
        %v2018 = vld [vmem:[%s10 + $0x110] sm:$0xff]
        %v2019 = vld [vmem:[%s10 + $0x118] sm:$0xff]
        %v2020 = vld [vmem:[%s11] sm:$0x1]
        %v2022 = vlaneseq
        %v2023 = vshrl.u32 %v2022, 7
        %v2024 = vsub.s32 0, %v2023
        %v2025 = vrot.slane %v2020, %v2024
        %v2028 = vsel %vm740, %v1962, 0
        %v2031 = vsel %vm740, %v1965, 0
        %v2034 = vsel %vm740, %v1968, 0
        %v2037 = vsel %vm740, %v1971, 0
        %v2040 = vsel %vm740, %v1974, 0
        %v2043 = vsel %vm740, %v1977, 0
        %v2046 = vsel %vm740, %v1980, 0
        %v2049 = vsel %vm740, %v1983, 0
        %2051 = vmatprep.subr.mxu0 0.0
        %2052 = vmatpush1.msra.mxu0 %v1984
        %2053 = vmatprep.subr.mxu0 0.0
        %2054 = vmatpush1.msra.mxu0 %v1985
        %2055 = vmatprep.subr.mxu0 0.0
        %2056 = vmatpush1.msra.mxu0 %v1986
        %2057 = vmatprep.subr.mxu0 0.0
        %2058 = vmatpush1.msra.mxu0 %v1987
        %2059 = vmatprep.subr.mxu0 0.0
        %2060 = vmatpush1.msra.mxu0 %v1988
        %2061 = vmatprep.subr.mxu0 0.0
        %2062 = vmatpush1.msra.mxu0 %v1989
        %2063 = vmatprep.subr.mxu0 0.0
        %2064 = vmatpush1.msra.mxu0 %v1990
        %2065 = vmatprep.subr.mxu0 0.0
        %2066 = vmatpush1.msra.mxu0 %v1991
        %2067 = vmatprep.subr.mxu0 0.0
        %2068 = vmatpush1.msra.mxu0 %v1992
        %2069 = vmatprep.subr.mxu0 0.0
        %2070 = vmatpush1.msra.mxu0 %v1993
        %2071 = vmatprep.subr.mxu0 0.0
        %2072 = vmatpush1.msra.mxu0 %v1994
        %2073 = vmatprep.subr.mxu0 0.0
        %2074 = vmatpush1.msra.mxu0 %v1995
        %2075 = vmatprep.subr.mxu0 0.0
        %2076 = vmatpush1.msra.mxu0 %v1996
        %2077 = vmatprep.subr.mxu0 0.0
        %2078 = vmatpush1.msra.mxu0 %v1997
        %2079 = vmatprep.subr.mxu0 0.0
        %2080 = vmatpush1.msra.mxu0 %v1998
        %2081 = vmatprep.subr.mxu0 0.0
        %2082 = vmatpush1.msra.mxu0 %v1999
        %2083 = vmatprep.subr.mxu0 0.0
        %2084 = vmatpush1.msra.mxu0 %v2000
        %2085 = vmatprep.subr.mxu0 0.0
        %2086 = vmatpush1.msra.mxu0 %v2001
        %2087 = vmatprep.subr.mxu0 0.0
        %2088 = vmatpush1.msra.mxu0 %v2002
        %2089 = vmatprep.subr.mxu0 0.0
        %2090 = vmatpush1.msra.mxu0 %v2003
        %2091 = vmatprep.subr.mxu0 0.0
        %2092 = vmatpush1.msra.mxu0 %v2004
        %2093 = vmatprep.subr.mxu0 0.0
        %2094 = vmatpush1.msra.mxu0 %v2005
        %2095 = vmatprep.subr.mxu0 0.0
        %2096 = vmatpush1.msra.mxu0 %v2006
        %2097 = vmatprep.subr.mxu0 0.0
        %2098 = vmatpush1.msra.mxu0 %v2007
        %2099 = vmatprep.subr.mxu0 0.0
        %2100 = vmatpush1.msra.mxu0 %v2008
        %2101 = vmatprep.subr.mxu0 0.0
        %2102 = vmatpush1.msra.mxu0 %v2009
        %2103 = vmatprep.subr.mxu0 0.0
        %2104 = vmatpush1.msra.mxu0 %v2010
        %2105 = vmatprep.subr.mxu0 0.0
        %2106 = vmatpush1.msra.mxu0 %v2011
        %2107 = vmatprep.subr.mxu0 0.0
        %2108 = vmatpush1.msra.mxu0 %v2012
        %2109 = vmatprep.subr.mxu0 0.0
        %2110 = vmatpush1.msra.mxu0 %v2013
        %2111 = vmatprep.subr.mxu0 0.0
        %2112 = vmatpush1.msra.mxu0 %v2014
        %2113 = vmatprep.subr.mxu0 0.0
        %2114 = vmatpush1.msra.mxu0 %v2015
        %2115 = vmatprep.mubr.f32.mxu0 %v1961
        %2116 = vmatmul.mubr.f32.gmra.mrb[0].mxu0 %v1960
        %v2117 = vpop.f32.mrb[0].mxu0
        %v2118 = vadd.f32 %v2025, %v2117
        %v2119 = vpop.f32.mrb[0].mxu0
        %2120 = vmatprep.mubr.f32.mxu0 %v1964
        %2121 = vmatmul.mubr.f32.gmra.mrb[0].mxu0 %v1963
        %v2122 = vpop.f32.mrb[0].mxu0
        %v2123 = vadd.f32 %v2025, %v2122
        %v2124 = vpop.f32.mrb[0].mxu0
        %2125 = vmatprep.mubr.f32.mxu0 %v1967
        %2126 = vmatmul.mubr.f32.gmra.mrb[0].mxu0 %v1966
        %v2127 = vpop.f32.mrb[0].mxu0
        %v2128 = vadd.f32 %v2025, %v2127
        %v2129 = vpop.f32.mrb[0].mxu0
        %2130 = vmatprep.mubr.f32.mxu0 %v1970
        %2131 = vmatmul.mubr.f32.gmra.mrb[0].mxu0 %v1969
        %v2132 = vpop.f32.mrb[0].mxu0
        %v2133 = vadd.f32 %v2025, %v2132
        %v2134 = vpop.f32.mrb[0].mxu0
        %2135 = vmatprep.mubr.f32.mxu0 %v1973
        %2136 = vmatmul.mubr.f32.gmra.mrb[0].mxu0 %v1972
        %v2137 = vpop.f32.mrb[0].mxu0
        %v2138 = vadd.f32 %v2025, %v2137
        %v2139 = vpop.f32.mrb[0].mxu0
        %2140 = vmatprep.mubr.f32.mxu0 %v1976
        %2141 = vmatmul.mubr.f32.gmra.mrb[0].mxu0 %v1975
        %v2142 = vpop.f32.mrb[0].mxu0
        %v2143 = vadd.f32 %v2025, %v2142
        %v2144 = vpop.f32.mrb[0].mxu0
        %2145 = vmatprep.mubr.f32.mxu0 %v1979
        %2146 = vmatmul.mubr.f32.gmra.mrb[0].mxu0 %v1978
        %v2147 = vpop.f32.mrb[0].mxu0
        %v2148 = vadd.f32 %v2025, %v2147
        %v2149 = vpop.f32.mrb[0].mxu0
        %2150 = vmatprep.mubr.f32.mxu0 %v1982
        %2151 = vmatmul.mubr.f32.gmra.mrb[0].mxu0 %v1981
        %v2152 = vpop.f32.mrb[0].mxu0
        %v2153 = vadd.f32 %v2025, %v2152
        %v2154 = vpop.f32.mrb[0].mxu0
        %2155 = vdwg.mxu0
        %2156 = vmatprep.subr.mxu0 0.0
        %2157 = vmatpush1.msra.mxu0 %v2016
        %2158 = vmatprep.subr.mxu0 0.0
        %2159 = vmatpush1.msra.mxu0 %v2017
        %2160 = vmatprep.subr.mxu0 0.0
        %2161 = vmatpush1.msra.mxu0 %v2018
        %2162 = vmatprep.subr.mxu0 0.0
        %2163 = vmatpush1.msra.mxu0 %v2019
        %2164 = vmatprep.subr.mxu0 0.0
        %2165 = vmatpush1.msra.mxu0 0.0
        %2166 = vmatprep.subr.mxu0 0.0
        %2167 = vmatpush1.msra.mxu0 0.0
        %2168 = vmatprep.subr.mxu0 0.0
        %2169 = vmatpush1.msra.mxu0 0.0
        %2170 = vmatprep.subr.mxu0 0.0
        %2171 = vmatpush1.msra.mxu0 0.0
        %2172 = vmatprep.subr.mxu0 0.0
        %2173 = vmatpush1.msra.mxu0 0.0
        %2174 = vmatprep.subr.mxu0 0.0
        %2175 = vmatpush1.msra.mxu0 0.0
        %2176 = vmatprep.subr.mxu0 0.0
        %2177 = vmatpush1.msra.mxu0 0.0
        %2178 = vmatprep.subr.mxu0 0.0
        %2179 = vmatpush1.msra.mxu0 0.0
        %2180 = vmatprep.subr.mxu0 0.0
        %2181 = vmatpush1.msra.mxu0 0.0
        %2182 = vmatprep.subr.mxu0 0.0
        %2183 = vmatpush1.msra.mxu0 0.0
        %2184 = vmatprep.subr.mxu0 0.0
        %2185 = vmatpush1.msra.mxu0 0.0
        %2186 = vmatprep.subr.mxu0 0.0
        %2187 = vmatpush1.msra.mxu0 0.0
        %2188 = vmatprep.subr.mxu0 0.0
        %2189 = vmatpush1.msra.mxu0 0.0
        %2190 = vmatprep.subr.mxu0 0.0
        %2191 = vmatpush1.msra.mxu0 0.0
        %2192 = vmatprep.subr.mxu0 0.0
        %2193 = vmatpush1.msra.mxu0 0.0
        %2194 = vmatprep.subr.mxu0 0.0
        %2195 = vmatpush1.msra.mxu0 0.0
        %2196 = vmatprep.subr.mxu0 0.0
        %2197 = vmatpush1.msra.mxu0 0.0
        %2198 = vmatprep.subr.mxu0 0.0
        %2199 = vmatpush1.msra.mxu0 0.0
        %2200 = vmatprep.subr.mxu0 0.0
        %2201 = vmatpush1.msra.mxu0 0.0
        %2202 = vmatprep.subr.mxu0 0.0
        %2203 = vmatpush1.msra.mxu0 0.0
        %2204 = vmatprep.subr.mxu0 0.0
        %2205 = vmatpush1.msra.mxu0 0.0
        %2206 = vmatprep.subr.mxu0 0.0
        %2207 = vmatpush1.msra.mxu0 0.0
        %2208 = vmatprep.subr.mxu0 0.0
        %2209 = vmatpush1.msra.mxu0 0.0
        %2210 = vmatprep.subr.mxu0 0.0
        %2211 = vmatpush1.msra.mxu0 0.0
        %2212 = vmatprep.subr.mxu0 0.0
        %2213 = vmatpush1.msra.mxu0 0.0
        %2214 = vmatprep.subr.mxu0 0.0
        %2215 = vmatpush1.msra.mxu0 0.0
        %2216 = vmatprep.subr.mxu0 0.0
        %2217 = vmatpush1.msra.mxu0 0.0
        %2218 = vmatprep.subr.mxu0 0.0
        %2219 = vmatpush1.msra.mxu0 0.0
        %2220 = vmatprep.mubr.f32.mxu0 0.0
        %2221 = vmatmul.mubr.f32.gmra.mrb[0].mxu0 %v2028
        %v2222 = vpop.f32.mrb[0].mxu0
        %v2223 = vadd.f32 %v2118, %v2222
        %v2224 = vpop.f32.mrb[0].mxu0
        %2225 = vmatprep.mubr.f32.mxu0 0.0
        %2226 = vmatmul.mubr.f32.gmra.mrb[0].mxu0 %v2031
        %v2227 = vpop.f32.mrb[0].mxu0
        %v2228 = vadd.f32 %v2123, %v2227
        %v2229 = vpop.f32.mrb[0].mxu0
        %2230 = vmatprep.mubr.f32.mxu0 0.0
        %2231 = vmatmul.mubr.f32.gmra.mrb[0].mxu0 %v2034
        %v2232 = vpop.f32.mrb[0].mxu0
        %v2233 = vadd.f32 %v2128, %v2232
        %v2234 = vpop.f32.mrb[0].mxu0
        %2235 = vmatprep.mubr.f32.mxu0 0.0
        %2236 = vmatmul.mubr.f32.gmra.mrb[0].mxu0 %v2037
        %v2237 = vpop.f32.mrb[0].mxu0
        %v2238 = vadd.f32 %v2133, %v2237
        %v2239 = vpop.f32.mrb[0].mxu0
        %2240 = vmatprep.mubr.f32.mxu0 0.0
        %2241 = vmatmul.mubr.f32.gmra.mrb[0].mxu0 %v2040
        %v2242 = vpop.f32.mrb[0].mxu0
        %v2243 = vadd.f32 %v2138, %v2242
        %v2244 = vpop.f32.mrb[0].mxu0
        %2245 = vmatprep.mubr.f32.mxu0 0.0
        %2246 = vmatmul.mubr.f32.gmra.mrb[0].mxu0 %v2043
        %v2247 = vpop.f32.mrb[0].mxu0
        %v2248 = vadd.f32 %v2143, %v2247
        %v2249 = vpop.f32.mrb[0].mxu0
        %2250 = vmatprep.mubr.f32.mxu0 0.0
        %2251 = vmatmul.mubr.f32.gmra.mrb[0].mxu0 %v2046
        %v2252 = vpop.f32.mrb[0].mxu0
        %v2253 = vadd.f32 %v2148, %v2252
        %v2254 = vpop.f32.mrb[0].mxu0
        %2255 = vmatprep.mubr.f32.mxu0 0.0
        %2256 = vmatmul.mubr.f32.gmra.mrb[0].mxu0 %v2049
        %v2257 = vpop.f32.mrb[0].mxu0
        %v2258 = vadd.f32 %v2153, %v2257
        %v2259 = vpop.f32.mrb[0].mxu0
        %2260 = vdwg.mxu0
        %v2261 = vld [vmem:[%s12] sm:$0x1]
        %v2263 = vlaneseq
        %v2264 = vshrl.u32 %v2263, 7
        %v2265 = vsub.s32 0, %v2264
        %v2266 = vrot.slane %v2261, %v2265
        %v2268 = vmul.f32 %v2223, %v2266
        %v2269 = vmul.f32 %v2228, %v2266
        %v2270 = vmul.f32 %v2233, %v2266
        %v2271 = vmul.f32 %v2238, %v2266
        %v2272 = vmul.f32 %v2243, %v2266
        %v2273 = vmul.f32 %v2248, %v2266
        %v2274 = vmul.f32 %v2253, %v2266
        %v2275 = vmul.f32 %v2258, %v2266
        %v2276 = vld [vmem:[%s13] sm:$0x1]
        %v2278 = vlaneseq
        %v2279 = vshrl.u32 %v2278, 7
        %v2280 = vsub.s32 0, %v2279
        %v2281 = vrot.slane %v2276, %v2280
        %v2283 = vadd.f32 %v2268, %v2281
        %v2284 = vadd.f32 %v2269, %v2281
        %v2285 = vadd.f32 %v2270, %v2281
        %v2286 = vadd.f32 %v2271, %v2281
        %v2287 = vadd.f32 %v2272, %v2281
        %v2288 = vadd.f32 %v2273, %v2281
        %v2289 = vadd.f32 %v2274, %v2281
        %v2290 = vadd.f32 %v2275, %v2281
        %v2291 = vmax.f32 %v2283, 0.0
        %v2292 = vmax.f32 %v2284, 0.0
        %v2293 = vmax.f32 %v2285, 0.0
        %v2294 = vmax.f32 %v2286, 0.0
        %v2295 = vmax.f32 %v2287, 0.0
        %v2296 = vmax.f32 %v2288, 0.0
        %v2297 = vmax.f32 %v2289, 0.0
        %v2298 = vmax.f32 %v2290, 0.0
        %2299 = vst.msk [vmem:[%s1101 + $0x1] sm:$0xff] %vm740, %v2291
        %2300 = vst.msk [vmem:[%s1101 + $0x11] sm:$0xff] %vm740, %v2292
        %2301 = vst.msk [vmem:[%s1101 + $0x21] sm:$0xff] %vm740, %v2293
        %2302 = vst.msk [vmem:[%s1101 + $0x31] sm:$0xff] %vm740, %v2294
        %2303 = vst.msk [vmem:[%s1101 + $0x41] sm:$0xff] %vm740, %v2295
        %2304 = vst.msk [vmem:[%s1101 + $0x51] sm:$0xff] %vm740, %v2296
        %2305 = vst.msk [vmem:[%s1101 + $0x61] sm:$0xff] %vm740, %v2297
        %2306 = vst.msk [vmem:[%s1101 + $0x71] sm:$0xff] %vm740, %v2298
        %v2307 = vld [vmem:[#allocation2] sm:$0xff]
        %v2308 = vld [vmem:[#allocation2 + $0x8] sm:$0x3]
        %v2309 = vld [vmem:[#allocation2 + $0x10] sm:$0xff]
        %v2310 = vld [vmem:[#allocation2 + $0x18] sm:$0x3]
        %v2311 = vld [vmem:[#allocation2 + $0x20] sm:$0xff]
        %v2312 = vld [vmem:[#allocation2 + $0x28] sm:$0x3]
        %v2313 = vld [vmem:[#allocation2 + $0x30] sm:$0xff]
        %v2314 = vld [vmem:[#allocation2 + $0x38] sm:$0x3]
        %v2315 = vld [vmem:[#allocation2 + $0x40] sm:$0xff]
        %v2316 = vld [vmem:[#allocation2 + $0x48] sm:$0x3]
        %v2317 = vld [vmem:[#allocation2 + $0x50] sm:$0xff]
        %v2318 = vld [vmem:[#allocation2 + $0x58] sm:$0x3]
        %v2319 = vld [vmem:[#allocation2 + $0x60] sm:$0xff]
        %v2320 = vld [vmem:[#allocation2 + $0x68] sm:$0x3]
        %v2321 = vld [vmem:[#allocation2 + $0x70] sm:$0xff]
        %v2322 = vld [vmem:[#allocation2 + $0x78] sm:$0x3]
        %v2323 = vld [vmem:[#allocation2 + $0x80] sm:$0xff]
        %v2324 = vld [vmem:[#allocation2 + $0x88] sm:$0x3]
        %v2325 = vld [vmem:[#allocation2 + $0x90] sm:$0xff]
        %v2326 = vld [vmem:[#allocation2 + $0x98] sm:$0x3]
        %v2343 = vrot.slane %v2307, 1
        %v2344 = vrot.slane %v2308, 1
        %v2345 = vsel %vm1146, %v2343, %v2344
        %v2346 = vrot.slane %v2309, 1
        %v2347 = vrot.slane %v2310, 1
        %v2348 = vsel %vm1146, %v2346, %v2347
        %v2349 = vrot.slane %v2311, 1
        %v2350 = vrot.slane %v2312, 1
        %v2351 = vsel %vm1146, %v2349, %v2350
        %v2352 = vrot.slane %v2313, 1
        %v2353 = vrot.slane %v2314, 1
        %v2354 = vsel %vm1146, %v2352, %v2353
        %v2355 = vrot.slane %v2315, 1
        %v2356 = vrot.slane %v2316, 1
        %v2357 = vsel %vm1146, %v2355, %v2356
        %v2358 = vrot.slane %v2317, 1
        %v2359 = vrot.slane %v2318, 1
        %v2360 = vsel %vm1146, %v2358, %v2359
        %v2361 = vrot.slane %v2319, 1
        %v2362 = vrot.slane %v2320, 1
        %v2363 = vsel %vm1146, %v2361, %v2362
        %v2364 = vrot.slane %v2321, 1
        %v2365 = vrot.slane %v2322, 1
        %v2366 = vsel %vm1146, %v2364, %v2365
        %v2367 = vrot.slane %v2307, 2
        %v2368 = vrot.slane %v2308, 2
        %v2369 = vsel %vm1171, %v2367, %v2368
        %v2370 = vrot.slane %v2309, 2
        %v2371 = vrot.slane %v2310, 2
        %v2372 = vsel %vm1171, %v2370, %v2371
        %v2373 = vrot.slane %v2311, 2
        %v2374 = vrot.slane %v2312, 2
        %v2375 = vsel %vm1171, %v2373, %v2374
        %v2376 = vrot.slane %v2313, 2
        %v2377 = vrot.slane %v2314, 2
        %v2378 = vsel %vm1171, %v2376, %v2377
        %v2379 = vrot.slane %v2315, 2
        %v2380 = vrot.slane %v2316, 2
        %v2381 = vsel %vm1171, %v2379, %v2380
        %v2382 = vrot.slane %v2317, 2
        %v2383 = vrot.slane %v2318, 2
        %v2384 = vsel %vm1171, %v2382, %v2383
        %v2385 = vrot.slane %v2319, 2
        %v2386 = vrot.slane %v2320, 2
        %v2387 = vsel %vm1171, %v2385, %v2386
        %v2388 = vrot.slane %v2321, 2
        %v2389 = vrot.slane %v2322, 2
        %v2390 = vsel %vm1171, %v2388, %v2389
        %v2393 = vrot.slane %v2323, 1
        %v2394 = vrot.slane %v2324, 1
        %v2395 = vsel %vm1146, %v2393, %v2394
        %v2404 = vrot.slane %v2323, 2
        %v2405 = vrot.slane %v2324, 2
        %v2406 = vsel %vm1171, %v2404, %v2405
        %v2409 = vrot.slane %v2325, 1
        %v2410 = vrot.slane %v2326, 1
        %v2411 = vsel %vm1146, %v2409, %v2410
        %v2412 = vrot.slane %v2325, 2
        %v2413 = vrot.slane %v2326, 2
        %v2414 = vsel %vm1171, %v2412, %v2413
        %2415 = vrot.lane.b32.xlu0 %v2345, 32
        %v2416 = vpop.permute.xlu0 %2415
        %2417 = vrot.lane.b32.xlu0 %v2348, 32
        %v2418 = vpop.permute.xlu0 %2417
        %2419 = vrot.lane.b32.xlu0 %v2351, 32
        %v2420 = vpop.permute.xlu0 %2419
        %2421 = vrot.lane.b32.xlu0 %v2354, 32
        %v2422 = vpop.permute.xlu0 %2421
        %2423 = vrot.lane.b32.xlu0 %v2357, 32
        %v2424 = vpop.permute.xlu0 %2423
        %2425 = vrot.lane.b32.xlu0 %v2360, 32
        %v2426 = vpop.permute.xlu0 %2425
        %2427 = vrot.lane.b32.xlu0 %v2363, 32
        %v2428 = vpop.permute.xlu0 %2427
        %2429 = vrot.lane.b32.xlu0 %v2366, 32
        %v2430 = vpop.permute.xlu0 %2429
        %2439 = vrot.lane.b32.xlu0 %v2369, 64
        %v2440 = vpop.permute.xlu0 %2439
        %2441 = vrot.lane.b32.xlu0 %v2372, 64
        %v2442 = vpop.permute.xlu0 %2441
        %2443 = vrot.lane.b32.xlu0 %v2375, 64
        %v2444 = vpop.permute.xlu0 %2443
        %2445 = vrot.lane.b32.xlu0 %v2378, 64
        %v2446 = vpop.permute.xlu0 %2445
        %2447 = vrot.lane.b32.xlu0 %v2381, 64
        %v2448 = vpop.permute.xlu0 %2447
        %2449 = vrot.lane.b32.xlu0 %v2384, 64
        %v2450 = vpop.permute.xlu0 %2449
        %2451 = vrot.lane.b32.xlu0 %v2387, 64
        %v2452 = vpop.permute.xlu0 %2451
        %2453 = vrot.lane.b32.xlu0 %v2390, 64
        %v2454 = vpop.permute.xlu0 %2453
        %2463 = vrot.lane.b32.xlu0 %v2309, 96
        %v2464 = vpop.permute.xlu0 %2463
        %2465 = vrot.lane.b32.xlu0 %v2311, 96
        %v2466 = vpop.permute.xlu0 %2465
        %2467 = vrot.lane.b32.xlu0 %v2313, 96
        %v2468 = vpop.permute.xlu0 %2467
        %2469 = vrot.lane.b32.xlu0 %v2315, 96
        %v2470 = vpop.permute.xlu0 %2469
        %2471 = vrot.lane.b32.xlu0 %v2317, 96
        %v2472 = vpop.permute.xlu0 %2471
        %2473 = vrot.lane.b32.xlu0 %v2319, 96
        %v2474 = vpop.permute.xlu0 %2473
        %2475 = vrot.lane.b32.xlu0 %v2321, 96
        %v2476 = vpop.permute.xlu0 %2475
        %2477 = vrot.lane.b32.xlu0 %v2323, 96
        %v2478 = vpop.permute.xlu0 %2477
        %2487 = vrot.lane.b32.xlu0 %v2372, 32
        %v2488 = vpop.permute.xlu0 %2487
        %2489 = vrot.lane.b32.xlu0 %v2375, 32
        %v2490 = vpop.permute.xlu0 %2489
        %2491 = vrot.lane.b32.xlu0 %v2378, 32
        %v2492 = vpop.permute.xlu0 %2491
        %2493 = vrot.lane.b32.xlu0 %v2381, 32
        %v2494 = vpop.permute.xlu0 %2493
        %2495 = vrot.lane.b32.xlu0 %v2384, 32
        %v2496 = vpop.permute.xlu0 %2495
        %2497 = vrot.lane.b32.xlu0 %v2387, 32
        %v2498 = vpop.permute.xlu0 %2497
        %2499 = vrot.lane.b32.xlu0 %v2390, 32
        %v2500 = vpop.permute.xlu0 %2499
        %2501 = vrot.lane.b32.xlu0 %v2406, 32
        %v2502 = vpop.permute.xlu0 %2501
        %2511 = vrot.lane.b32.xlu0 %v2311, 64
        %v2512 = vpop.permute.xlu0 %2511
        %2513 = vrot.lane.b32.xlu0 %v2313, 64
        %v2514 = vpop.permute.xlu0 %2513
        %2515 = vrot.lane.b32.xlu0 %v2315, 64
        %v2516 = vpop.permute.xlu0 %2515
        %2517 = vrot.lane.b32.xlu0 %v2317, 64
        %v2518 = vpop.permute.xlu0 %2517
        %2519 = vrot.lane.b32.xlu0 %v2319, 64
        %v2520 = vpop.permute.xlu0 %2519
        %2521 = vrot.lane.b32.xlu0 %v2321, 64
        %v2522 = vpop.permute.xlu0 %2521
        %2523 = vrot.lane.b32.xlu0 %v2323, 64
        %v2524 = vpop.permute.xlu0 %2523
        %2525 = vrot.lane.b32.xlu0 %v2325, 64
        %v2526 = vpop.permute.xlu0 %2525
        %2535 = vrot.lane.b32.xlu0 %v2351, 96
        %v2536 = vpop.permute.xlu0 %2535
        %2537 = vrot.lane.b32.xlu0 %v2354, 96
        %v2538 = vpop.permute.xlu0 %2537
        %2539 = vrot.lane.b32.xlu0 %v2357, 96
        %v2540 = vpop.permute.xlu0 %2539
        %2541 = vrot.lane.b32.xlu0 %v2360, 96
        %v2542 = vpop.permute.xlu0 %2541
        %2543 = vrot.lane.b32.xlu0 %v2363, 96
        %v2544 = vpop.permute.xlu0 %2543
        %2545 = vrot.lane.b32.xlu0 %v2366, 96
        %v2546 = vpop.permute.xlu0 %2545
        %2547 = vrot.lane.b32.xlu0 %v2395, 96
        %v2548 = vpop.permute.xlu0 %2547
        %2549 = vrot.lane.b32.xlu0 %v2411, 96
        %v2550 = vpop.permute.xlu0 %2549
        %v2559 = vsel %vm740, %v2307, %v2416
        %v2560 = vsel %vm740, %v2309, %v2418
        %v2561 = vsel %vm740, %v2311, %v2420
        %v2562 = vsel %vm740, %v2313, %v2422
        %v2563 = vsel %vm740, %v2315, %v2424
        %v2564 = vsel %vm740, %v2317, %v2426
        %v2565 = vsel %vm740, %v2319, %v2428
        %v2566 = vsel %vm740, %v2321, %v2430
        %v2567 = vsel %vm1372, %v2559, %v2440
        %v2568 = vsel %vm1372, %v2560, %v2442
        %v2569 = vsel %vm1372, %v2561, %v2444
        %v2570 = vsel %vm1372, %v2562, %v2446
        %v2571 = vsel %vm1372, %v2563, %v2448
        %v2572 = vsel %vm1372, %v2564, %v2450
        %v2573 = vsel %vm1372, %v2565, %v2452
        %v2574 = vsel %vm1372, %v2566, %v2454
        %v2575 = vsel %vm1381, %v2567, %v2464
        %v2576 = vsel %vm1381, %v2568, %v2466
        %v2577 = vsel %vm1381, %v2569, %v2468
        %v2578 = vsel %vm1381, %v2570, %v2470
        %v2579 = vsel %vm1381, %v2571, %v2472
        %v2580 = vsel %vm1381, %v2572, %v2474
        %v2581 = vsel %vm1381, %v2573, %v2476
        %v2582 = vsel %vm1381, %v2574, %v2478
        %v2583 = vsel %vm740, %v2348, %v2488
        %v2584 = vsel %vm740, %v2351, %v2490
        %v2585 = vsel %vm740, %v2354, %v2492
        %v2586 = vsel %vm740, %v2357, %v2494
        %v2587 = vsel %vm740, %v2360, %v2496
        %v2588 = vsel %vm740, %v2363, %v2498
        %v2589 = vsel %vm740, %v2366, %v2500
        %v2590 = vsel %vm740, %v2395, %v2502
        %v2591 = vsel %vm1372, %v2583, %v2512
        %v2592 = vsel %vm1372, %v2584, %v2514
        %v2593 = vsel %vm1372, %v2585, %v2516
        %v2594 = vsel %vm1372, %v2586, %v2518
        %v2595 = vsel %vm1372, %v2587, %v2520
        %v2596 = vsel %vm1372, %v2588, %v2522
        %v2597 = vsel %vm1372, %v2589, %v2524
        %v2598 = vsel %vm1372, %v2590, %v2526
        %v2599 = vsel %vm1381, %v2591, %v2536
        %v2600 = vsel %vm1381, %v2592, %v2538
        %v2601 = vsel %vm1381, %v2593, %v2540
        %v2602 = vsel %vm1381, %v2594, %v2542
        %v2603 = vsel %vm1381, %v2595, %v2544
        %v2604 = vsel %vm1381, %v2596, %v2546
        %v2605 = vsel %vm1381, %v2597, %v2548
        %v2606 = vsel %vm1381, %v2598, %v2550
        %v2607 = vld [vmem:[%s14] sm:$0xff]
        %v2608 = vld [vmem:[%s14 + $0x8] sm:$0xff]
        %v2609 = vld [vmem:[%s14 + $0x10] sm:$0xff]
        %v2610 = vld [vmem:[%s14 + $0x18] sm:$0xff]
        %v2611 = vld [vmem:[%s14 + $0x20] sm:$0xff]
        %v2612 = vld [vmem:[%s14 + $0x28] sm:$0xff]
        %v2613 = vld [vmem:[%s14 + $0x30] sm:$0xff]
        %v2614 = vld [vmem:[%s14 + $0x38] sm:$0xff]
        %v2615 = vld [vmem:[%s14 + $0x40] sm:$0xff]
        %v2616 = vld [vmem:[%s14 + $0x48] sm:$0xff]
        %v2617 = vld [vmem:[%s14 + $0x50] sm:$0xff]
        %v2618 = vld [vmem:[%s14 + $0x58] sm:$0xff]
        %v2619 = vld [vmem:[%s14 + $0x60] sm:$0xff]
        %v2620 = vld [vmem:[%s14 + $0x68] sm:$0xff]
        %v2621 = vld [vmem:[%s14 + $0x70] sm:$0xff]
        %v2622 = vld [vmem:[%s14 + $0x78] sm:$0xff]
        %v2623 = vld [vmem:[%s14 + $0x80] sm:$0xff]
        %v2624 = vld [vmem:[%s14 + $0x88] sm:$0xff]
        %v2625 = vld [vmem:[%s14 + $0x90] sm:$0xff]
        %v2626 = vld [vmem:[%s14 + $0x98] sm:$0xff]
        %v2627 = vld [vmem:[%s14 + $0xa0] sm:$0xff]
        %v2628 = vld [vmem:[%s14 + $0xa8] sm:$0xff]
        %v2629 = vld [vmem:[%s14 + $0xb0] sm:$0xff]
        %v2630 = vld [vmem:[%s14 + $0xb8] sm:$0xff]
        %v2631 = vld [vmem:[%s14 + $0xc0] sm:$0xff]
        %v2632 = vld [vmem:[%s14 + $0xc8] sm:$0xff]
        %v2633 = vld [vmem:[%s14 + $0xd0] sm:$0xff]
        %v2634 = vld [vmem:[%s14 + $0xd8] sm:$0xff]
        %v2635 = vld [vmem:[%s14 + $0xe0] sm:$0xff]
        %v2636 = vld [vmem:[%s14 + $0xe8] sm:$0xff]
        %v2637 = vld [vmem:[%s14 + $0xf0] sm:$0xff]
        %v2638 = vld [vmem:[%s14 + $0xf8] sm:$0xff]
        %v2639 = vld [vmem:[%s14 + $0x100] sm:$0xff]
        %v2640 = vld [vmem:[%s14 + $0x108] sm:$0xff]
        %v2641 = vld [vmem:[%s14 + $0x110] sm:$0xff]
        %v2642 = vld [vmem:[%s14 + $0x118] sm:$0xff]
        %v2643 = vld [vmem:[%s15] sm:$0x1]
        %v2645 = vlaneseq
        %v2646 = vshrl.u32 %v2645, 7
        %v2647 = vsub.s32 0, %v2646
        %v2648 = vrot.slane %v2643, %v2647
        %v2650 = vsel %vm740, %v2375, 0
        %v2652 = vsel %vm740, %v2378, 0
        %v2654 = vsel %vm740, %v2381, 0
        %v2656 = vsel %vm740, %v2384, 0
        %v2658 = vsel %vm740, %v2387, 0
        %v2660 = vsel %vm740, %v2390, 0
        %v2662 = vsel %vm740, %v2406, 0
        %v2664 = vsel %vm740, %v2414, 0
        %2666 = vmatprep.subr.mxu0 0.0
        %2667 = vmatpush1.msra.mxu0 %v2607
        %2668 = vmatprep.subr.mxu0 0.0
        %2669 = vmatpush1.msra.mxu0 %v2608
        %2670 = vmatprep.subr.mxu0 0.0
        %2671 = vmatpush1.msra.mxu0 %v2609
        %2672 = vmatprep.subr.mxu0 0.0
        %2673 = vmatpush1.msra.mxu0 %v2610
        %2674 = vmatprep.subr.mxu0 0.0
        %2675 = vmatpush1.msra.mxu0 %v2611
        %2676 = vmatprep.subr.mxu0 0.0
        %2677 = vmatpush1.msra.mxu0 %v2612
        %2678 = vmatprep.subr.mxu0 0.0
        %2679 = vmatpush1.msra.mxu0 %v2613
        %2680 = vmatprep.subr.mxu0 0.0
        %2681 = vmatpush1.msra.mxu0 %v2614
        %2682 = vmatprep.subr.mxu0 0.0
        %2683 = vmatpush1.msra.mxu0 %v2615
        %2684 = vmatprep.subr.mxu0 0.0
        %2685 = vmatpush1.msra.mxu0 %v2616
        %2686 = vmatprep.subr.mxu0 0.0
        %2687 = vmatpush1.msra.mxu0 %v2617
        %2688 = vmatprep.subr.mxu0 0.0
        %2689 = vmatpush1.msra.mxu0 %v2618
        %2690 = vmatprep.subr.mxu0 0.0
        %2691 = vmatpush1.msra.mxu0 %v2619
        %2692 = vmatprep.subr.mxu0 0.0
        %2693 = vmatpush1.msra.mxu0 %v2620
        %2694 = vmatprep.subr.mxu0 0.0
        %2695 = vmatpush1.msra.mxu0 %v2621
        %2696 = vmatprep.subr.mxu0 0.0
        %2697 = vmatpush1.msra.mxu0 %v2622
        %2698 = vmatprep.subr.mxu0 0.0
        %2699 = vmatpush1.msra.mxu0 %v2623
        %2700 = vmatprep.subr.mxu0 0.0
        %2701 = vmatpush1.msra.mxu0 %v2624
        %2702 = vmatprep.subr.mxu0 0.0
        %2703 = vmatpush1.msra.mxu0 %v2625
        %2704 = vmatprep.subr.mxu0 0.0
        %2705 = vmatpush1.msra.mxu0 %v2626
        %2706 = vmatprep.subr.mxu0 0.0
        %2707 = vmatpush1.msra.mxu0 %v2627
        %2708 = vmatprep.subr.mxu0 0.0
        %2709 = vmatpush1.msra.mxu0 %v2628
        %2710 = vmatprep.subr.mxu0 0.0
        %2711 = vmatpush1.msra.mxu0 %v2629
        %2712 = vmatprep.subr.mxu0 0.0
        %2713 = vmatpush1.msra.mxu0 %v2630
        %2714 = vmatprep.subr.mxu0 0.0
        %2715 = vmatpush1.msra.mxu0 %v2631
        %2716 = vmatprep.subr.mxu0 0.0
        %2717 = vmatpush1.msra.mxu0 %v2632
        %2718 = vmatprep.subr.mxu0 0.0
        %2719 = vmatpush1.msra.mxu0 %v2633
        %2720 = vmatprep.subr.mxu0 0.0
        %2721 = vmatpush1.msra.mxu0 %v2634
        %2722 = vmatprep.subr.mxu0 0.0
        %2723 = vmatpush1.msra.mxu0 %v2635
        %2724 = vmatprep.subr.mxu0 0.0
        %2725 = vmatpush1.msra.mxu0 %v2636
        %2726 = vmatprep.subr.mxu0 0.0
        %2727 = vmatpush1.msra.mxu0 %v2637
        %2728 = vmatprep.subr.mxu0 0.0
        %2729 = vmatpush1.msra.mxu0 %v2638
        %2730 = vmatprep.mubr.f32.mxu0 %v2599
        %2731 = vmatmul.mubr.f32.gmra.mrb[0].mxu0 %v2575
        %v2732 = vpop.f32.mrb[0].mxu0
        %v2733 = vadd.f32 %v2648, %v2732
        %v2734 = vpop.f32.mrb[0].mxu0
        %2735 = vmatprep.mubr.f32.mxu0 %v2600
        %2736 = vmatmul.mubr.f32.gmra.mrb[0].mxu0 %v2576
        %v2737 = vpop.f32.mrb[0].mxu0
        %v2738 = vadd.f32 %v2648, %v2737
        %v2739 = vpop.f32.mrb[0].mxu0
        %2740 = vmatprep.mubr.f32.mxu0 %v2601
        %2741 = vmatmul.mubr.f32.gmra.mrb[0].mxu0 %v2577
        %v2742 = vpop.f32.mrb[0].mxu0
        %v2743 = vadd.f32 %v2648, %v2742
        %v2744 = vpop.f32.mrb[0].mxu0
        %2745 = vmatprep.mubr.f32.mxu0 %v2602
        %2746 = vmatmul.mubr.f32.gmra.mrb[0].mxu0 %v2578
        %v2747 = vpop.f32.mrb[0].mxu0
        %v2748 = vadd.f32 %v2648, %v2747
        %v2749 = vpop.f32.mrb[0].mxu0
        %2750 = vmatprep.mubr.f32.mxu0 %v2603
        %2751 = vmatmul.mubr.f32.gmra.mrb[0].mxu0 %v2579
        %v2752 = vpop.f32.mrb[0].mxu0
        %v2753 = vadd.f32 %v2648, %v2752
        %v2754 = vpop.f32.mrb[0].mxu0
        %2755 = vmatprep.mubr.f32.mxu0 %v2604
        %2756 = vmatmul.mubr.f32.gmra.mrb[0].mxu0 %v2580
        %v2757 = vpop.f32.mrb[0].mxu0
        %v2758 = vadd.f32 %v2648, %v2757
        %v2759 = vpop.f32.mrb[0].mxu0
        %2760 = vmatprep.mubr.f32.mxu0 %v2605
        %2761 = vmatmul.mubr.f32.gmra.mrb[0].mxu0 %v2581
        %v2762 = vpop.f32.mrb[0].mxu0
        %v2763 = vadd.f32 %v2648, %v2762
        %v2764 = vpop.f32.mrb[0].mxu0
        %2765 = vmatprep.mubr.f32.mxu0 %v2606
        %2766 = vmatmul.mubr.f32.gmra.mrb[0].mxu0 %v2582
        %v2767 = vpop.f32.mrb[0].mxu0
        %v2768 = vadd.f32 %v2648, %v2767
        %v2769 = vpop.f32.mrb[0].mxu0
        %2770 = vdwg.mxu0
        %2771 = vmatprep.subr.mxu0 0.0
        %2772 = vmatpush1.msra.mxu0 %v2639
        %2773 = vmatprep.subr.mxu0 0.0
        %2774 = vmatpush1.msra.mxu0 %v2640
        %2775 = vmatprep.subr.mxu0 0.0
        %2776 = vmatpush1.msra.mxu0 %v2641
        %2777 = vmatprep.subr.mxu0 0.0
        %2778 = vmatpush1.msra.mxu0 %v2642
        %2779 = vmatprep.subr.mxu0 0.0
        %2780 = vmatpush1.msra.mxu0 0.0
        %2781 = vmatprep.subr.mxu0 0.0
        %2782 = vmatpush1.msra.mxu0 0.0
        %2783 = vmatprep.subr.mxu0 0.0
        %2784 = vmatpush1.msra.mxu0 0.0
        %2785 = vmatprep.subr.mxu0 0.0
        %2786 = vmatpush1.msra.mxu0 0.0
        %2787 = vmatprep.subr.mxu0 0.0
        %2788 = vmatpush1.msra.mxu0 0.0
        %2789 = vmatprep.subr.mxu0 0.0
        %2790 = vmatpush1.msra.mxu0 0.0
        %2791 = vmatprep.subr.mxu0 0.0
        %2792 = vmatpush1.msra.mxu0 0.0
        %2793 = vmatprep.subr.mxu0 0.0
        %2794 = vmatpush1.msra.mxu0 0.0
        %2795 = vmatprep.subr.mxu0 0.0
        %2796 = vmatpush1.msra.mxu0 0.0
        %2797 = vmatprep.subr.mxu0 0.0
        %2798 = vmatpush1.msra.mxu0 0.0
        %2799 = vmatprep.subr.mxu0 0.0
        %2800 = vmatpush1.msra.mxu0 0.0
        %2801 = vmatprep.subr.mxu0 0.0
        %2802 = vmatpush1.msra.mxu0 0.0
        %2803 = vmatprep.subr.mxu0 0.0
        %2804 = vmatpush1.msra.mxu0 0.0
        %2805 = vmatprep.subr.mxu0 0.0
        %2806 = vmatpush1.msra.mxu0 0.0
        %2807 = vmatprep.subr.mxu0 0.0
        %2808 = vmatpush1.msra.mxu0 0.0
        %2809 = vmatprep.subr.mxu0 0.0
        %2810 = vmatpush1.msra.mxu0 0.0
        %2811 = vmatprep.subr.mxu0 0.0
        %2812 = vmatpush1.msra.mxu0 0.0
        %2813 = vmatprep.subr.mxu0 0.0
        %2814 = vmatpush1.msra.mxu0 0.0
        %2815 = vmatprep.subr.mxu0 0.0
        %2816 = vmatpush1.msra.mxu0 0.0
        %2817 = vmatprep.subr.mxu0 0.0
        %2818 = vmatpush1.msra.mxu0 0.0
        %2819 = vmatprep.subr.mxu0 0.0
        %2820 = vmatpush1.msra.mxu0 0.0
        %2821 = vmatprep.subr.mxu0 0.0
        %2822 = vmatpush1.msra.mxu0 0.0
        %2823 = vmatprep.subr.mxu0 0.0
        %2824 = vmatpush1.msra.mxu0 0.0
        %2825 = vmatprep.subr.mxu0 0.0
        %2826 = vmatpush1.msra.mxu0 0.0
        %2827 = vmatprep.subr.mxu0 0.0
        %2828 = vmatpush1.msra.mxu0 0.0
        %2829 = vmatprep.subr.mxu0 0.0
        %2830 = vmatpush1.msra.mxu0 0.0
        %2831 = vmatprep.subr.mxu0 0.0
        %2832 = vmatpush1.msra.mxu0 0.0
        %2833 = vmatprep.subr.mxu0 0.0
        %2834 = vmatpush1.msra.mxu0 0.0
        %2835 = vmatprep.mubr.f32.mxu0 0.0
        %2836 = vmatmul.mubr.f32.gmra.mrb[0].mxu0 %v2650
        %v2837 = vpop.f32.mrb[0].mxu0
        %v2838 = vadd.f32 %v2733, %v2837
        %v2839 = vpop.f32.mrb[0].mxu0
        %2840 = vmatprep.mubr.f32.mxu0 0.0
        %2841 = vmatmul.mubr.f32.gmra.mrb[0].mxu0 %v2652
        %v2842 = vpop.f32.mrb[0].mxu0
        %v2843 = vadd.f32 %v2738, %v2842
        %v2844 = vpop.f32.mrb[0].mxu0
        %2845 = vmatprep.mubr.f32.mxu0 0.0
        %2846 = vmatmul.mubr.f32.gmra.mrb[0].mxu0 %v2654
        %v2847 = vpop.f32.mrb[0].mxu0
        %v2848 = vadd.f32 %v2743, %v2847
        %v2849 = vpop.f32.mrb[0].mxu0
        %2850 = vmatprep.mubr.f32.mxu0 0.0
        %2851 = vmatmul.mubr.f32.gmra.mrb[0].mxu0 %v2656
        %v2852 = vpop.f32.mrb[0].mxu0
        %v2853 = vadd.f32 %v2748, %v2852
        %v2854 = vpop.f32.mrb[0].mxu0
        %2855 = vmatprep.mubr.f32.mxu0 0.0
        %2856 = vmatmul.mubr.f32.gmra.mrb[0].mxu0 %v2658
        %v2857 = vpop.f32.mrb[0].mxu0
        %v2858 = vadd.f32 %v2753, %v2857
        %v2859 = vpop.f32.mrb[0].mxu0
        %2860 = vmatprep.mubr.f32.mxu0 0.0
        %2861 = vmatmul.mubr.f32.gmra.mrb[0].mxu0 %v2660
        %v2862 = vpop.f32.mrb[0].mxu0
        %v2863 = vadd.f32 %v2758, %v2862
        %v2864 = vpop.f32.mrb[0].mxu0
        %2865 = vmatprep.mubr.f32.mxu0 0.0
        %2866 = vmatmul.mubr.f32.gmra.mrb[0].mxu0 %v2662
        %v2867 = vpop.f32.mrb[0].mxu0
        %v2868 = vadd.f32 %v2763, %v2867
        %v2869 = vpop.f32.mrb[0].mxu0
        %2870 = vmatprep.mubr.f32.mxu0 0.0
        %2871 = vmatmul.mubr.f32.gmra.mrb[0].mxu0 %v2664
        %v2872 = vpop.f32.mrb[0].mxu0
        %v2873 = vadd.f32 %v2768, %v2872
        %v2874 = vpop.f32.mrb[0].mxu0
        %2875 = vdwg.mxu0
        %v2876 = vld [vmem:[%s16] sm:$0xff]
        %v2877 = vld [vmem:[%s16 + $0x8] sm:$0xff]
        %v2878 = vld [vmem:[%s16 + $0x10] sm:$0xff]
        %v2879 = vld [vmem:[%s16 + $0x18] sm:$0xff]
        %v2880 = vld [vmem:[%s16 + $0x20] sm:$0xff]
        %v2881 = vld [vmem:[%s16 + $0x28] sm:$0xff]
        %v2882 = vld [vmem:[%s16 + $0x30] sm:$0xff]
        %v2883 = vld [vmem:[%s16 + $0x38] sm:$0xff]
        %v2884 = vld [vmem:[%s16 + $0x40] sm:$0xff]
        %v2885 = vld [vmem:[%s16 + $0x48] sm:$0xff]
        %v2886 = vld [vmem:[%s16 + $0x50] sm:$0xff]
        %v2887 = vld [vmem:[%s16 + $0x58] sm:$0xff]
        %v2888 = vld [vmem:[%s16 + $0x60] sm:$0xff]
        %v2889 = vld [vmem:[%s16 + $0x68] sm:$0xff]
        %v2890 = vld [vmem:[%s16 + $0x70] sm:$0xff]
        %v2891 = vld [vmem:[%s16 + $0x78] sm:$0xff]
        %v2892 = vld [vmem:[%s16 + $0x80] sm:$0xff]
        %v2893 = vld [vmem:[%s16 + $0x88] sm:$0xff]
        %v2894 = vld [vmem:[%s16 + $0x90] sm:$0xff]
        %v2895 = vld [vmem:[%s16 + $0x98] sm:$0xff]
        %v2896 = vld [vmem:[%s16 + $0xa0] sm:$0xff]
        %v2897 = vld [vmem:[%s16 + $0xa8] sm:$0xff]
        %v2898 = vld [vmem:[%s16 + $0xb0] sm:$0xff]
        %v2899 = vld [vmem:[%s16 + $0xb8] sm:$0xff]
        %v2900 = vld [vmem:[%s16 + $0xc0] sm:$0xff]
        %v2901 = vld [vmem:[%s16 + $0xc8] sm:$0xff]
        %v2902 = vld [vmem:[%s16 + $0xd0] sm:$0xff]
        %v2903 = vld [vmem:[%s16 + $0xd8] sm:$0xff]
        %v2904 = vld [vmem:[%s16 + $0xe0] sm:$0xff]
        %v2905 = vld [vmem:[%s16 + $0xe8] sm:$0xff]
        %v2906 = vld [vmem:[%s16 + $0xf0] sm:$0xff]
        %v2907 = vld [vmem:[%s16 + $0xf8] sm:$0xff]
        %v2908 = vld [vmem:[%s16 + $0x100] sm:$0xff]
        %v2909 = vld [vmem:[%s16 + $0x108] sm:$0xff]
        %v2910 = vld [vmem:[%s16 + $0x110] sm:$0xff]
        %v2911 = vld [vmem:[%s16 + $0x118] sm:$0xff]
        %v2912 = vld [vmem:[%s17] sm:$0x1]
        %v2914 = vlaneseq
        %v2915 = vshrl.u32 %v2914, 7
        %v2916 = vsub.s32 0, %v2915
        %v2917 = vrot.slane %v2912, %v2916
        %2919 = vmatprep.subr.mxu0 0.0
        %2920 = vmatpush1.msra.mxu0 %v2876
        %2921 = vmatprep.subr.mxu0 0.0
        %2922 = vmatpush1.msra.mxu0 %v2877
        %2923 = vmatprep.subr.mxu0 0.0
        %2924 = vmatpush1.msra.mxu0 %v2878
        %2925 = vmatprep.subr.mxu0 0.0
        %2926 = vmatpush1.msra.mxu0 %v2879
        %2927 = vmatprep.subr.mxu0 0.0
        %2928 = vmatpush1.msra.mxu0 %v2880
        %2929 = vmatprep.subr.mxu0 0.0
        %2930 = vmatpush1.msra.mxu0 %v2881
        %2931 = vmatprep.subr.mxu0 0.0
        %2932 = vmatpush1.msra.mxu0 %v2882
        %2933 = vmatprep.subr.mxu0 0.0
        %2934 = vmatpush1.msra.mxu0 %v2883
        %2935 = vmatprep.subr.mxu0 0.0
        %2936 = vmatpush1.msra.mxu0 %v2884
        %2937 = vmatprep.subr.mxu0 0.0
        %2938 = vmatpush1.msra.mxu0 %v2885
        %2939 = vmatprep.subr.mxu0 0.0
        %2940 = vmatpush1.msra.mxu0 %v2886
        %2941 = vmatprep.subr.mxu0 0.0
        %2942 = vmatpush1.msra.mxu0 %v2887
        %2943 = vmatprep.subr.mxu0 0.0
        %2944 = vmatpush1.msra.mxu0 %v2888
        %2945 = vmatprep.subr.mxu0 0.0
        %2946 = vmatpush1.msra.mxu0 %v2889
        %2947 = vmatprep.subr.mxu0 0.0
        %2948 = vmatpush1.msra.mxu0 %v2890
        %2949 = vmatprep.subr.mxu0 0.0
        %2950 = vmatpush1.msra.mxu0 %v2891
        %2951 = vmatprep.subr.mxu0 0.0
        %2952 = vmatpush1.msra.mxu0 %v2892
        %2953 = vmatprep.subr.mxu0 0.0
        %2954 = vmatpush1.msra.mxu0 %v2893
        %2955 = vmatprep.subr.mxu0 0.0
        %2956 = vmatpush1.msra.mxu0 %v2894
        %2957 = vmatprep.subr.mxu0 0.0
        %2958 = vmatpush1.msra.mxu0 %v2895
        %2959 = vmatprep.subr.mxu0 0.0
        %2960 = vmatpush1.msra.mxu0 %v2896
        %2961 = vmatprep.subr.mxu0 0.0
        %2962 = vmatpush1.msra.mxu0 %v2897
        %2963 = vmatprep.subr.mxu0 0.0
        %2964 = vmatpush1.msra.mxu0 %v2898
        %2965 = vmatprep.subr.mxu0 0.0
        %2966 = vmatpush1.msra.mxu0 %v2899
        %2967 = vmatprep.subr.mxu0 0.0
        %2968 = vmatpush1.msra.mxu0 %v2900
        %2969 = vmatprep.subr.mxu0 0.0
        %2970 = vmatpush1.msra.mxu0 %v2901
        %2971 = vmatprep.subr.mxu0 0.0
        %2972 = vmatpush1.msra.mxu0 %v2902
        %2973 = vmatprep.subr.mxu0 0.0
        %2974 = vmatpush1.msra.mxu0 %v2903
        %2975 = vmatprep.subr.mxu0 0.0
        %2976 = vmatpush1.msra.mxu0 %v2904
        %2977 = vmatprep.subr.mxu0 0.0
        %2978 = vmatpush1.msra.mxu0 %v2905
        %2979 = vmatprep.subr.mxu0 0.0
        %2980 = vmatpush1.msra.mxu0 %v2906
        %2981 = vmatprep.subr.mxu0 0.0
        %2982 = vmatpush1.msra.mxu0 %v2907
        %2983 = vmatprep.mubr.f32.mxu0 %v2599
        %2984 = vmatmul.mubr.f32.gmra.mrb[0].mxu0 %v2575
        %v2985 = vpop.f32.mrb[0].mxu0
        %v2986 = vadd.f32 %v2917, %v2985
        %v2987 = vpop.f32.mrb[0].mxu0
        %2988 = vmatprep.mubr.f32.mxu0 %v2600
        %2989 = vmatmul.mubr.f32.gmra.mrb[0].mxu0 %v2576
        %v2990 = vpop.f32.mrb[0].mxu0
        %v2991 = vadd.f32 %v2917, %v2990
        %v2992 = vpop.f32.mrb[0].mxu0
        %2993 = vmatprep.mubr.f32.mxu0 %v2601
        %2994 = vmatmul.mubr.f32.gmra.mrb[0].mxu0 %v2577
        %v2995 = vpop.f32.mrb[0].mxu0
        %v2996 = vadd.f32 %v2917, %v2995
        %v2997 = vpop.f32.mrb[0].mxu0
        %2998 = vmatprep.mubr.f32.mxu0 %v2602
        %2999 = vmatmul.mubr.f32.gmra.mrb[0].mxu0 %v2578
        %v3000 = vpop.f32.mrb[0].mxu0
        %v3001 = vadd.f32 %v2917, %v3000
        %v3002 = vpop.f32.mrb[0].mxu0
        %3003 = vmatprep.mubr.f32.mxu0 %v2603
        %3004 = vmatmul.mubr.f32.gmra.mrb[0].mxu0 %v2579
        %v3005 = vpop.f32.mrb[0].mxu0
        %v3006 = vadd.f32 %v2917, %v3005
        %v3007 = vpop.f32.mrb[0].mxu0
        %3008 = vmatprep.mubr.f32.mxu0 %v2604
        %3009 = vmatmul.mubr.f32.gmra.mrb[0].mxu0 %v2580
        %v3010 = vpop.f32.mrb[0].mxu0
        %v3011 = vadd.f32 %v2917, %v3010
        %v3012 = vpop.f32.mrb[0].mxu0
        %3013 = vmatprep.mubr.f32.mxu0 %v2605
        %3014 = vmatmul.mubr.f32.gmra.mrb[0].mxu0 %v2581
        %v3015 = vpop.f32.mrb[0].mxu0
        %v3016 = vadd.f32 %v2917, %v3015
        %v3017 = vpop.f32.mrb[0].mxu0
        %3018 = vmatprep.mubr.f32.mxu0 %v2606
        %3019 = vmatmul.mubr.f32.gmra.mrb[0].mxu0 %v2582
        %v3020 = vpop.f32.mrb[0].mxu0
        %v3021 = vadd.f32 %v2917, %v3020
        %v3022 = vpop.f32.mrb[0].mxu0
        %3023 = vdwg.mxu0
        %3024 = vmatprep.subr.mxu0 0.0
        %3025 = vmatpush1.msra.mxu0 %v2908
        %3026 = vmatprep.subr.mxu0 0.0
        %3027 = vmatpush1.msra.mxu0 %v2909
        %3028 = vmatprep.subr.mxu0 0.0
        %3029 = vmatpush1.msra.mxu0 %v2910
        %3030 = vmatprep.subr.mxu0 0.0
        %3031 = vmatpush1.msra.mxu0 %v2911
        %3032 = vmatprep.subr.mxu0 0.0
        %3033 = vmatpush1.msra.mxu0 0.0
        %3034 = vmatprep.subr.mxu0 0.0
        %3035 = vmatpush1.msra.mxu0 0.0
        %3036 = vmatprep.subr.mxu0 0.0
        %3037 = vmatpush1.msra.mxu0 0.0
        %3038 = vmatprep.subr.mxu0 0.0
        %3039 = vmatpush1.msra.mxu0 0.0
        %3040 = vmatprep.subr.mxu0 0.0
        %3041 = vmatpush1.msra.mxu0 0.0
        %3042 = vmatprep.subr.mxu0 0.0
        %3043 = vmatpush1.msra.mxu0 0.0
        %3044 = vmatprep.subr.mxu0 0.0
        %3045 = vmatpush1.msra.mxu0 0.0
        %3046 = vmatprep.subr.mxu0 0.0
        %3047 = vmatpush1.msra.mxu0 0.0
        %3048 = vmatprep.subr.mxu0 0.0
        %3049 = vmatpush1.msra.mxu0 0.0
        %3050 = vmatprep.subr.mxu0 0.0
        %3051 = vmatpush1.msra.mxu0 0.0
        %3052 = vmatprep.subr.mxu0 0.0
        %3053 = vmatpush1.msra.mxu0 0.0
        %3054 = vmatprep.subr.mxu0 0.0
        %3055 = vmatpush1.msra.mxu0 0.0
        %3056 = vmatprep.subr.mxu0 0.0
        %3057 = vmatpush1.msra.mxu0 0.0
        %3058 = vmatprep.subr.mxu0 0.0
        %3059 = vmatpush1.msra.mxu0 0.0
        %3060 = vmatprep.subr.mxu0 0.0
        %3061 = vmatpush1.msra.mxu0 0.0
        %3062 = vmatprep.subr.mxu0 0.0
        %3063 = vmatpush1.msra.mxu0 0.0
        %3064 = vmatprep.subr.mxu0 0.0
        %3065 = vmatpush1.msra.mxu0 0.0
        %3066 = vmatprep.subr.mxu0 0.0
        %3067 = vmatpush1.msra.mxu0 0.0
        %3068 = vmatprep.subr.mxu0 0.0
        %3069 = vmatpush1.msra.mxu0 0.0
        %3070 = vmatprep.subr.mxu0 0.0
        %3071 = vmatpush1.msra.mxu0 0.0
        %3072 = vmatprep.subr.mxu0 0.0
        %3073 = vmatpush1.msra.mxu0 0.0
        %3074 = vmatprep.subr.mxu0 0.0
        %3075 = vmatpush1.msra.mxu0 0.0
        %3076 = vmatprep.subr.mxu0 0.0
        %3077 = vmatpush1.msra.mxu0 0.0
        %3078 = vmatprep.subr.mxu0 0.0
        %3079 = vmatpush1.msra.mxu0 0.0
        %3080 = vmatprep.subr.mxu0 0.0
        %3081 = vmatpush1.msra.mxu0 0.0
        %3082 = vmatprep.subr.mxu0 0.0
        %3083 = vmatpush1.msra.mxu0 0.0
        %3084 = vmatprep.subr.mxu0 0.0
        %3085 = vmatpush1.msra.mxu0 0.0
        %3086 = vmatprep.subr.mxu0 0.0
        %3087 = vmatpush1.msra.mxu0 0.0
        %3088 = vmatprep.mubr.f32.mxu0 0.0
        %3089 = vmatmul.mubr.f32.gmra.mrb[0].mxu0 %v2650
        %v3090 = vpop.f32.mrb[0].mxu0
        %v3091 = vadd.f32 %v2986, %v3090
        %v3092 = vpop.f32.mrb[0].mxu0
        %3093 = vmatprep.mubr.f32.mxu0 0.0
        %3094 = vmatmul.mubr.f32.gmra.mrb[0].mxu0 %v2652
        %v3095 = vpop.f32.mrb[0].mxu0
        %v3096 = vadd.f32 %v2991, %v3095
        %v3097 = vpop.f32.mrb[0].mxu0
        %3098 = vmatprep.mubr.f32.mxu0 0.0
        %3099 = vmatmul.mubr.f32.gmra.mrb[0].mxu0 %v2654
        %v3100 = vpop.f32.mrb[0].mxu0
        %v3101 = vadd.f32 %v2996, %v3100
        %v3102 = vpop.f32.mrb[0].mxu0
        %3103 = vmatprep.mubr.f32.mxu0 0.0
        %3104 = vmatmul.mubr.f32.gmra.mrb[0].mxu0 %v2656
        %v3105 = vpop.f32.mrb[0].mxu0
        %v3106 = vadd.f32 %v3001, %v3105
        %v3107 = vpop.f32.mrb[0].mxu0
        %3108 = vmatprep.mubr.f32.mxu0 0.0
        %3109 = vmatmul.mubr.f32.gmra.mrb[0].mxu0 %v2658
        %v3110 = vpop.f32.mrb[0].mxu0
        %v3111 = vadd.f32 %v3006, %v3110
        %v3112 = vpop.f32.mrb[0].mxu0
        %3113 = vmatprep.mubr.f32.mxu0 0.0
        %3114 = vmatmul.mubr.f32.gmra.mrb[0].mxu0 %v2660
        %v3115 = vpop.f32.mrb[0].mxu0
        %v3116 = vadd.f32 %v3011, %v3115
        %v3117 = vpop.f32.mrb[0].mxu0
        %3118 = vmatprep.mubr.f32.mxu0 0.0
        %3119 = vmatmul.mubr.f32.gmra.mrb[0].mxu0 %v2662
        %v3120 = vpop.f32.mrb[0].mxu0
        %v3121 = vadd.f32 %v3016, %v3120
        %v3122 = vpop.f32.mrb[0].mxu0
        %3123 = vmatprep.mubr.f32.mxu0 0.0
        %3124 = vmatmul.mubr.f32.gmra.mrb[0].mxu0 %v2664
        %v3125 = vpop.f32.mrb[0].mxu0
        %v3126 = vadd.f32 %v3021, %v3125
        %v3127 = vpop.f32.mrb[0].mxu0
        %3128 = vdwg.mxu0
        %v3129 = vmul.f32 %v2838, %v2291
        %v3130 = vmul.f32 %v2843, %v2292
        %v3131 = vmul.f32 %v2848, %v2293
        %v3132 = vmul.f32 %v2853, %v2294
        %v3133 = vmul.f32 %v2858, %v2295
        %v3134 = vmul.f32 %v2863, %v2296
        %v3135 = vmul.f32 %v2868, %v2297
        %v3136 = vmul.f32 %v2873, %v2298
        %v3137 = vadd.f32 %v3129, %v3091
        %v3138 = vadd.f32 %v3130, %v3096
        %v3139 = vadd.f32 %v3131, %v3101
        %v3140 = vadd.f32 %v3132, %v3106
        %v3141 = vadd.f32 %v3133, %v3111
        %v3142 = vadd.f32 %v3134, %v3116
        %v3143 = vadd.f32 %v3135, %v3121
        %v3144 = vadd.f32 %v3136, %v3126
        %v3145 = vmax.f32 %v3137, 0.0
        %v3146 = vmax.f32 %v3138, 0.0
        %v3147 = vmax.f32 %v3139, 0.0
        %v3148 = vmax.f32 %v3140, 0.0
        %v3149 = vmax.f32 %v3141, 0.0
        %v3150 = vmax.f32 %v3142, 0.0
        %v3151 = vmax.f32 %v3143, 0.0
        %v3152 = vmax.f32 %v3144, 0.0
        %v3153 = vld [vmem:[%s18] sm:$0xff]
        %v3154 = vld [vmem:[%s18 + $0x8] sm:$0xff]
        %v3155 = vld [vmem:[%s18 + $0x10] sm:$0xff]
        %v3156 = vld [vmem:[%s18 + $0x18] sm:$0xff]
        %v3158 = vsel %vm740, %v3145, 0
        %v3161 = vsel %vm740, %v3146, 0
        %v3164 = vsel %vm740, %v3147, 0
        %v3167 = vsel %vm740, %v3148, 0
        %v3170 = vsel %vm740, %v3149, 0
        %v3173 = vsel %vm740, %v3150, 0
        %v3176 = vsel %vm740, %v3151, 0
        %v3179 = vsel %vm740, %v3152, 0
        %3181 = vmatprep.subr.mxu0 0.0
        %3182 = vmatpush1.msra.mxu0 %v3153
        %3183 = vmatprep.subr.mxu0 0.0
        %3184 = vmatpush1.msra.mxu0 %v3154
        %3185 = vmatprep.subr.mxu0 0.0
        %3186 = vmatpush1.msra.mxu0 %v3155
        %3187 = vmatprep.subr.mxu0 0.0
        %3188 = vmatpush1.msra.mxu0 %v3156
        %3189 = vmatprep.subr.mxu0 0.0
        %3190 = vmatpush1.msra.mxu0 0.0
        %3191 = vmatprep.subr.mxu0 0.0
        %3192 = vmatpush1.msra.mxu0 0.0
        %3193 = vmatprep.subr.mxu0 0.0
        %3194 = vmatpush1.msra.mxu0 0.0
        %3195 = vmatprep.subr.mxu0 0.0
        %3196 = vmatpush1.msra.mxu0 0.0
        %3197 = vmatprep.subr.mxu0 0.0
        %3198 = vmatpush1.msra.mxu0 0.0
        %3199 = vmatprep.subr.mxu0 0.0
        %3200 = vmatpush1.msra.mxu0 0.0
        %3201 = vmatprep.subr.mxu0 0.0
        %3202 = vmatpush1.msra.mxu0 0.0
        %3203 = vmatprep.subr.mxu0 0.0
        %3204 = vmatpush1.msra.mxu0 0.0
        %3205 = vmatprep.subr.mxu0 0.0
        %3206 = vmatpush1.msra.mxu0 0.0
        %3207 = vmatprep.subr.mxu0 0.0
        %3208 = vmatpush1.msra.mxu0 0.0
        %3209 = vmatprep.subr.mxu0 0.0
        %3210 = vmatpush1.msra.mxu0 0.0
        %3211 = vmatprep.subr.mxu0 0.0
        %3212 = vmatpush1.msra.mxu0 0.0
        %3213 = vmatprep.subr.mxu0 0.0
        %3214 = vmatpush1.msra.mxu0 0.0
        %3215 = vmatprep.subr.mxu0 0.0
        %3216 = vmatpush1.msra.mxu0 0.0
        %3217 = vmatprep.subr.mxu0 0.0
        %3218 = vmatpush1.msra.mxu0 0.0
        %3219 = vmatprep.subr.mxu0 0.0
        %3220 = vmatpush1.msra.mxu0 0.0
        %3221 = vmatprep.subr.mxu0 0.0
        %3222 = vmatpush1.msra.mxu0 0.0
        %3223 = vmatprep.subr.mxu0 0.0
        %3224 = vmatpush1.msra.mxu0 0.0
        %3225 = vmatprep.subr.mxu0 0.0
        %3226 = vmatpush1.msra.mxu0 0.0
        %3227 = vmatprep.subr.mxu0 0.0
        %3228 = vmatpush1.msra.mxu0 0.0
        %3229 = vmatprep.subr.mxu0 0.0
        %3230 = vmatpush1.msra.mxu0 0.0
        %3231 = vmatprep.subr.mxu0 0.0
        %3232 = vmatpush1.msra.mxu0 0.0
        %3233 = vmatprep.subr.mxu0 0.0
        %3234 = vmatpush1.msra.mxu0 0.0
        %3235 = vmatprep.subr.mxu0 0.0
        %3236 = vmatpush1.msra.mxu0 0.0
        %3237 = vmatprep.subr.mxu0 0.0
        %3238 = vmatpush1.msra.mxu0 0.0
        %3239 = vmatprep.subr.mxu0 0.0
        %3240 = vmatpush1.msra.mxu0 0.0
        %3241 = vmatprep.subr.mxu0 0.0
        %3242 = vmatpush1.msra.mxu0 0.0
        %3243 = vmatprep.subr.mxu0 0.0
        %3244 = vmatpush1.msra.mxu0 0.0
        %3245 = vmatprep.mubr.f32.mxu0 0.0
        %3246 = vmatmul.mubr.f32.gmra.mrb[0].mxu0 %v3158
        %v3247 = vpop.f32.mrb[0].mxu0
        %v3248 = vadd.f32 0.0, %v3247
        %v3249 = vpop.f32.mrb[0].mxu0
        %3250 = vmatprep.mubr.f32.mxu0 0.0
        %3251 = vmatmul.mubr.f32.gmra.mrb[0].mxu0 %v3161
        %v3252 = vpop.f32.mrb[0].mxu0
        %v3253 = vadd.f32 0.0, %v3252
        %v3254 = vpop.f32.mrb[0].mxu0
        %3255 = vmatprep.mubr.f32.mxu0 0.0
        %3256 = vmatmul.mubr.f32.gmra.mrb[0].mxu0 %v3164
        %v3257 = vpop.f32.mrb[0].mxu0
        %v3258 = vadd.f32 0.0, %v3257
        %v3259 = vpop.f32.mrb[0].mxu0
        %3260 = vmatprep.mubr.f32.mxu0 0.0
        %3261 = vmatmul.mubr.f32.gmra.mrb[0].mxu0 %v3167
        %v3262 = vpop.f32.mrb[0].mxu0
        %v3263 = vadd.f32 0.0, %v3262
        %v3264 = vpop.f32.mrb[0].mxu0
        %3265 = vmatprep.mubr.f32.mxu0 0.0
        %3266 = vmatmul.mubr.f32.gmra.mrb[0].mxu0 %v3170
        %v3267 = vpop.f32.mrb[0].mxu0
        %v3268 = vadd.f32 0.0, %v3267
        %v3269 = vpop.f32.mrb[0].mxu0
        %3270 = vmatprep.mubr.f32.mxu0 0.0
        %3271 = vmatmul.mubr.f32.gmra.mrb[0].mxu0 %v3173
        %v3272 = vpop.f32.mrb[0].mxu0
        %v3273 = vadd.f32 0.0, %v3272
        %v3274 = vpop.f32.mrb[0].mxu0
        %3275 = vmatprep.mubr.f32.mxu0 0.0
        %3276 = vmatmul.mubr.f32.gmra.mrb[0].mxu0 %v3176
        %v3277 = vpop.f32.mrb[0].mxu0
        %v3278 = vadd.f32 0.0, %v3277
        %v3279 = vpop.f32.mrb[0].mxu0
        %3280 = vmatprep.mubr.f32.mxu0 0.0
        %3281 = vmatmul.mubr.f32.gmra.mrb[0].mxu0 %v3179
        %v3282 = vpop.f32.mrb[0].mxu0
        %v3283 = vadd.f32 0.0, %v3282
        %v3284 = vpop.f32.mrb[0].mxu0
        %3285 = vdwg.mxu0
        %v3287 = vsel %vm740, %v3248, 0
        %v3290 = vsel %vm740, %v3253, 0
        %v3293 = vsel %vm740, %v3258, 0
        %v3296 = vsel %vm740, %v3263, 0
        %v3299 = vsel %vm740, %v3268, 0
        %v3302 = vsel %vm740, %v3273, 0
        %v3305 = vsel %vm740, %v3278, 0
        %v3308 = vsel %vm740, %v3283, 0
        %3310 = vmatprep.subr.mxu0 0.0
        %3311 = vmatpush1.xpose.msra.mxu0 %v3158
        %3312 = vmatprep.subr.mxu0 0.0
        %3313 = vmatpush1.xpose.msra.mxu0 %v3161
        %3314 = vmatprep.subr.mxu0 0.0
        %3315 = vmatpush1.xpose.msra.mxu0 %v3164
        %3316 = vmatprep.subr.mxu0 0.0
        %3317 = vmatpush1.xpose.msra.mxu0 %v3167
        %3318 = vmatprep.subr.mxu0 0.0
        %3319 = vmatpush1.xpose.msra.mxu0 %v3170
        %3320 = vmatprep.subr.mxu0 0.0
        %3321 = vmatpush1.xpose.msra.mxu0 %v3173
        %3322 = vmatprep.subr.mxu0 0.0
        %3323 = vmatpush1.xpose.msra.mxu0 %v3176
        %3324 = vmatprep.subr.mxu0 0.0
        %3325 = vmatpush1.xpose.msra.mxu0 %v3179
        %3326 = vmatprep.subr.mxu0 0.0
        %3327 = vmatpush1.xpose.msra.mxu0 0.0
        %3328 = vmatprep.subr.mxu0 0.0
        %3329 = vmatpush1.xpose.msra.mxu0 0.0
        %3330 = vmatprep.subr.mxu0 0.0
        %3331 = vmatpush1.xpose.msra.mxu0 0.0
        %3332 = vmatprep.subr.mxu0 0.0
        %3333 = vmatpush1.xpose.msra.mxu0 0.0
        %3334 = vmatprep.subr.mxu0 0.0
        %3335 = vmatpush1.xpose.msra.mxu0 0.0
        %3336 = vmatprep.subr.mxu0 0.0
        %3337 = vmatpush1.xpose.msra.mxu0 0.0
        %3338 = vmatprep.subr.mxu0 0.0
        %3339 = vmatpush1.xpose.msra.mxu0 0.0
        %3340 = vmatprep.subr.mxu0 0.0
        %3341 = vmatpush1.xpose.msra.mxu0 0.0
        %3342 = vmatprep.subr.mxu0 0.0
        %3343 = vmatpush1.xpose.msra.mxu0 0.0
        %3344 = vmatprep.subr.mxu0 0.0
        %3345 = vmatpush1.xpose.msra.mxu0 0.0
        %3346 = vmatprep.subr.mxu0 0.0
        %3347 = vmatpush1.xpose.msra.mxu0 0.0
        %3348 = vmatprep.subr.mxu0 0.0
        %3349 = vmatpush1.xpose.msra.mxu0 0.0
        %3350 = vmatprep.subr.mxu0 0.0
        %3351 = vmatpush1.xpose.msra.mxu0 0.0
        %3352 = vmatprep.subr.mxu0 0.0
        %3353 = vmatpush1.xpose.msra.mxu0 0.0
        %3354 = vmatprep.subr.mxu0 0.0
        %3355 = vmatpush1.xpose.msra.mxu0 0.0
        %3356 = vmatprep.subr.mxu0 0.0
        %3357 = vmatpush1.xpose.msra.mxu0 0.0
        %3358 = vmatprep.subr.mxu0 0.0
        %3359 = vmatpush1.xpose.msra.mxu0 0.0
        %3360 = vmatprep.subr.mxu0 0.0
        %3361 = vmatpush1.xpose.msra.mxu0 0.0
        %3362 = vmatprep.subr.mxu0 0.0
        %3363 = vmatpush1.xpose.msra.mxu0 0.0
        %3364 = vmatprep.subr.mxu0 0.0
        %3365 = vmatpush1.xpose.msra.mxu0 0.0
        %3366 = vmatprep.subr.mxu0 0.0
        %3367 = vmatpush1.xpose.msra.mxu0 0.0
        %3368 = vmatprep.subr.mxu0 0.0
        %3369 = vmatpush1.xpose.msra.mxu0 0.0
        %3370 = vmatprep.subr.mxu0 0.0
        %3371 = vmatpush1.xpose.msra.mxu0 0.0
        %3372 = vmatprep.subr.mxu0 0.0
        %3373 = vmatpush1.xpose.msra.mxu0 0.0
        %3374 = vmatprep.mubr.f32.mxu0 0.0
        %3375 = vmatmul.mubr.f32.gmra.mrb[0].mxu0 %v3287
        %v3376 = vpop.f32.mrb[0].mxu0
        %v3377 = vadd.f32 0.0, %v3376
        %v3378 = vpop.f32.mrb[0].mxu0
        %3379 = vmatprep.mubr.f32.mxu0 0.0
        %3380 = vmatmul.mubr.f32.gmra.mrb[0].mxu0 %v3290
        %v3381 = vpop.f32.mrb[0].mxu0
        %v3382 = vadd.f32 0.0, %v3381
        %v3383 = vpop.f32.mrb[0].mxu0
        %3384 = vmatprep.mubr.f32.mxu0 0.0
        %3385 = vmatmul.mubr.f32.gmra.mrb[0].mxu0 %v3293
        %v3386 = vpop.f32.mrb[0].mxu0
        %v3387 = vadd.f32 0.0, %v3386
        %v3388 = vpop.f32.mrb[0].mxu0
        %3389 = vmatprep.mubr.f32.mxu0 0.0
        %3390 = vmatmul.mubr.f32.gmra.mrb[0].mxu0 %v3296
        %v3391 = vpop.f32.mrb[0].mxu0
        %v3392 = vadd.f32 0.0, %v3391
        %v3393 = vpop.f32.mrb[0].mxu0
        %3394 = vmatprep.mubr.f32.mxu0 0.0
        %3395 = vmatmul.mubr.f32.gmra.mrb[0].mxu0 %v3299
        %v3396 = vpop.f32.mrb[0].mxu0
        %v3397 = vadd.f32 0.0, %v3396
        %v3398 = vpop.f32.mrb[0].mxu0
        %3399 = vmatprep.mubr.f32.mxu0 0.0
        %3400 = vmatmul.mubr.f32.gmra.mrb[0].mxu0 %v3302
        %v3401 = vpop.f32.mrb[0].mxu0
        %v3402 = vadd.f32 0.0, %v3401
        %v3403 = vpop.f32.mrb[0].mxu0
        %3404 = vmatprep.mubr.f32.mxu0 0.0
        %3405 = vmatmul.mubr.f32.gmra.mrb[0].mxu0 %v3305
        %v3406 = vpop.f32.mrb[0].mxu0
        %v3407 = vadd.f32 0.0, %v3406
        %v3408 = vpop.f32.mrb[0].mxu0
        %3409 = vmatprep.mubr.f32.mxu0 0.0
        %3410 = vmatmul.mubr.f32.gmra.mrb[0].mxu0 %v3308
        %v3411 = vpop.f32.mrb[0].mxu0
        %v3412 = vadd.f32 0.0, %v3411
        %v3413 = vpop.f32.mrb[0].mxu0
        %3414 = vdwg.mxu0
        %v3415 = vsel %vm1372, %v3377, -inf
        %3416 = vmax.xlane.f32.xlu0 %v3415
        %v3417 = vpop.xlane.xlu0 %3416
        %v3418 = vsel %vm1372, %v3382, -inf
        %3419 = vmax.xlane.f32.xlu0 %v3418
        %v3420 = vpop.xlane.xlu0 %3419
        %v3421 = vsel %vm1372, %v3387, -inf
        %3422 = vmax.xlane.f32.xlu0 %v3421
        %v3423 = vpop.xlane.xlu0 %3422
        %v3424 = vsel %vm1372, %v3392, -inf
        %3425 = vmax.xlane.f32.xlu0 %v3424
        %v3426 = vpop.xlane.xlu0 %3425
        %v3427 = vsel %vm1372, %v3397, -inf
        %3428 = vmax.xlane.f32.xlu0 %v3427
        %v3429 = vpop.xlane.xlu0 %3428
        %v3430 = vsel %vm1372, %v3402, -inf
        %3431 = vmax.xlane.f32.xlu0 %v3430
        %v3432 = vpop.xlane.xlu0 %3431
        %v3433 = vsel %vm1372, %v3407, -inf
        %3434 = vmax.xlane.f32.xlu0 %v3433
        %v3435 = vpop.xlane.xlu0 %3434
        %v3436 = vsel %vm1372, %v3412, -inf
        %3437 = vmax.xlane.f32.xlu0 %v3436
        %v3438 = vpop.xlane.xlu0 %3437
        %v3439 = vsub.f32 %v3377, %v3417
        %v3440 = vsub.f32 %v3382, %v3420
        %v3441 = vsub.f32 %v3387, %v3423
        %v3442 = vsub.f32 %v3392, %v3426
        %v3443 = vsub.f32 %v3397, %v3429
        %v3444 = vsub.f32 %v3402, %v3432
        %v3445 = vsub.f32 %v3407, %v3435
        %v3446 = vsub.f32 %v3412, %v3438
        %v3447 = vmul.f32 %v3439, 1.442695
        %v3448 = vpow.pop %v3447
        %v3449 = vmul.f32 %v3440, 1.442695
        %v3450 = vpow.pop %v3449
        %v3451 = vmul.f32 %v3441, 1.442695
        %v3452 = vpow.pop %v3451
        %v3453 = vmul.f32 %v3442, 1.442695
        %v3454 = vpow.pop %v3453
        %v3455 = vmul.f32 %v3443, 1.442695
        %v3456 = vpow.pop %v3455
        %v3457 = vmul.f32 %v3444, 1.442695
        %v3458 = vpow.pop %v3457
        %v3459 = vmul.f32 %v3445, 1.442695
        %v3460 = vpow.pop %v3459
        %v3461 = vmul.f32 %v3446, 1.442695
        %v3462 = vpow.pop %v3461
        %v3463 = vsel %vm1372, %v3448, 0.0
        %3464 = vadd.xlane.f32.xlu0 %v3463
        %v3465 = vpop.xlane.xlu0 %3464
        %v3466 = vsel %vm1372, %v3450, 0.0
        %3467 = vadd.xlane.f32.xlu0 %v3466
        %v3468 = vpop.xlane.xlu0 %3467
        %v3469 = vsel %vm1372, %v3452, 0.0
        %3470 = vadd.xlane.f32.xlu0 %v3469
        %v3471 = vpop.xlane.xlu0 %3470
        %v3472 = vsel %vm1372, %v3454, 0.0
        %3473 = vadd.xlane.f32.xlu0 %v3472
        %v3474 = vpop.xlane.xlu0 %3473
        %v3475 = vsel %vm1372, %v3456, 0.0
        %3476 = vadd.xlane.f32.xlu0 %v3475
        %v3477 = vpop.xlane.xlu0 %3476
        %v3478 = vsel %vm1372, %v3458, 0.0
        %3479 = vadd.xlane.f32.xlu0 %v3478
        %v3480 = vpop.xlane.xlu0 %3479
        %v3481 = vsel %vm1372, %v3460, 0.0
        %3482 = vadd.xlane.f32.xlu0 %v3481
        %v3483 = vpop.xlane.xlu0 %3482
        %v3484 = vsel %vm1372, %v3462, 0.0
        %3485 = vadd.xlane.f32.xlu0 %v3484
        %v3486 = vpop.xlane.xlu0 %3485
        %v3487 = vrcp.pop %v3465
        %v3488 = vrcp.pop %v3468
        %v3489 = vrcp.pop %v3471
        %v3490 = vrcp.pop %v3474
        %v3491 = vrcp.pop %v3477
        %v3492 = vrcp.pop %v3480
        %v3493 = vrcp.pop %v3483
        %v3494 = vrcp.pop %v3486
        %v3495 = vmul.f32 %v3448, %v3487
        %v3496 = vmul.f32 %v3450, %v3488
        %v3497 = vmul.f32 %v3452, %v3489
        %v3498 = vmul.f32 %v3454, %v3490
        %v3499 = vmul.f32 %v3456, %v3491
        %v3500 = vmul.f32 %v3458, %v3492
        %v3501 = vmul.f32 %v3460, %v3493
        %v3502 = vmul.f32 %v3462, %v3494
        %v3503 = vld [vmem:[%s19] sm:$0xff]
        %v3504 = vld [vmem:[%s19 + $0x8] sm:$0xff]
        %v3505 = vld [vmem:[%s19 + $0x10] sm:$0xff]
        %v3506 = vld [vmem:[%s19 + $0x18] sm:$0xff]
        %v3508 = vsel %vm740, %v1952, 0
        %v3511 = vsel %vm740, %v1953, 0
        %v3514 = vsel %vm740, %v1954, 0
        %v3517 = vsel %vm740, %v1955, 0
        %v3520 = vsel %vm740, %v1956, 0
        %v3523 = vsel %vm740, %v1957, 0
        %v3526 = vsel %vm740, %v1958, 0
        %v3529 = vsel %vm740, %v1959, 0
        %3531 = vmatprep.subr.mxu0 0.0
        %3532 = vmatpush1.msra.mxu0 %v3503
        %3533 = vmatprep.subr.mxu0 0.0
        %3534 = vmatpush1.msra.mxu0 %v3504
        %3535 = vmatprep.subr.mxu0 0.0
        %3536 = vmatpush1.msra.mxu0 %v3505
        %3537 = vmatprep.subr.mxu0 0.0
        %3538 = vmatpush1.msra.mxu0 %v3506
        %3539 = vmatprep.subr.mxu0 0.0
        %3540 = vmatpush1.msra.mxu0 0.0
        %3541 = vmatprep.subr.mxu0 0.0
        %3542 = vmatpush1.msra.mxu0 0.0
        %3543 = vmatprep.subr.mxu0 0.0
        %3544 = vmatpush1.msra.mxu0 0.0
        %3545 = vmatprep.subr.mxu0 0.0
        %3546 = vmatpush1.msra.mxu0 0.0
        %3547 = vmatprep.subr.mxu0 0.0
        %3548 = vmatpush1.msra.mxu0 0.0
        %3549 = vmatprep.subr.mxu0 0.0
        %3550 = vmatpush1.msra.mxu0 0.0
        %3551 = vmatprep.subr.mxu0 0.0
        %3552 = vmatpush1.msra.mxu0 0.0
        %3553 = vmatprep.subr.mxu0 0.0
        %3554 = vmatpush1.msra.mxu0 0.0
        %3555 = vmatprep.subr.mxu0 0.0
        %3556 = vmatpush1.msra.mxu0 0.0
        %3557 = vmatprep.subr.mxu0 0.0
        %3558 = vmatpush1.msra.mxu0 0.0
        %3559 = vmatprep.subr.mxu0 0.0
        %3560 = vmatpush1.msra.mxu0 0.0
        %3561 = vmatprep.subr.mxu0 0.0
        %3562 = vmatpush1.msra.mxu0 0.0
        %3563 = vmatprep.subr.mxu0 0.0
        %3564 = vmatpush1.msra.mxu0 0.0
        %3565 = vmatprep.subr.mxu0 0.0
        %3566 = vmatpush1.msra.mxu0 0.0
        %3567 = vmatprep.subr.mxu0 0.0
        %3568 = vmatpush1.msra.mxu0 0.0
        %3569 = vmatprep.subr.mxu0 0.0
        %3570 = vmatpush1.msra.mxu0 0.0
        %3571 = vmatprep.subr.mxu0 0.0
        %3572 = vmatpush1.msra.mxu0 0.0
        %3573 = vmatprep.subr.mxu0 0.0
        %3574 = vmatpush1.msra.mxu0 0.0
        %3575 = vmatprep.subr.mxu0 0.0
        %3576 = vmatpush1.msra.mxu0 0.0
        %3577 = vmatprep.subr.mxu0 0.0
        %3578 = vmatpush1.msra.mxu0 0.0
        %3579 = vmatprep.subr.mxu0 0.0
        %3580 = vmatpush1.msra.mxu0 0.0
        %3581 = vmatprep.subr.mxu0 0.0
        %3582 = vmatpush1.msra.mxu0 0.0
        %3583 = vmatprep.subr.mxu0 0.0
        %3584 = vmatpush1.msra.mxu0 0.0
        %3585 = vmatprep.subr.mxu0 0.0
        %3586 = vmatpush1.msra.mxu0 0.0
        %3587 = vmatprep.subr.mxu0 0.0
        %3588 = vmatpush1.msra.mxu0 0.0
        %3589 = vmatprep.subr.mxu0 0.0
        %3590 = vmatpush1.msra.mxu0 0.0
        %3591 = vmatprep.subr.mxu0 0.0
        %3592 = vmatpush1.msra.mxu0 0.0
        %3593 = vmatprep.subr.mxu0 0.0
        %3594 = vmatpush1.msra.mxu0 0.0
        %3595 = vmatprep.mubr.f32.mxu0 0.0
        %3596 = vmatmul.mubr.f32.gmra.mrb[0].mxu0 %v3508
        %v3597 = vpop.f32.mrb[0].mxu0
        %v3598 = vadd.f32 0.0, %v3597
        %v3599 = vpop.f32.mrb[0].mxu0
        %3600 = vmatprep.mubr.f32.mxu0 0.0
        %3601 = vmatmul.mubr.f32.gmra.mrb[0].mxu0 %v3511
        %v3602 = vpop.f32.mrb[0].mxu0
        %v3603 = vadd.f32 0.0, %v3602
        %v3604 = vpop.f32.mrb[0].mxu0
        %3605 = vmatprep.mubr.f32.mxu0 0.0
        %3606 = vmatmul.mubr.f32.gmra.mrb[0].mxu0 %v3514
        %v3607 = vpop.f32.mrb[0].mxu0
        %v3608 = vadd.f32 0.0, %v3607
        %v3609 = vpop.f32.mrb[0].mxu0
        %3610 = vmatprep.mubr.f32.mxu0 0.0
        %3611 = vmatmul.mubr.f32.gmra.mrb[0].mxu0 %v3517
        %v3612 = vpop.f32.mrb[0].mxu0
        %v3613 = vadd.f32 0.0, %v3612
        %v3614 = vpop.f32.mrb[0].mxu0
        %3615 = vmatprep.mubr.f32.mxu0 0.0
        %3616 = vmatmul.mubr.f32.gmra.mrb[0].mxu0 %v3520
        %v3617 = vpop.f32.mrb[0].mxu0
        %v3618 = vadd.f32 0.0, %v3617
        %v3619 = vpop.f32.mrb[0].mxu0
        %3620 = vmatprep.mubr.f32.mxu0 0.0
        %3621 = vmatmul.mubr.f32.gmra.mrb[0].mxu0 %v3523
        %v3622 = vpop.f32.mrb[0].mxu0
        %v3623 = vadd.f32 0.0, %v3622
        %v3624 = vpop.f32.mrb[0].mxu0
        %3625 = vmatprep.mubr.f32.mxu0 0.0
        %3626 = vmatmul.mubr.f32.gmra.mrb[0].mxu0 %v3526
        %v3627 = vpop.f32.mrb[0].mxu0
        %v3628 = vadd.f32 0.0, %v3627
        %v3629 = vpop.f32.mrb[0].mxu0
        %3630 = vmatprep.mubr.f32.mxu0 0.0
        %3631 = vmatmul.mubr.f32.gmra.mrb[0].mxu0 %v3529
        %v3632 = vpop.f32.mrb[0].mxu0
        %v3633 = vadd.f32 0.0, %v3632
        %v3634 = vpop.f32.mrb[0].mxu0
        %3635 = vdwg.mxu0
        %v3637 = vsel %vm1372, %v3495, 0
        %v3640 = vsel %vm1372, %v3496, 0
        %v3643 = vsel %vm1372, %v3497, 0
        %v3646 = vsel %vm1372, %v3498, 0
        %v3649 = vsel %vm1372, %v3499, 0
        %v3652 = vsel %vm1372, %v3500, 0
        %v3655 = vsel %vm1372, %v3501, 0
        %v3658 = vsel %vm1372, %v3502, 0
        %3660 = vmatprep.subr.mxu0 0.0
        %3661 = vmatpush1.msra.mxu0 %v3598
        %3662 = vmatprep.subr.mxu0 0.0
        %3663 = vmatpush1.msra.mxu0 %v3603
        %3664 = vmatprep.subr.mxu0 0.0
        %3665 = vmatpush1.msra.mxu0 %v3608
        %3666 = vmatprep.subr.mxu0 0.0
        %3667 = vmatpush1.msra.mxu0 %v3613
        %3668 = vmatprep.subr.mxu0 0.0
        %3669 = vmatpush1.msra.mxu0 %v3618
        %3670 = vmatprep.subr.mxu0 0.0
        %3671 = vmatpush1.msra.mxu0 %v3623
        %3672 = vmatprep.subr.mxu0 0.0
        %3673 = vmatpush1.msra.mxu0 %v3628
        %3674 = vmatprep.subr.mxu0 0.0
        %3675 = vmatpush1.msra.mxu0 %v3633
        %3676 = vmatprep.subr.mxu0 0.0
        %3677 = vmatpush1.msra.mxu0 0.0
        %3678 = vmatprep.subr.mxu0 0.0
        %3679 = vmatpush1.msra.mxu0 0.0
        %3680 = vmatprep.subr.mxu0 0.0
        %3681 = vmatpush1.msra.mxu0 0.0
        %3682 = vmatprep.subr.mxu0 0.0
        %3683 = vmatpush1.msra.mxu0 0.0
        %3684 = vmatprep.subr.mxu0 0.0
        %3685 = vmatpush1.msra.mxu0 0.0
        %3686 = vmatprep.subr.mxu0 0.0
        %3687 = vmatpush1.msra.mxu0 0.0
        %3688 = vmatprep.subr.mxu0 0.0
        %3689 = vmatpush1.msra.mxu0 0.0
        %3690 = vmatprep.subr.mxu0 0.0
        %3691 = vmatpush1.msra.mxu0 0.0
        %3692 = vmatprep.subr.mxu0 0.0
        %3693 = vmatpush1.msra.mxu0 0.0
        %3694 = vmatprep.subr.mxu0 0.0
        %3695 = vmatpush1.msra.mxu0 0.0
        %3696 = vmatprep.subr.mxu0 0.0
        %3697 = vmatpush1.msra.mxu0 0.0
        %3698 = vmatprep.subr.mxu0 0.0
        %3699 = vmatpush1.msra.mxu0 0.0
        %3700 = vmatprep.subr.mxu0 0.0
        %3701 = vmatpush1.msra.mxu0 0.0
        %3702 = vmatprep.subr.mxu0 0.0
        %3703 = vmatpush1.msra.mxu0 0.0
        %3704 = vmatprep.subr.mxu0 0.0
        %3705 = vmatpush1.msra.mxu0 0.0
        %3706 = vmatprep.subr.mxu0 0.0
        %3707 = vmatpush1.msra.mxu0 0.0
        %3708 = vmatprep.subr.mxu0 0.0
        %3709 = vmatpush1.msra.mxu0 0.0
        %3710 = vmatprep.subr.mxu0 0.0
        %3711 = vmatpush1.msra.mxu0 0.0
        %3712 = vmatprep.subr.mxu0 0.0
        %3713 = vmatpush1.msra.mxu0 0.0
        %3714 = vmatprep.subr.mxu0 0.0
        %3715 = vmatpush1.msra.mxu0 0.0
        %3716 = vmatprep.subr.mxu0 0.0
        %3717 = vmatpush1.msra.mxu0 0.0
        %3718 = vmatprep.subr.mxu0 0.0
        %3719 = vmatpush1.msra.mxu0 0.0
        %3720 = vmatprep.subr.mxu0 0.0
        %3721 = vmatpush1.msra.mxu0 0.0
        %3722 = vmatprep.subr.mxu0 0.0
        %3723 = vmatpush1.msra.mxu0 0.0
        %3724 = vmatprep.mubr.f32.mxu0 0.0
        %3725 = vmatmul.mubr.f32.gmra.mrb[0].mxu0 %v3637
        %v3726 = vpop.f32.mrb[0].mxu0
        %v3727 = vadd.f32 0.0, %v3726
        %v3728 = vpop.f32.mrb[0].mxu0
        %3729 = vmatprep.mubr.f32.mxu0 0.0
        %3730 = vmatmul.mubr.f32.gmra.mrb[0].mxu0 %v3640
        %v3731 = vpop.f32.mrb[0].mxu0
        %v3732 = vadd.f32 0.0, %v3731
        %v3733 = vpop.f32.mrb[0].mxu0
        %3734 = vmatprep.mubr.f32.mxu0 0.0
        %3735 = vmatmul.mubr.f32.gmra.mrb[0].mxu0 %v3643
        %v3736 = vpop.f32.mrb[0].mxu0
        %v3737 = vadd.f32 0.0, %v3736
        %v3738 = vpop.f32.mrb[0].mxu0
        %3739 = vmatprep.mubr.f32.mxu0 0.0
        %3740 = vmatmul.mubr.f32.gmra.mrb[0].mxu0 %v3646
        %v3741 = vpop.f32.mrb[0].mxu0
        %v3742 = vadd.f32 0.0, %v3741
        %v3743 = vpop.f32.mrb[0].mxu0
        %3744 = vmatprep.mubr.f32.mxu0 0.0
        %3745 = vmatmul.mubr.f32.gmra.mrb[0].mxu0 %v3649
        %v3746 = vpop.f32.mrb[0].mxu0
        %v3747 = vadd.f32 0.0, %v3746
        %v3748 = vpop.f32.mrb[0].mxu0
        %3749 = vmatprep.mubr.f32.mxu0 0.0
        %3750 = vmatmul.mubr.f32.gmra.mrb[0].mxu0 %v3652
        %v3751 = vpop.f32.mrb[0].mxu0
        %v3752 = vadd.f32 0.0, %v3751
        %v3753 = vpop.f32.mrb[0].mxu0
        %3754 = vmatprep.mubr.f32.mxu0 0.0
        %3755 = vmatmul.mubr.f32.gmra.mrb[0].mxu0 %v3655
        %v3756 = vpop.f32.mrb[0].mxu0
        %v3757 = vadd.f32 0.0, %v3756
        %v3758 = vpop.f32.mrb[0].mxu0
        %3759 = vmatprep.mubr.f32.mxu0 0.0
        %3760 = vmatmul.mubr.f32.gmra.mrb[0].mxu0 %v3658
        %v3761 = vpop.f32.mrb[0].mxu0
        %v3762 = vadd.f32 0.0, %v3761
        %v3763 = vpop.f32.mrb[0].mxu0
        %3764 = vdwg.mxu0
        %v3765 = vld [vmem:[%s20] sm:$0xff]
        %v3766 = vld [vmem:[%s20 + $0x8] sm:$0xff]
        %v3767 = vld [vmem:[%s20 + $0x10] sm:$0xff]
        %v3768 = vld [vmem:[%s20 + $0x18] sm:$0xff]
        %3769 = vmatprep.subr.mxu0 0.0
        %3770 = vmatpush1.msra.mxu0 %v3765
        %3771 = vmatprep.subr.mxu0 0.0
        %3772 = vmatpush1.msra.mxu0 %v3766
        %3773 = vmatprep.subr.mxu0 0.0
        %3774 = vmatpush1.msra.mxu0 %v3767
        %3775 = vmatprep.subr.mxu0 0.0
        %3776 = vmatpush1.msra.mxu0 %v3768
        %3777 = vmatprep.subr.mxu0 0.0
        %3778 = vmatpush1.msra.mxu0 0.0
        %3779 = vmatprep.subr.mxu0 0.0
        %3780 = vmatpush1.msra.mxu0 0.0
        %3781 = vmatprep.subr.mxu0 0.0
        %3782 = vmatpush1.msra.mxu0 0.0
        %3783 = vmatprep.subr.mxu0 0.0
        %3784 = vmatpush1.msra.mxu0 0.0
        %3785 = vmatprep.subr.mxu0 0.0
        %3786 = vmatpush1.msra.mxu0 0.0
        %3787 = vmatprep.subr.mxu0 0.0
        %3788 = vmatpush1.msra.mxu0 0.0
        %3789 = vmatprep.subr.mxu0 0.0
        %3790 = vmatpush1.msra.mxu0 0.0
        %3791 = vmatprep.subr.mxu0 0.0
        %3792 = vmatpush1.msra.mxu0 0.0
        %3793 = vmatprep.subr.mxu0 0.0
        %3794 = vmatpush1.msra.mxu0 0.0
        %3795 = vmatprep.subr.mxu0 0.0
        %3796 = vmatpush1.msra.mxu0 0.0
        %3797 = vmatprep.subr.mxu0 0.0
        %3798 = vmatpush1.msra.mxu0 0.0
        %3799 = vmatprep.subr.mxu0 0.0
        %3800 = vmatpush1.msra.mxu0 0.0
        %3801 = vmatprep.subr.mxu0 0.0
        %3802 = vmatpush1.msra.mxu0 0.0
        %3803 = vmatprep.subr.mxu0 0.0
        %3804 = vmatpush1.msra.mxu0 0.0
        %3805 = vmatprep.subr.mxu0 0.0
        %3806 = vmatpush1.msra.mxu0 0.0
        %3807 = vmatprep.subr.mxu0 0.0
        %3808 = vmatpush1.msra.mxu0 0.0
        %3809 = vmatprep.subr.mxu0 0.0
        %3810 = vmatpush1.msra.mxu0 0.0
        %3811 = vmatprep.subr.mxu0 0.0
        %3812 = vmatpush1.msra.mxu0 0.0
        %3813 = vmatprep.subr.mxu0 0.0
        %3814 = vmatpush1.msra.mxu0 0.0
        %3815 = vmatprep.subr.mxu0 0.0
        %3816 = vmatpush1.msra.mxu0 0.0
        %3817 = vmatprep.subr.mxu0 0.0
        %3818 = vmatpush1.msra.mxu0 0.0
        %3819 = vmatprep.subr.mxu0 0.0
        %3820 = vmatpush1.msra.mxu0 0.0
        %3821 = vmatprep.subr.mxu0 0.0
        %3822 = vmatpush1.msra.mxu0 0.0
        %3823 = vmatprep.subr.mxu0 0.0
        %3824 = vmatpush1.msra.mxu0 0.0
        %3825 = vmatprep.subr.mxu0 0.0
        %3826 = vmatpush1.msra.mxu0 0.0
        %3827 = vmatprep.subr.mxu0 0.0
        %3828 = vmatpush1.msra.mxu0 0.0
        %3829 = vmatprep.subr.mxu0 0.0
        %3830 = vmatpush1.msra.mxu0 0.0
        %3831 = vmatprep.subr.mxu0 0.0
        %3832 = vmatpush1.msra.mxu0 0.0
        %3833 = vmatprep.mubr.f32.mxu0 0.0
        %3834 = vmatmul.mubr.f32.gmra.mrb[0].mxu0 %v3508
        %v3835 = vpop.f32.mrb[0].mxu0
        %v3836 = vadd.f32 0.0, %v3835
        %v3837 = vpop.f32.mrb[0].mxu0
        %3838 = vmatprep.mubr.f32.mxu0 0.0
        %3839 = vmatmul.mubr.f32.gmra.mrb[0].mxu0 %v3511
        %v3840 = vpop.f32.mrb[0].mxu0
        %v3841 = vadd.f32 0.0, %v3840
        %v3842 = vpop.f32.mrb[0].mxu0
        %3843 = vmatprep.mubr.f32.mxu0 0.0
        %3844 = vmatmul.mubr.f32.gmra.mrb[0].mxu0 %v3514
        %v3845 = vpop.f32.mrb[0].mxu0
        %v3846 = vadd.f32 0.0, %v3845
        %v3847 = vpop.f32.mrb[0].mxu0
        %3848 = vmatprep.mubr.f32.mxu0 0.0
        %3849 = vmatmul.mubr.f32.gmra.mrb[0].mxu0 %v3517
        %v3850 = vpop.f32.mrb[0].mxu0
        %v3851 = vadd.f32 0.0, %v3850
        %v3852 = vpop.f32.mrb[0].mxu0
        %3853 = vmatprep.mubr.f32.mxu0 0.0
        %3854 = vmatmul.mubr.f32.gmra.mrb[0].mxu0 %v3520
        %v3855 = vpop.f32.mrb[0].mxu0
        %v3856 = vadd.f32 0.0, %v3855
        %v3857 = vpop.f32.mrb[0].mxu0
        %3858 = vmatprep.mubr.f32.mxu0 0.0
        %3859 = vmatmul.mubr.f32.gmra.mrb[0].mxu0 %v3523
        %v3860 = vpop.f32.mrb[0].mxu0
        %v3861 = vadd.f32 0.0, %v3860
        %v3862 = vpop.f32.mrb[0].mxu0
        %3863 = vmatprep.mubr.f32.mxu0 0.0
        %3864 = vmatmul.mubr.f32.gmra.mrb[0].mxu0 %v3526
        %v3865 = vpop.f32.mrb[0].mxu0
        %v3866 = vadd.f32 0.0, %v3865
        %v3867 = vpop.f32.mrb[0].mxu0
        %3868 = vmatprep.mubr.f32.mxu0 0.0
        %3869 = vmatmul.mubr.f32.gmra.mrb[0].mxu0 %v3529
        %v3870 = vpop.f32.mrb[0].mxu0
        %v3871 = vadd.f32 0.0, %v3870
        %v3872 = vpop.f32.mrb[0].mxu0
        %3873 = vdwg.mxu0
        %v3875 = vsel %vm740, %v3836, 0
        %v3878 = vsel %vm740, %v3841, 0
        %v3881 = vsel %vm740, %v3846, 0
        %v3884 = vsel %vm740, %v3851, 0
        %v3887 = vsel %vm740, %v3856, 0
        %v3890 = vsel %vm740, %v3861, 0
        %v3893 = vsel %vm740, %v3866, 0
        %v3896 = vsel %vm740, %v3871, 0
        %3898 = vmatprep.subr.mxu0 0.0
        %3899 = vmatpush1.xpose.msra.mxu0 %v3508
        %3900 = vmatprep.subr.mxu0 0.0
        %3901 = vmatpush1.xpose.msra.mxu0 %v3511
        %3902 = vmatprep.subr.mxu0 0.0
        %3903 = vmatpush1.xpose.msra.mxu0 %v3514
        %3904 = vmatprep.subr.mxu0 0.0
        %3905 = vmatpush1.xpose.msra.mxu0 %v3517
        %3906 = vmatprep.subr.mxu0 0.0
        %3907 = vmatpush1.xpose.msra.mxu0 %v3520
        %3908 = vmatprep.subr.mxu0 0.0
        %3909 = vmatpush1.xpose.msra.mxu0 %v3523
        %3910 = vmatprep.subr.mxu0 0.0
        %3911 = vmatpush1.xpose.msra.mxu0 %v3526
        %3912 = vmatprep.subr.mxu0 0.0
        %3913 = vmatpush1.xpose.msra.mxu0 %v3529
        %3914 = vmatprep.subr.mxu0 0.0
        %3915 = vmatpush1.xpose.msra.mxu0 0.0
        %3916 = vmatprep.subr.mxu0 0.0
        %3917 = vmatpush1.xpose.msra.mxu0 0.0
        %3918 = vmatprep.subr.mxu0 0.0
        %3919 = vmatpush1.xpose.msra.mxu0 0.0
        %3920 = vmatprep.subr.mxu0 0.0
        %3921 = vmatpush1.xpose.msra.mxu0 0.0
        %3922 = vmatprep.subr.mxu0 0.0
        %3923 = vmatpush1.xpose.msra.mxu0 0.0
        %3924 = vmatprep.subr.mxu0 0.0
        %3925 = vmatpush1.xpose.msra.mxu0 0.0
        %3926 = vmatprep.subr.mxu0 0.0
        %3927 = vmatpush1.xpose.msra.mxu0 0.0
        %3928 = vmatprep.subr.mxu0 0.0
        %3929 = vmatpush1.xpose.msra.mxu0 0.0
        %3930 = vmatprep.subr.mxu0 0.0
        %3931 = vmatpush1.xpose.msra.mxu0 0.0
        %3932 = vmatprep.subr.mxu0 0.0
        %3933 = vmatpush1.xpose.msra.mxu0 0.0
        %3934 = vmatprep.subr.mxu0 0.0
        %3935 = vmatpush1.xpose.msra.mxu0 0.0
        %3936 = vmatprep.subr.mxu0 0.0
        %3937 = vmatpush1.xpose.msra.mxu0 0.0
        %3938 = vmatprep.subr.mxu0 0.0
        %3939 = vmatpush1.xpose.msra.mxu0 0.0
        %3940 = vmatprep.subr.mxu0 0.0
        %3941 = vmatpush1.xpose.msra.mxu0 0.0
        %3942 = vmatprep.subr.mxu0 0.0
        %3943 = vmatpush1.xpose.msra.mxu0 0.0
        %3944 = vmatprep.subr.mxu0 0.0
        %3945 = vmatpush1.xpose.msra.mxu0 0.0
        %3946 = vmatprep.subr.mxu0 0.0
        %3947 = vmatpush1.xpose.msra.mxu0 0.0
        %3948 = vmatprep.subr.mxu0 0.0
        %3949 = vmatpush1.xpose.msra.mxu0 0.0
        %3950 = vmatprep.subr.mxu0 0.0
        %3951 = vmatpush1.xpose.msra.mxu0 0.0
        %3952 = vmatprep.subr.mxu0 0.0
        %3953 = vmatpush1.xpose.msra.mxu0 0.0
        %3954 = vmatprep.subr.mxu0 0.0
        %3955 = vmatpush1.xpose.msra.mxu0 0.0
        %3956 = vmatprep.subr.mxu0 0.0
        %3957 = vmatpush1.xpose.msra.mxu0 0.0
        %3958 = vmatprep.subr.mxu0 0.0
        %3959 = vmatpush1.xpose.msra.mxu0 0.0
        %3960 = vmatprep.subr.mxu0 0.0
        %3961 = vmatpush1.xpose.msra.mxu0 0.0
        %3962 = vmatprep.mubr.f32.mxu0 0.0
        %3963 = vmatmul.mubr.f32.gmra.mrb[0].mxu0 %v3875
        %v3964 = vpop.f32.mrb[0].mxu0
        %v3965 = vadd.f32 0.0, %v3964
        %v3966 = vpop.f32.mrb[0].mxu0
        %3967 = vmatprep.mubr.f32.mxu0 0.0
        %3968 = vmatmul.mubr.f32.gmra.mrb[0].mxu0 %v3878
        %v3969 = vpop.f32.mrb[0].mxu0
        %v3970 = vadd.f32 0.0, %v3969
        %v3971 = vpop.f32.mrb[0].mxu0
        %3972 = vmatprep.mubr.f32.mxu0 0.0
        %3973 = vmatmul.mubr.f32.gmra.mrb[0].mxu0 %v3881
        %v3974 = vpop.f32.mrb[0].mxu0
        %v3975 = vadd.f32 0.0, %v3974
        %v3976 = vpop.f32.mrb[0].mxu0
        %3977 = vmatprep.mubr.f32.mxu0 0.0
        %3978 = vmatmul.mubr.f32.gmra.mrb[0].mxu0 %v3884
        %v3979 = vpop.f32.mrb[0].mxu0
        %v3980 = vadd.f32 0.0, %v3979
        %v3981 = vpop.f32.mrb[0].mxu0
        %3982 = vmatprep.mubr.f32.mxu0 0.0
        %3983 = vmatmul.mubr.f32.gmra.mrb[0].mxu0 %v3887
        %v3984 = vpop.f32.mrb[0].mxu0
        %v3985 = vadd.f32 0.0, %v3984
        %v3986 = vpop.f32.mrb[0].mxu0
        %3987 = vmatprep.mubr.f32.mxu0 0.0
        %3988 = vmatmul.mubr.f32.gmra.mrb[0].mxu0 %v3890
        %v3989 = vpop.f32.mrb[0].mxu0
        %v3990 = vadd.f32 0.0, %v3989
        %v3991 = vpop.f32.mrb[0].mxu0
        %3992 = vmatprep.mubr.f32.mxu0 0.0
        %3993 = vmatmul.mubr.f32.gmra.mrb[0].mxu0 %v3893
        %v3994 = vpop.f32.mrb[0].mxu0
        %v3995 = vadd.f32 0.0, %v3994
        %v3996 = vpop.f32.mrb[0].mxu0
        %3997 = vmatprep.mubr.f32.mxu0 0.0
        %3998 = vmatmul.mubr.f32.gmra.mrb[0].mxu0 %v3896
        %v3999 = vpop.f32.mrb[0].mxu0
        %v4000 = vadd.f32 0.0, %v3999
        %v4001 = vpop.f32.mrb[0].mxu0
        %4002 = vdwg.mxu0
        %v4003 = vsel %vm1372, %v3965, -inf
        %4004 = vmax.xlane.f32.xlu0 %v4003
        %v4005 = vpop.xlane.xlu0 %4004
        %v4006 = vsel %vm1372, %v3970, -inf
        %4007 = vmax.xlane.f32.xlu0 %v4006
        %v4008 = vpop.xlane.xlu0 %4007
        %v4009 = vsel %vm1372, %v3975, -inf
        %4010 = vmax.xlane.f32.xlu0 %v4009
        %v4011 = vpop.xlane.xlu0 %4010
        %v4012 = vsel %vm1372, %v3980, -inf
        %4013 = vmax.xlane.f32.xlu0 %v4012
        %v4014 = vpop.xlane.xlu0 %4013
        %v4015 = vsel %vm1372, %v3985, -inf
        %4016 = vmax.xlane.f32.xlu0 %v4015
        %v4017 = vpop.xlane.xlu0 %4016
        %v4018 = vsel %vm1372, %v3990, -inf
        %4019 = vmax.xlane.f32.xlu0 %v4018
        %v4020 = vpop.xlane.xlu0 %4019
        %v4021 = vsel %vm1372, %v3995, -inf
        %4022 = vmax.xlane.f32.xlu0 %v4021
        %v4023 = vpop.xlane.xlu0 %4022
        %v4024 = vsel %vm1372, %v4000, -inf
        %4025 = vmax.xlane.f32.xlu0 %v4024
        %v4026 = vpop.xlane.xlu0 %4025
        %v4027 = vsub.f32 %v3965, %v4005
        %v4028 = vsub.f32 %v3970, %v4008
        %v4029 = vsub.f32 %v3975, %v4011
        %v4030 = vsub.f32 %v3980, %v4014
        %v4031 = vsub.f32 %v3985, %v4017
        %v4032 = vsub.f32 %v3990, %v4020
        %v4033 = vsub.f32 %v3995, %v4023
        %v4034 = vsub.f32 %v4000, %v4026
        %v4035 = vmul.f32 %v4027, 1.442695
        %v4036 = vpow.pop %v4035
        %v4037 = vmul.f32 %v4028, 1.442695
        %v4038 = vpow.pop %v4037
        %v4039 = vmul.f32 %v4029, 1.442695
        %v4040 = vpow.pop %v4039
        %v4041 = vmul.f32 %v4030, 1.442695
        %v4042 = vpow.pop %v4041
        %v4043 = vmul.f32 %v4031, 1.442695
        %v4044 = vpow.pop %v4043
        %v4045 = vmul.f32 %v4032, 1.442695
        %v4046 = vpow.pop %v4045
        %v4047 = vmul.f32 %v4033, 1.442695
        %v4048 = vpow.pop %v4047
        %v4049 = vmul.f32 %v4034, 1.442695
        %v4050 = vpow.pop %v4049
        %v4051 = vsel %vm1372, %v4036, 0.0
        %4052 = vadd.xlane.f32.xlu0 %v4051
        %v4053 = vpop.xlane.xlu0 %4052
        %v4054 = vsel %vm1372, %v4038, 0.0
        %4055 = vadd.xlane.f32.xlu0 %v4054
        %v4056 = vpop.xlane.xlu0 %4055
        %v4057 = vsel %vm1372, %v4040, 0.0
        %4058 = vadd.xlane.f32.xlu0 %v4057
        %v4059 = vpop.xlane.xlu0 %4058
        %v4060 = vsel %vm1372, %v4042, 0.0
        %4061 = vadd.xlane.f32.xlu0 %v4060
        %v4062 = vpop.xlane.xlu0 %4061
        %v4063 = vsel %vm1372, %v4044, 0.0
        %4064 = vadd.xlane.f32.xlu0 %v4063
        %v4065 = vpop.xlane.xlu0 %4064
        %v4066 = vsel %vm1372, %v4046, 0.0
        %4067 = vadd.xlane.f32.xlu0 %v4066
        %v4068 = vpop.xlane.xlu0 %4067
        %v4069 = vsel %vm1372, %v4048, 0.0
        %4070 = vadd.xlane.f32.xlu0 %v4069
        %v4071 = vpop.xlane.xlu0 %4070
        %v4072 = vsel %vm1372, %v4050, 0.0
        %4073 = vadd.xlane.f32.xlu0 %v4072
        %v4074 = vpop.xlane.xlu0 %4073
        %v4075 = vrcp.pop %v4053
        %v4076 = vrcp.pop %v4056
        %v4077 = vrcp.pop %v4059
        %v4078 = vrcp.pop %v4062
        %v4079 = vrcp.pop %v4065
        %v4080 = vrcp.pop %v4068
        %v4081 = vrcp.pop %v4071
        %v4082 = vrcp.pop %v4074
        %v4083 = vmul.f32 %v4036, %v4075
        %v4084 = vmul.f32 %v4038, %v4076
        %v4085 = vmul.f32 %v4040, %v4077
        %v4086 = vmul.f32 %v4042, %v4078
        %v4087 = vmul.f32 %v4044, %v4079
        %v4088 = vmul.f32 %v4046, %v4080
        %v4089 = vmul.f32 %v4048, %v4081
        %v4090 = vmul.f32 %v4050, %v4082
        %v4091 = vld [vmem:[%s21] sm:$0xff]
        %v4092 = vld [vmem:[%s21 + $0x8] sm:$0xff]
        %v4093 = vld [vmem:[%s21 + $0x10] sm:$0xff]
        %v4094 = vld [vmem:[%s21 + $0x18] sm:$0xff]
        %4095 = vmatprep.subr.mxu0 0.0
        %4096 = vmatpush1.msra.mxu0 %v4091
        %4097 = vmatprep.subr.mxu0 0.0
        %4098 = vmatpush1.msra.mxu0 %v4092
        %4099 = vmatprep.subr.mxu0 0.0
        %4100 = vmatpush1.msra.mxu0 %v4093
        %4101 = vmatprep.subr.mxu0 0.0
        %4102 = vmatpush1.msra.mxu0 %v4094
        %4103 = vmatprep.subr.mxu0 0.0
        %4104 = vmatpush1.msra.mxu0 0.0
        %4105 = vmatprep.subr.mxu0 0.0
        %4106 = vmatpush1.msra.mxu0 0.0
        %4107 = vmatprep.subr.mxu0 0.0
        %4108 = vmatpush1.msra.mxu0 0.0
        %4109 = vmatprep.subr.mxu0 0.0
        %4110 = vmatpush1.msra.mxu0 0.0
        %4111 = vmatprep.subr.mxu0 0.0
        %4112 = vmatpush1.msra.mxu0 0.0
        %4113 = vmatprep.subr.mxu0 0.0
        %4114 = vmatpush1.msra.mxu0 0.0
        %4115 = vmatprep.subr.mxu0 0.0
        %4116 = vmatpush1.msra.mxu0 0.0
        %4117 = vmatprep.subr.mxu0 0.0
        %4118 = vmatpush1.msra.mxu0 0.0
        %4119 = vmatprep.subr.mxu0 0.0
        %4120 = vmatpush1.msra.mxu0 0.0
        %4121 = vmatprep.subr.mxu0 0.0
        %4122 = vmatpush1.msra.mxu0 0.0
        %4123 = vmatprep.subr.mxu0 0.0
        %4124 = vmatpush1.msra.mxu0 0.0
        %4125 = vmatprep.subr.mxu0 0.0
        %4126 = vmatpush1.msra.mxu0 0.0
        %4127 = vmatprep.subr.mxu0 0.0
        %4128 = vmatpush1.msra.mxu0 0.0
        %4129 = vmatprep.subr.mxu0 0.0
        %4130 = vmatpush1.msra.mxu0 0.0
        %4131 = vmatprep.subr.mxu0 0.0
        %4132 = vmatpush1.msra.mxu0 0.0
        %4133 = vmatprep.subr.mxu0 0.0
        %4134 = vmatpush1.msra.mxu0 0.0
        %4135 = vmatprep.subr.mxu0 0.0
        %4136 = vmatpush1.msra.mxu0 0.0
        %4137 = vmatprep.subr.mxu0 0.0
        %4138 = vmatpush1.msra.mxu0 0.0
        %4139 = vmatprep.subr.mxu0 0.0
        %4140 = vmatpush1.msra.mxu0 0.0
        %4141 = vmatprep.subr.mxu0 0.0
        %4142 = vmatpush1.msra.mxu0 0.0
        %4143 = vmatprep.subr.mxu0 0.0
        %4144 = vmatpush1.msra.mxu0 0.0
        %4145 = vmatprep.subr.mxu0 0.0
        %4146 = vmatpush1.msra.mxu0 0.0
        %4147 = vmatprep.subr.mxu0 0.0
        %4148 = vmatpush1.msra.mxu0 0.0
        %4149 = vmatprep.subr.mxu0 0.0
        %4150 = vmatpush1.msra.mxu0 0.0
        %4151 = vmatprep.subr.mxu0 0.0
        %4152 = vmatpush1.msra.mxu0 0.0
        %4153 = vmatprep.subr.mxu0 0.0
        %4154 = vmatpush1.msra.mxu0 0.0
        %4155 = vmatprep.subr.mxu0 0.0
        %4156 = vmatpush1.msra.mxu0 0.0
        %4157 = vmatprep.subr.mxu0 0.0
        %4158 = vmatpush1.msra.mxu0 0.0
        %4159 = vmatprep.mubr.f32.mxu0 0.0
        %4160 = vmatmul.mubr.f32.gmra.mrb[0].mxu0 %v3158
        %v4161 = vpop.f32.mrb[0].mxu0
        %v4162 = vadd.f32 0.0, %v4161
        %v4163 = vpop.f32.mrb[0].mxu0
        %4164 = vmatprep.mubr.f32.mxu0 0.0
        %4165 = vmatmul.mubr.f32.gmra.mrb[0].mxu0 %v3161
        %v4166 = vpop.f32.mrb[0].mxu0
        %v4167 = vadd.f32 0.0, %v4166
        %v4168 = vpop.f32.mrb[0].mxu0
        %4169 = vmatprep.mubr.f32.mxu0 0.0
        %4170 = vmatmul.mubr.f32.gmra.mrb[0].mxu0 %v3164
        %v4171 = vpop.f32.mrb[0].mxu0
        %v4172 = vadd.f32 0.0, %v4171
        %v4173 = vpop.f32.mrb[0].mxu0
        %4174 = vmatprep.mubr.f32.mxu0 0.0
        %4175 = vmatmul.mubr.f32.gmra.mrb[0].mxu0 %v3167
        %v4176 = vpop.f32.mrb[0].mxu0
        %v4177 = vadd.f32 0.0, %v4176
        %v4178 = vpop.f32.mrb[0].mxu0
        %4179 = vmatprep.mubr.f32.mxu0 0.0
        %4180 = vmatmul.mubr.f32.gmra.mrb[0].mxu0 %v3170
        %v4181 = vpop.f32.mrb[0].mxu0
        %v4182 = vadd.f32 0.0, %v4181
        %v4183 = vpop.f32.mrb[0].mxu0
        %4184 = vmatprep.mubr.f32.mxu0 0.0
        %4185 = vmatmul.mubr.f32.gmra.mrb[0].mxu0 %v3173
        %v4186 = vpop.f32.mrb[0].mxu0
        %v4187 = vadd.f32 0.0, %v4186
        %v4188 = vpop.f32.mrb[0].mxu0
        %4189 = vmatprep.mubr.f32.mxu0 0.0
        %4190 = vmatmul.mubr.f32.gmra.mrb[0].mxu0 %v3176
        %v4191 = vpop.f32.mrb[0].mxu0
        %v4192 = vadd.f32 0.0, %v4191
        %v4193 = vpop.f32.mrb[0].mxu0
        %4194 = vmatprep.mubr.f32.mxu0 0.0
        %4195 = vmatmul.mubr.f32.gmra.mrb[0].mxu0 %v3179
        %v4196 = vpop.f32.mrb[0].mxu0
        %v4197 = vadd.f32 0.0, %v4196
        %v4198 = vpop.f32.mrb[0].mxu0
        %4199 = vdwg.mxu0
        %v4201 = vsel %vm1372, %v4083, 0
        %v4204 = vsel %vm1372, %v4084, 0
        %v4207 = vsel %vm1372, %v4085, 0
        %v4210 = vsel %vm1372, %v4086, 0
        %v4213 = vsel %vm1372, %v4087, 0
        %v4216 = vsel %vm1372, %v4088, 0
        %v4219 = vsel %vm1372, %v4089, 0
        %v4222 = vsel %vm1372, %v4090, 0
        %4224 = vmatprep.subr.mxu0 0.0
        %4225 = vmatpush1.msra.mxu0 %v4162
        %4226 = vmatprep.subr.mxu0 0.0
        %4227 = vmatpush1.msra.mxu0 %v4167
        %4228 = vmatprep.subr.mxu0 0.0
        %4229 = vmatpush1.msra.mxu0 %v4172
        %4230 = vmatprep.subr.mxu0 0.0
        %4231 = vmatpush1.msra.mxu0 %v4177
        %4232 = vmatprep.subr.mxu0 0.0
        %4233 = vmatpush1.msra.mxu0 %v4182
        %4234 = vmatprep.subr.mxu0 0.0
        %4235 = vmatpush1.msra.mxu0 %v4187
        %4236 = vmatprep.subr.mxu0 0.0
        %4237 = vmatpush1.msra.mxu0 %v4192
        %4238 = vmatprep.subr.mxu0 0.0
        %4239 = vmatpush1.msra.mxu0 %v4197
        %4240 = vmatprep.subr.mxu0 0.0
        %4241 = vmatpush1.msra.mxu0 0.0
        %4242 = vmatprep.subr.mxu0 0.0
        %4243 = vmatpush1.msra.mxu0 0.0
        %4244 = vmatprep.subr.mxu0 0.0
        %4245 = vmatpush1.msra.mxu0 0.0
        %4246 = vmatprep.subr.mxu0 0.0
        %4247 = vmatpush1.msra.mxu0 0.0
        %4248 = vmatprep.subr.mxu0 0.0
        %4249 = vmatpush1.msra.mxu0 0.0
        %4250 = vmatprep.subr.mxu0 0.0
        %4251 = vmatpush1.msra.mxu0 0.0
        %4252 = vmatprep.subr.mxu0 0.0
        %4253 = vmatpush1.msra.mxu0 0.0
        %4254 = vmatprep.subr.mxu0 0.0
        %4255 = vmatpush1.msra.mxu0 0.0
        %4256 = vmatprep.subr.mxu0 0.0
        %4257 = vmatpush1.msra.mxu0 0.0
        %4258 = vmatprep.subr.mxu0 0.0
        %4259 = vmatpush1.msra.mxu0 0.0
        %4260 = vmatprep.subr.mxu0 0.0
        %4261 = vmatpush1.msra.mxu0 0.0
        %4262 = vmatprep.subr.mxu0 0.0
        %4263 = vmatpush1.msra.mxu0 0.0
        %4264 = vmatprep.subr.mxu0 0.0
        %4265 = vmatpush1.msra.mxu0 0.0
        %4266 = vmatprep.subr.mxu0 0.0
        %4267 = vmatpush1.msra.mxu0 0.0
        %4268 = vmatprep.subr.mxu0 0.0
        %4269 = vmatpush1.msra.mxu0 0.0
        %4270 = vmatprep.subr.mxu0 0.0
        %4271 = vmatpush1.msra.mxu0 0.0
        %4272 = vmatprep.subr.mxu0 0.0
        %4273 = vmatpush1.msra.mxu0 0.0
        %4274 = vmatprep.subr.mxu0 0.0
        %4275 = vmatpush1.msra.mxu0 0.0
        %4276 = vmatprep.subr.mxu0 0.0
        %4277 = vmatpush1.msra.mxu0 0.0
        %4278 = vmatprep.subr.mxu0 0.0
        %4279 = vmatpush1.msra.mxu0 0.0
        %4280 = vmatprep.subr.mxu0 0.0
        %4281 = vmatpush1.msra.mxu0 0.0
        %4282 = vmatprep.subr.mxu0 0.0
        %4283 = vmatpush1.msra.mxu0 0.0
        %4284 = vmatprep.subr.mxu0 0.0
        %4285 = vmatpush1.msra.mxu0 0.0
        %4286 = vmatprep.subr.mxu0 0.0
        %4287 = vmatpush1.msra.mxu0 0.0
        %4288 = vmatprep.mubr.f32.mxu0 0.0
        %4289 = vmatmul.mubr.f32.gmra.mrb[0].mxu0 %v4201
        %v4290 = vpop.f32.mrb[0].mxu0
        %v4291 = vadd.f32 0.0, %v4290
        %v4292 = vpop.f32.mrb[0].mxu0
        %4293 = vmatprep.mubr.f32.mxu0 0.0
        %4294 = vmatmul.mubr.f32.gmra.mrb[0].mxu0 %v4204
        %v4295 = vpop.f32.mrb[0].mxu0
        %v4296 = vadd.f32 0.0, %v4295
        %v4297 = vpop.f32.mrb[0].mxu0
        %4298 = vmatprep.mubr.f32.mxu0 0.0
        %4299 = vmatmul.mubr.f32.gmra.mrb[0].mxu0 %v4207
        %v4300 = vpop.f32.mrb[0].mxu0
        %v4301 = vadd.f32 0.0, %v4300
        %v4302 = vpop.f32.mrb[0].mxu0
        %4303 = vmatprep.mubr.f32.mxu0 0.0
        %4304 = vmatmul.mubr.f32.gmra.mrb[0].mxu0 %v4210
        %v4305 = vpop.f32.mrb[0].mxu0
        %v4306 = vadd.f32 0.0, %v4305
        %v4307 = vpop.f32.mrb[0].mxu0
        %4308 = vmatprep.mubr.f32.mxu0 0.0
        %4309 = vmatmul.mubr.f32.gmra.mrb[0].mxu0 %v4213
        %v4310 = vpop.f32.mrb[0].mxu0
        %v4311 = vadd.f32 0.0, %v4310
        %v4312 = vpop.f32.mrb[0].mxu0
        %4313 = vmatprep.mubr.f32.mxu0 0.0
        %4314 = vmatmul.mubr.f32.gmra.mrb[0].mxu0 %v4216
        %v4315 = vpop.f32.mrb[0].mxu0
        %v4316 = vadd.f32 0.0, %v4315
        %v4317 = vpop.f32.mrb[0].mxu0
        %4318 = vmatprep.mubr.f32.mxu0 0.0
        %4319 = vmatmul.mubr.f32.gmra.mrb[0].mxu0 %v4219
        %v4320 = vpop.f32.mrb[0].mxu0
        %v4321 = vadd.f32 0.0, %v4320
        %v4322 = vpop.f32.mrb[0].mxu0
        %4323 = vmatprep.mubr.f32.mxu0 0.0
        %4324 = vmatmul.mubr.f32.gmra.mrb[0].mxu0 %v4222
        %v4325 = vpop.f32.mrb[0].mxu0
        %v4326 = vadd.f32 0.0, %v4325
        %v4327 = vpop.f32.mrb[0].mxu0
        %4328 = vdwg.mxu0
        %v4329 = vadd.f32 %v1952, %v3727
        %v4330 = vadd.f32 %v1953, %v3732
        %v4331 = vadd.f32 %v1954, %v3737
        %v4332 = vadd.f32 %v1955, %v3742
        %v4333 = vadd.f32 %v1956, %v3747
        %v4334 = vadd.f32 %v1957, %v3752
        %v4335 = vadd.f32 %v1958, %v3757
        %v4336 = vadd.f32 %v1959, %v3762
        %4337 = vst.msk [vmem:[%s722] sm:$0xff] %vm740, %v4329
        %4338 = vst.msk [vmem:[%s722 + $0x8] sm:$0xff] %vm740, %v4330
        %4339 = vst.msk [vmem:[%s722 + $0x10] sm:$0xff] %vm740, %v4331
        %4340 = vst.msk [vmem:[%s722 + $0x18] sm:$0xff] %vm740, %v4332
        %4341 = vst.msk [vmem:[%s722 + $0x20] sm:$0xff] %vm740, %v4333
        %4342 = vst.msk [vmem:[%s722 + $0x28] sm:$0xff] %vm740, %v4334
        %4343 = vst.msk [vmem:[%s722 + $0x30] sm:$0xff] %vm740, %v4335
        %4344 = vst.msk [vmem:[%s722 + $0x38] sm:$0xff] %vm740, %v4336
        %v4345 = vadd.f32 %v3145, %v4291
        %v4346 = vadd.f32 %v3146, %v4296
        %v4347 = vadd.f32 %v3147, %v4301
        %v4348 = vadd.f32 %v3148, %v4306
        %v4349 = vadd.f32 %v3149, %v4311
        %v4350 = vadd.f32 %v3150, %v4316
        %v4351 = vadd.f32 %v3151, %v4321
        %v4352 = vadd.f32 %v3152, %v4326
        %4353 = vst.msk [vmem:[%s729] sm:$0xff] %vm740, %v4345
        %4354 = vst.msk [vmem:[%s729 + $0x8] sm:$0xff] %vm740, %v4346
        %4355 = vst.msk [vmem:[%s729 + $0x10] sm:$0xff] %vm740, %v4347
        %4356 = vst.msk [vmem:[%s729 + $0x18] sm:$0xff] %vm740, %v4348
        %4357 = vst.msk [vmem:[%s729 + $0x20] sm:$0xff] %vm740, %v4349
        %4358 = vst.msk [vmem:[%s729 + $0x28] sm:$0xff] %vm740, %v4350
        %4359 = vst.msk [vmem:[%s729 + $0x30] sm:$0xff] %vm740, %v4351
        %4360 = vst.msk [vmem:[%s729 + $0x38] sm:$0xff] %vm740, %v4352
        %s4361 = sand.u32 %s521, 1
        %s4362 = scalar_lea.sflag [#allocation4], %s4361
        %s4363 = sand.u32 %s521, 1
        %s4364 = smul.addr %s4363, 64
        %s4365 = scalar_lea.vmem [#allocation3], %s4364
        %s4366 = sand.u32 %s547, 1
        %s4367 = scalar_lea.sflag [#allocation6], %s4366
        %s4368 = sand.u32 %s547, 1
        %s4369 = smul.addr %s4368, 64
        %s4370 = scalar_lea.vmem [#allocation5], %s4369
        // Predicated region
        $region109: #{feature_exchange_module.1} parent=107 // pred_check
          %p4371 = pneg %p531
        $region110: #{feature_exchange_module.1} parent=107 // pred_check_branch
          %4373 = sbr.rel (%p4371) target = $region112
        $region111: #{feature_exchange_module.1} parent=107 // pred_region
          %s4375 = ssub.s32 1024, 1024
          %4376 = vsyncadd %s4362, %s4375
          %s4377 = smul.addr %s41, 8
          %s4378 = smul.addr %s4377, 128
          %s4379 = scalar_lea.hbm %s22, %s4378
          %s4380 = sshll.u32 %s4365, 4
          %s4381 = int_to_ptr.vmem [resolvable:$true] %s4380
          %4386 = dma.vmem_to_hbm [thread:$0]  %s4381, 1024, %s4379, %s4362, 128, 128, 8
        $region112: #{feature_exchange_module.1} parent=107 // pred_fallthru
          _
        // Predicated region
        $region113: #{feature_exchange_module.1} parent=107 // pred_check
          %p4387 = pneg %p557
        $region114: #{feature_exchange_module.1} parent=107 // pred_check_branch
          %4389 = sbr.rel (%p4387) target = $region116
        $region115: #{feature_exchange_module.1} parent=107 // pred_region
          %s4391 = ssub.s32 1024, 1024
          %4392 = vsyncadd %s4367, %s4391
          %s4393 = smul.addr %s41, 8
          %s4394 = smul.addr %s4393, 128
          %s4395 = scalar_lea.hbm %s23, %s4394
          %s4396 = sshll.u32 %s4370, 4
          %s4397 = int_to_ptr.vmem [resolvable:$true] %s4396
          %4402 = dma.vmem_to_hbm [thread:$0]  %s4397, 1024, %s4395, %s4367, 128, 128, 8
        $region116: #{feature_exchange_module.1} parent=107 // pred_fallthru
          _
      $region108: #{feature_exchange_module.1} parent=5 // pred_fallthru
        _
      %p4403 = scmp.le.s32.totalorder 2, %s36
      // Predicated region
      $region117: #{feature_exchange_module.1} parent=5 // pred_check
        %p4404 = pneg %p4403
      $region118: #{feature_exchange_module.1} parent=5 // pred_check_branch
        %4406 = sbr.rel (%p4404) target = $region120
      $region119: #{feature_exchange_module.1} parent=5 // pred_region
        %s4407 = ssub.s32 %s36, 2
        // Predicated region
        $region121: #{feature_exchange_module.1} parent=119 // pred_check
          %p4408 = pneg %p537
        $region122: #{feature_exchange_module.1} parent=119 // pred_check_branch
          %4410 = sbr.rel (%p4408) target = $region124
        $region123: #{feature_exchange_module.1} parent=119 // pred_region
          %s4411 = sand.u32 %s522, 1
          %s4412 = scalar_lea.sflag [#allocation4], %s4411
          %s4413 = sand.u32 %s522, 1
          %s4414 = smul.addr %s4413, 64
          %s4415 = scalar_lea.vmem [#allocation3], %s4414
          %4416 = dma.done %s4412, 1024
        $region124: #{feature_exchange_module.1} parent=119 // pred_fallthru
          _
        // Predicated region
        $region125: #{feature_exchange_module.1} parent=119 // pred_check
          %p4417 = pneg %p563
        $region126: #{feature_exchange_module.1} parent=119 // pred_check_branch
          %4419 = sbr.rel (%p4417) target = $region128
        $region127: #{feature_exchange_module.1} parent=119 // pred_region
          %s4420 = sand.u32 %s548, 1
          %s4421 = scalar_lea.sflag [#allocation6], %s4420
          %s4422 = sand.u32 %s548, 1
          %s4423 = smul.addr %s4422, 64
          %s4424 = scalar_lea.vmem [#allocation5], %s4423
          %4425 = dma.done %s4421, 1024
        $region128: #{feature_exchange_module.1} parent=119 // pred_fallthru
          _
      $region120: #{feature_exchange_module.1} parent=5 // pred_fallthru
        _
    $region6: #{feature_exchange_module.1} parent=1 // loop_footer
      %s40 = sadd.s32 1, %s36
    $region7: #{feature_exchange_module.1} parent=1 // loop_footer_branch
      %35 = sbr.rel target = $region3
    $region8: #{feature_exchange_module.1} parent=1 // loop_exit
      _
    %4426 = vsyncpa [#allocation4], 1
    %s4427 = scalar_lea.sflag [#allocation4], 1
    %4428 = vsyncpa %s4427, 1
    %4429 = vsyncpa [#allocation6], 1
    %s4430 = scalar_lea.sflag [#allocation6], 1
    %4431 = vsyncpa %s4430, 1

</llo_original>
